<compile_context>
chip_gen: v7x
topology: tpu7x:2x2x1
jax: 0.10.0
libtpu: 0.0.40
codegen_flags: <defaults>
</compile_context>

<pallas_src>
import functools

import jax
import jax.numpy as jnp
from jax.experimental import pallas as pl
from jax.experimental.pallas import tpu as pltpu

UNIT_OUT = 16
MODEL_SIZE = 128          # original default 1024; shrunk for a small runnable example
INS = 2 + UNIT_OUT * 5 + UNIT_OUT * 5 + (UNIT_OUT // 4) * 24 \
    + (UNIT_OUT // 4) * 30 + (UNIT_OUT // 4) * 11 \
    + (UNIT_OUT // 4) * 30 + (UNIT_OUT // 4) * 11          # == 586

# obs column segments: [globals + champs | neutral | small units]
SEG_A = 2 + UNIT_OUT * 5 + UNIT_OUT * 5          # 162
SEG_N = (UNIT_OUT // 4) * 24                     # 96
SEG_B = INS - SEG_A - SEG_N                      # 328


# ----------------------------- Pallas kernels -----------------------------

def _unit_mlps_kernel(ac_x, ec_x, nu_x, au_x, eu_x,
                      ac_w1, ac_b1, ac_w2, ac_b2,
                      ec_w1, ec_b1, ec_w2, ec_b2,
                      nu_w1, nu_b1, nu_w2, nu_b2,
                      au_w1, au_b1, au_w2, au_b2,
                      eu_w1, eu_b1, eu_w2, eu_b2,
                      ac_o, ec_o, nu_o, au_o, eu_o):
    """All five UnitModule MLPs: relu(relu(x @ w1 + b1) @ w2 + b2)."""
    def mlp(x_ref, w1, b1, w2, b2):
        h = jnp.maximum(
            jnp.dot(x_ref[...], w1[...], preferred_element_type=jnp.float32)
            + b1[...], 0.0)
        return jnp.maximum(
            jnp.dot(h, w2[...], preferred_element_type=jnp.float32)
            + b2[...], 0.0)

    ac_o[...] = mlp(ac_x, ac_w1, ac_b1, ac_w2, ac_b2)
    ec_o[...] = mlp(ec_x, ec_w1, ec_b1, ec_w2, ec_b2)
    nu_o[...] = mlp(nu_x, nu_w1, nu_b1, nu_w2, nu_b2)
    au_o[...] = mlp(au_x, au_w1, au_b1, au_w2, au_b2)
    eu_o[...] = mlp(eu_x, eu_w1, eu_b1, eu_w2, eu_b2)


def _head_kernel(nu_cat, obs_a, obs_b,
                 ns_w1, ns_b1, ns_w2, ns_b2,
                 wih_a, wih_n, wih_b, whh, lstm_b,
                 act_w, act_b,
                 o_ref, xg_s, *, hidden, seq_len):
    """Neutral-unit aggregation + 2-step LSTM + sigmoid(Linear(H, 1))."""
    H = hidden

    # UnitTypeModule aggregation: relu(fc1), fc2 (no relu on fc2).
    ns_h = jnp.maximum(
        jnp.dot(nu_cat[...], ns_w1[...], preferred_element_type=jnp.float32)
        + ns_b1[...], 0.0)
    neutral_s = (jnp.dot(ns_h, ns_w2[...], preferred_element_type=jnp.float32)
                 + ns_b2[...])

    # Input projection for all time steps at once (hoisted out of the loop):
    #   obs @ W_ih + b == obs_a @ wih_a + neutral_s @ wih_n + obs_b @ wih_b + b
    xg_s[...] = (
        jnp.dot(obs_a[...], wih_a[...], preferred_element_type=jnp.float32)
        + jnp.dot(neutral_s, wih_n[...], preferred_element_type=jnp.float32)
        + jnp.dot(obs_b[...], wih_b[...], preferred_element_type=jnp.float32)
        + lstm_b[...])

    whh_v = whh[...]
    act_w_v = act_w[...]
    act_b_v = act_b[...]

    h = jnp.zeros((1, H), jnp.float32)
    c = jnp.zeros((1, H), jnp.float32)
    for t in range(seq_len):                 # static unroll (seq_len == 2)
        gates = xg_s[t:t + 1, :] + jnp.dot(h, whh_v,
                                           preferred_element_type=jnp.float32)
        i_g = jax.nn.sigmoid(gates[:, 0:H])          # PyTorch gate order i,f,g,o
        f_g = jax.nn.sigmoid(gates[:, H:2 * H])
        g_g = jnp.tanh(gates[:, 2 * H:3 * H])
        o_g = jax.nn.sigmoid(gates[:, 3 * H:4 * H])
        c = f_g * c + i_g * g_g
        h = o_g * jnp.tanh(c)
        y = jax.nn.sigmoid(
            jnp.dot(h, act_w_v, preferred_element_type=jnp.float32) + act_b_v)
        o_ref[t:t + 1, :] = y


# ----------------------------- Pallas wrappers -----------------------------

def _full_specs(arrays):
    return [pl.BlockSpec(a.shape, lambda i: (0, 0)) for a in arrays]


def _run_unit_mlps(p, ac_in, ec_in, nu_in, au_in, eu_in):
    args = (ac_in, ec_in, nu_in, au_in, eu_in,
            p['ac_w1'], p['ac_b1'], p['ac_w2'], p['ac_b2'],
            p['ec_w1'], p['ec_b1'], p['ec_w2'], p['ec_b2'],
            p['nu_w1'], p['nu_b1'], p['nu_w2'], p['nu_b2'],
            p['au_w1'], p['au_b1'], p['au_w2'], p['au_b2'],
            p['eu_w1'], p['eu_b1'], p['eu_w2'], p['eu_b2'])
    out_shapes = (
        jax.ShapeDtypeStruct((10, 16), jnp.float32),   # allied champs
        jax.ShapeDtypeStruct((10, 16), jnp.float32),   # enemy champs
        jax.ShapeDtypeStruct((48, 4), jnp.float32),    # neutral units
        jax.ShapeDtypeStruct((104, 4), jnp.float32),   # allied_units weights (52 units)
        jax.ShapeDtypeStruct((60, 4), jnp.float32),    # enemy_units weights (30 units)
    )
    out_specs = tuple(pl.BlockSpec(s.shape, lambda i: (0, 0)) for s in out_shapes)
    return pl.pallas_call(
        _unit_mlps_kernel,
        out_shape=out_shapes,
        grid=(1,),
        in_specs=_full_specs(args),
        out_specs=out_specs,
    )(*args)


def _run_head(p, nu_cat, obs_a, obs_b):
    args = (nu_cat, obs_a, obs_b,
            p['ns_w1'], p['ns_b1'], p['ns_w2'], p['ns_b2'],
            p['wih_a'], p['wih_n'], p['wih_b'], p['whh'], p['lstm_b'],
            p['act_w'], p['act_b'])
    T, H = 2, MODEL_SIZE
    return pl.pallas_call(
        functools.partial(_head_kernel, hidden=H, seq_len=T),
        out_shape=jax.ShapeDtypeStruct((T, 1), jnp.float32),
        grid=(1,),
        in_specs=_full_specs(args),
        out_specs=pl.BlockSpec((T, 1), lambda i: (0, 0)),
        scratch_shapes=[pltpu.VMEM((T, 4 * H), jnp.float32)],
    )(*args)


# ----------------------------- parameters -----------------------------

def _linear_params(key, fan_in, fan_out):
    """PyTorch nn.Linear default init; weight stored transposed (in, out),
    bias stored as (1, out) so it broadcasts over rows inside the kernels."""
    kw, kb = jax.random.split(key)
    bound = float(fan_in) ** -0.5
    w = jax.random.uniform(kw, (fan_in, fan_out), jnp.float32, -bound, bound)
    b = jax.random.uniform(kb, (1, fan_out), jnp.float32, -bound, bound)
    return w, b


def init_params(key):
    keys = jax.random.split(key, 16)
    p = {}
    # allied_champs / enemy_champs: UnitModule(51, 16) -> 51 -> 25 -> 16
    p['ac_w1'], p['ac_b1'] = _linear_params(keys[0], 51, 25)
    p['ac_w2'], p['ac_b2'] = _linear_params(keys[1], 25, 16)
    p['ec_w1'], p['ec_b1'] = _linear_params(keys[2], 51, 25)
    p['ec_w2'], p['ec_b2'] = _linear_params(keys[3], 25, 16)
    # neutral_units.unit_module: UnitModule(17, 4) -> 17 -> 8 -> 4
    p['nu_w1'], p['nu_b1'] = _linear_params(keys[4], 17, 8)
    p['nu_w2'], p['nu_b2'] = _linear_params(keys[5], 8, 4)
    # neutral_units aggregation: 96 -> 48 -> 96
    p['ns_w1'], p['ns_b1'] = _linear_params(keys[6], 96, 48)
    p['ns_w2'], p['ns_b2'] = _linear_params(keys[7], 48, 96)
    # allied_units / enemy_units: UnitModule(17, 4)
    p['au_w1'], p['au_b1'] = _linear_params(keys[8], 17, 8)
    p['au_w2'], p['au_b2'] = _linear_params(keys[9], 8, 4)
    p['eu_w1'], p['eu_b1'] = _linear_params(keys[10], 17, 8)
    p['eu_w2'], p['eu_b2'] = _linear_params(keys[11], 8, 4)
    # lstm_fc (ins -> ins) exists in the reference module but its output is
    # discarded by the reference forward; intentionally omitted here.
    # LSTM(ins, H) — weights stored transposed for right-multiplication.
    H = MODEL_SIZE
    bound = float(H) ** -0.5
    kk = jax.random.split(keys[13], 4)
    wih = jax.random.uniform(kk[0], (INS, 4 * H), jnp.float32, -bound, bound)
    # Pre-split W_ih to match the obs segments [globals+champs | neutral | small].
    p['wih_a'] = wih[:SEG_A, :]
    p['wih_n'] = wih[SEG_A:SEG_A + SEG_N, :]
    p['wih_b'] = wih[SEG_A + SEG_N:, :]
    p['whh'] = jax.random.uniform(kk[1], (H, 4 * H), jnp.float32, -bound, bound)
    b_ih = jax.random.uniform(kk[2], (4 * H,), jnp.float32, -bound, bound)
    b_hh = jax.random.uniform(kk[3], (4 * H,), jnp.float32, -bound, bound)
    p['lstm_b'] = (b_ih + b_hh).reshape(1, 4 * H)
    # action: Linear(H, 1)
    p['act_w'], p['act_b'] = _linear_params(keys[14], H, 1)
    return p


# ----------------------------- forward (jit glue + 2 kernels) -----------------------------

@jax.jit
def agent_forward(p, x_raw, x_champs, x_jungle, x_minions, x_turrets):
    globals_ = x_raw[0:2, 0:2]                                        # (2, 2)

    # champs: 10 units x 65 features; per-unit keep cols [0:14] ++ [28:65] -> 51
    champs = x_champs[0:2, :].reshape(2, 10, 65)
    champ_feats = jnp.concatenate([champs[:, :, 0:14], champs[:, :, 28:65]],
                                  axis=2)                             # (2, 10, 51)
    ac_in = champ_feats[:, 0:5, :].reshape(10, 51)    # rows ordered [obs_row, unit]
    ec_in = champ_feats[:, 5:10, :].reshape(10, 51)

    # neutral (jungle) units: 24 units x 17 features
    nu_in = x_jungle[0:2, :].reshape(2, 24, 17).reshape(48, 17)

    # small units through `allied_units` weights: allied minions 0..29,
    # allied turrets 0..10, and (reference bug) enemy turrets 11..21.
    minions = x_minions[0:2, :].reshape(2, 60, 17)
    turrets = x_turrets[0:2, :].reshape(2, 22, 17)
    au_in = jnp.concatenate([minions[:, 0:30], turrets[:, 0:11], turrets[:, 11:22]],
                            axis=1).reshape(104, 17)
    # enemy minions 30..59 through `enemy_units` weights
    eu_in = minions[:, 30:60].reshape(60, 17)

    ac_out, ec_out, nu_out, au_out, eu_out = _run_unit_mlps(
        p, ac_in, ec_in, nu_in, au_in, eu_in)

    # Per-row slabs (torch.cat(units, axis=2) semantics): rows were ordered
    # [obs_row, unit], so a plain reshape gives [row, unit*feat].
    acs = ac_out.reshape(2, 5 * 16)                                   # (2, 80)
    ecs = ec_out.reshape(2, 5 * 16)                                   # (2, 80)
    nu_cat = nu_out.reshape(2, 24 * 4)                                # (2, 96)
    au_full = au_out.reshape(2, 52 * 4)                               # (2, 208)
    allied_units_s = au_full[:, 0:164]                                # minions 0..29 + turrets 0..10
    enemy_turrets_s = au_full[:, 164:208]                             # turrets 11..21 (via allied weights)
    enemy_minions_s = eu_out.reshape(2, 30 * 4)                       # (2, 120)
    enemy_units_s = jnp.concatenate([enemy_minions_s, enemy_turrets_s], axis=1)

    obs_a = jnp.concatenate([globals_, acs, ecs], axis=1)             # (2, 162)
    obs_b = jnp.concatenate([allied_units_s, enemy_units_s], axis=1)  # (2, 328)

    # NOTE: the reference also computes F.relu(self.lstm_fc(obs)) and discards
    # it; that dead computation is intentionally omitted (outputs unchanged).

    y = _run_head(p, nu_cat, obs_a, obs_b)                            # (2, 1)
    return y.reshape(1, 2, 1)                                         # (batch=1, seq=2, 1)


# ----------------------------- main -----------------------------

if __name__ == "__main__":
    key = jax.random.PRNGKey(0)
    pkey, dkey = jax.random.split(key)
    params = init_params(pkey)

    dks = jax.random.split(dkey, 5)
    x_raw     = jax.random.uniform(dks[0], (2, 2), jnp.float32)       # globals table
    x_champs  = jax.random.uniform(dks[1], (2, 10 * 65), jnp.float32)
    x_jungle  = jax.random.uniform(dks[2], (2, 24 * 17), jnp.float32)
    x_minions = jax.random.uniform(dks[3], (2, 60 * 17), jnp.float32)
    x_turrets = jax.random.uniform(dks[4], (2, 22 * 17), jnp.float32)

    out = agent_forward(params, x_raw, x_champs, x_jungle, x_minions, x_turrets)
    out = jax.block_until_ready(out)
    assert out.shape == (1, 2, 1) and out.dtype == jnp.float32
    assert bool(jnp.all(jnp.isfinite(out)))
    print("KERNEL_OK")
</pallas_src>

<mosaic_0001>
module attributes {stable_mosaic.version = 11 : i64} {
  func.func @_unit_mlps_kernel(%arg0: i32, %arg1: memref<10x51xf32, #tpu.memory_space<vmem>>, %arg2: memref<10x51xf32, #tpu.memory_space<vmem>>, %arg3: memref<48x17xf32, #tpu.memory_space<vmem>>, %arg4: memref<104x17xf32, #tpu.memory_space<vmem>>, %arg5: memref<60x17xf32, #tpu.memory_space<vmem>>, %arg6: memref<51x25xf32, #tpu.memory_space<vmem>>, %arg7: memref<1x25xf32, #tpu.memory_space<vmem>>, %arg8: memref<25x16xf32, #tpu.memory_space<vmem>>, %arg9: memref<1x16xf32, #tpu.memory_space<vmem>>, %arg10: memref<51x25xf32, #tpu.memory_space<vmem>>, %arg11: memref<1x25xf32, #tpu.memory_space<vmem>>, %arg12: memref<25x16xf32, #tpu.memory_space<vmem>>, %arg13: memref<1x16xf32, #tpu.memory_space<vmem>>, %arg14: memref<17x8xf32, #tpu.memory_space<vmem>>, %arg15: memref<1x8xf32, #tpu.memory_space<vmem>>, %arg16: memref<8x4xf32, #tpu.memory_space<vmem>>, %arg17: memref<1x4xf32, #tpu.memory_space<vmem>>, %arg18: memref<17x8xf32, #tpu.memory_space<vmem>>, %arg19: memref<1x8xf32, #tpu.memory_space<vmem>>, %arg20: memref<8x4xf32, #tpu.memory_space<vmem>>, %arg21: memref<1x4xf32, #tpu.memory_space<vmem>>, %arg22: memref<17x8xf32, #tpu.memory_space<vmem>>, %arg23: memref<1x8xf32, #tpu.memory_space<vmem>>, %arg24: memref<8x4xf32, #tpu.memory_space<vmem>>, %arg25: memref<1x4xf32, #tpu.memory_space<vmem>>, %arg26: memref<10x16xf32, #tpu.memory_space<vmem>>, %arg27: memref<10x16xf32, #tpu.memory_space<vmem>>, %arg28: memref<48x4xf32, #tpu.memory_space<vmem>>, %arg29: memref<104x4xf32, #tpu.memory_space<vmem>>, %arg30: memref<60x4xf32, #tpu.memory_space<vmem>>) attributes {dimension_semantics = [#tpu.dimension_semantics<arbitrary>], iteration_bounds = array<i64: 1>, scalar_prefetch = 0 : i64, scratch_operands = 0 : i64, tpu.core_type = #tpu.core_type<tc>, window_params = [{pipeline_mode = #tpu.pipeline_mode<synchronous>, transform_indices = @transform_0, window_bounds = array<i64: 10, 51>}, {pipeline_mode = #tpu.pipeline_mode<synchronous>, transform_indices = @transform_1, window_bounds = array<i64: 10, 51>}, {pipeline_mode = #tpu.pipeline_mode<synchronous>, transform_indices = @transform_2, window_bounds = array<i64: 48, 17>}, {pipeline_mode = #tpu.pipeline_mode<synchronous>, transform_indices = @transform_3, window_bounds = array<i64: 104, 17>}, {pipeline_mode = #tpu.pipeline_mode<synchronous>, transform_indices = @transform_4, window_bounds = array<i64: 60, 17>}, {pipeline_mode = #tpu.pipeline_mode<synchronous>, transform_indices = @transform_5, window_bounds = array<i64: 51, 25>}, {pipeline_mode = #tpu.pipeline_mode<synchronous>, transform_indices = @transform_6, window_bounds = array<i64: 1, 25>}, {pipeline_mode = #tpu.pipeline_mode<synchronous>, transform_indices = @transform_7, window_bounds = array<i64: 25, 16>}, {pipeline_mode = #tpu.pipeline_mode<synchronous>, transform_indices = @transform_8, window_bounds = array<i64: 1, 16>}, {pipeline_mode = #tpu.pipeline_mode<synchronous>, transform_indices = @transform_9, window_bounds = array<i64: 51, 25>}, {pipeline_mode = #tpu.pipeline_mode<synchronous>, transform_indices = @transform_10, window_bounds = array<i64: 1, 25>}, {pipeline_mode = #tpu.pipeline_mode<synchronous>, transform_indices = @transform_11, window_bounds = array<i64: 25, 16>}, {pipeline_mode = #tpu.pipeline_mode<synchronous>, transform_indices = @transform_12, window_bounds = array<i64: 1, 16>}, {pipeline_mode = #tpu.pipeline_mode<synchronous>, transform_indices = @transform_13, window_bounds = array<i64: 17, 8>}, {pipeline_mode = #tpu.pipeline_mode<synchronous>, transform_indices = @transform_14, window_bounds = array<i64: 1, 8>}, {pipeline_mode = #tpu.pipeline_mode<synchronous>, transform_indices = @transform_15, window_bounds = array<i64: 8, 4>}, {pipeline_mode = #tpu.pipeline_mode<synchronous>, transform_indices = @transform_16, window_bounds = array<i64: 1, 4>}, {pipeline_mode = #tpu.pipeline_mode<synchronous>, transform_indices = @transform_17, window_bounds = array<i64: 17, 8>}, {pipeline_mode = #tpu.pipeline_mode<synchronous>, transform_indices = @transform_18, window_bounds = array<i64: 1, 8>}, {pipeline_mode = #tpu.pipeline_mode<synchronous>, transform_indices = @transform_19, window_bounds = array<i64: 8, 4>}, {pipeline_mode = #tpu.pipeline_mode<synchronous>, transform_indices = @transform_20, window_bounds = array<i64: 1, 4>}, {pipeline_mode = #tpu.pipeline_mode<synchronous>, transform_indices = @transform_21, window_bounds = array<i64: 17, 8>}, {pipeline_mode = #tpu.pipeline_mode<synchronous>, transform_indices = @transform_22, window_bounds = array<i64: 1, 8>}, {pipeline_mode = #tpu.pipeline_mode<synchronous>, transform_indices = @transform_23, window_bounds = array<i64: 8, 4>}, {pipeline_mode = #tpu.pipeline_mode<synchronous>, transform_indices = @transform_24, window_bounds = array<i64: 1, 4>}, {pipeline_mode = #tpu.pipeline_mode<synchronous>, transform_indices = @transform_25, window_bounds = array<i64: 10, 16>}, {pipeline_mode = #tpu.pipeline_mode<synchronous>, transform_indices = @transform_26, window_bounds = array<i64: 10, 16>}, {pipeline_mode = #tpu.pipeline_mode<synchronous>, transform_indices = @transform_27, window_bounds = array<i64: 48, 4>}, {pipeline_mode = #tpu.pipeline_mode<synchronous>, transform_indices = @transform_28, window_bounds = array<i64: 104, 4>}, {pipeline_mode = #tpu.pipeline_mode<synchronous>, transform_indices = @transform_29, window_bounds = array<i64: 60, 4>}]} {
    %c0 = arith.constant 0 : index
    %c0_0 = arith.constant 0 : index
    %0 = vector.load %arg1[%c0, %c0_0] : memref<10x51xf32, #tpu.memory_space<vmem>>, vector<10x51xf32>
    %c0_1 = arith.constant 0 : index
    %c0_2 = arith.constant 0 : index
    %1 = vector.load %arg6[%c0_1, %c0_2] : memref<51x25xf32, #tpu.memory_space<vmem>>, vector<51x25xf32>
    %cst = arith.constant dense<0.000000e+00> : vector<10x25xf32>
    %2 = tpu.matmul %0, %1, %cst {dimension_numbers = #tpu.dot_dimension_numbers<[1], [0], [0], [1], [0, 0, 1, 1], [], []>} : vector<10x51xf32>, vector<51x25xf32>, vector<10x25xf32> -> vector<10x25xf32>
    %c0_3 = arith.constant 0 : index
    %c0_4 = arith.constant 0 : index
    %3 = vector.load %arg7[%c0_3, %c0_4] : memref<1x25xf32, #tpu.memory_space<vmem>>, vector<1x25xf32>
    %4 = vector.broadcast %3 : vector<1x25xf32> to vector<10x25xf32>
    %5 = arith.addf %2, %4 : vector<10x25xf32>
    %cst_5 = arith.constant 0.000000e+00 : f32
    %6 = vector.broadcast %cst_5 : f32 to vector<10x25xf32>
    %7 = arith.maximumf %5, %6 : vector<10x25xf32>
    %c0_6 = arith.constant 0 : index
    %c0_7 = arith.constant 0 : index
    %8 = vector.load %arg8[%c0_6, %c0_7] : memref<25x16xf32, #tpu.memory_space<vmem>>, vector<25x16xf32>
    %cst_8 = arith.constant dense<0.000000e+00> : vector<10x16xf32>
    %9 = tpu.matmul %7, %8, %cst_8 {dimension_numbers = #tpu.dot_dimension_numbers<[1], [0], [0], [1], [0, 0, 1, 1], [], []>} : vector<10x25xf32>, vector<25x16xf32>, vector<10x16xf32> -> vector<10x16xf32>
    %c0_9 = arith.constant 0 : index
    %c0_10 = arith.constant 0 : index
    %10 = vector.load %arg9[%c0_9, %c0_10] : memref<1x16xf32, #tpu.memory_space<vmem>>, vector<1x16xf32>
    %11 = vector.broadcast %10 : vector<1x16xf32> to vector<10x16xf32>
    %12 = arith.addf %9, %11 : vector<10x16xf32>
    %cst_11 = arith.constant 0.000000e+00 : f32
    %13 = vector.broadcast %cst_11 : f32 to vector<10x16xf32>
    %14 = arith.maximumf %12, %13 : vector<10x16xf32>
    %c0_12 = arith.constant 0 : index
    %c0_13 = arith.constant 0 : index
    %15 = vector.load %arg26[%c0_12, %c0_13] : memref<10x16xf32, #tpu.memory_space<vmem>>, vector<10x16xf32>
    tpu.vector_store %arg26[%c0_12, %c0_13], %14 {strides = array<i32>} : memref<10x16xf32, #tpu.memory_space<vmem>>, vector<10x16xf32>,
    %c0_14 = arith.constant 0 : index
    %c0_15 = arith.constant 0 : index
    %16 = vector.load %arg2[%c0_14, %c0_15] : memref<10x51xf32, #tpu.memory_space<vmem>>, vector<10x51xf32>
    %c0_16 = arith.constant 0 : index
    %c0_17 = arith.constant 0 : index
    %17 = vector.load %arg10[%c0_16, %c0_17] : memref<51x25xf32, #tpu.memory_space<vmem>>, vector<51x25xf32>
    %cst_18 = arith.constant dense<0.000000e+00> : vector<10x25xf32>
    %18 = tpu.matmul %16, %17, %cst_18 {dimension_numbers = #tpu.dot_dimension_numbers<[1], [0], [0], [1], [0, 0, 1, 1], [], []>} : vector<10x51xf32>, vector<51x25xf32>, vector<10x25xf32> -> vector<10x25xf32>
    %c0_19 = arith.constant 0 : index
    %c0_20 = arith.constant 0 : index
    %19 = vector.load %arg11[%c0_19, %c0_20] : memref<1x25xf32, #tpu.memory_space<vmem>>, vector<1x25xf32>
    %20 = vector.broadcast %19 : vector<1x25xf32> to vector<10x25xf32>
    %21 = arith.addf %18, %20 : vector<10x25xf32>
    %cst_21 = arith.constant 0.000000e+00 : f32
    %22 = vector.broadcast %cst_21 : f32 to vector<10x25xf32>
    %23 = arith.maximumf %21, %22 : vector<10x25xf32>
    %c0_22 = arith.constant 0 : index
    %c0_23 = arith.constant 0 : index
    %24 = vector.load %arg12[%c0_22, %c0_23] : memref<25x16xf32, #tpu.memory_space<vmem>>, vector<25x16xf32>
    %cst_24 = arith.constant dense<0.000000e+00> : vector<10x16xf32>
    %25 = tpu.matmul %23, %24, %cst_24 {dimension_numbers = #tpu.dot_dimension_numbers<[1], [0], [0], [1], [0, 0, 1, 1], [], []>} : vector<10x25xf32>, vector<25x16xf32>, vector<10x16xf32> -> vector<10x16xf32>
    %c0_25 = arith.constant 0 : index
    %c0_26 = arith.constant 0 : index
    %26 = vector.load %arg13[%c0_25, %c0_26] : memref<1x16xf32, #tpu.memory_space<vmem>>, vector<1x16xf32>
    %27 = vector.broadcast %26 : vector<1x16xf32> to vector<10x16xf32>
    %28 = arith.addf %25, %27 : vector<10x16xf32>
    %cst_27 = arith.constant 0.000000e+00 : f32
    %29 = vector.broadcast %cst_27 : f32 to vector<10x16xf32>
    %30 = arith.maximumf %28, %29 : vector<10x16xf32>
    %c0_28 = arith.constant 0 : index
    %c0_29 = arith.constant 0 : index
    %31 = vector.load %arg27[%c0_28, %c0_29] : memref<10x16xf32, #tpu.memory_space<vmem>>, vector<10x16xf32>
    tpu.vector_store %arg27[%c0_28, %c0_29], %30 {strides = array<i32>} : memref<10x16xf32, #tpu.memory_space<vmem>>, vector<10x16xf32>,
    %c0_30 = arith.constant 0 : index
    %c0_31 = arith.constant 0 : index
    %32 = vector.load %arg3[%c0_30, %c0_31] : memref<48x17xf32, #tpu.memory_space<vmem>>, vector<48x17xf32>
    %c0_32 = arith.constant 0 : index
    %c0_33 = arith.constant 0 : index
    %33 = vector.load %arg14[%c0_32, %c0_33] : memref<17x8xf32, #tpu.memory_space<vmem>>, vector<17x8xf32>
    %cst_34 = arith.constant dense<0.000000e+00> : vector<48x8xf32>
    %34 = tpu.matmul %32, %33, %cst_34 {dimension_numbers = #tpu.dot_dimension_numbers<[1], [0], [0], [1], [0, 0, 1, 1], [], []>} : vector<48x17xf32>, vector<17x8xf32>, vector<48x8xf32> -> vector<48x8xf32>
    %c0_35 = arith.constant 0 : index
    %c0_36 = arith.constant 0 : index
    %35 = vector.load %arg15[%c0_35, %c0_36] : memref<1x8xf32, #tpu.memory_space<vmem>>, vector<1x8xf32>
    %36 = vector.broadcast %35 : vector<1x8xf32> to vector<48x8xf32>
    %37 = arith.addf %34, %36 : vector<48x8xf32>
    %cst_37 = arith.constant 0.000000e+00 : f32
    %38 = vector.broadcast %cst_37 : f32 to vector<48x8xf32>
    %39 = arith.maximumf %37, %38 : vector<48x8xf32>
    %c0_38 = arith.constant 0 : index
    %c0_39 = arith.constant 0 : index
    %40 = vector.load %arg16[%c0_38, %c0_39] : memref<8x4xf32, #tpu.memory_space<vmem>>, vector<8x4xf32>
    %cst_40 = arith.constant dense<0.000000e+00> : vector<48x4xf32>
    %41 = tpu.matmul %39, %40, %cst_40 {dimension_numbers = #tpu.dot_dimension_numbers<[1], [0], [0], [1], [0, 0, 1, 1], [], []>} : vector<48x8xf32>, vector<8x4xf32>, vector<48x4xf32> -> vector<48x4xf32>
    %c0_41 = arith.constant 0 : index
    %c0_42 = arith.constant 0 : index
    %42 = vector.load %arg17[%c0_41, %c0_42] : memref<1x4xf32, #tpu.memory_space<vmem>>, vector<1x4xf32>
    %43 = vector.broadcast %42 : vector<1x4xf32> to vector<48x4xf32>
    %44 = arith.addf %41, %43 : vector<48x4xf32>
    %cst_43 = arith.constant 0.000000e+00 : f32
    %45 = vector.broadcast %cst_43 : f32 to vector<48x4xf32>
    %46 = arith.maximumf %44, %45 : vector<48x4xf32>
    %c0_44 = arith.constant 0 : index
    %c0_45 = arith.constant 0 : index
    %47 = vector.load %arg28[%c0_44, %c0_45] : memref<48x4xf32, #tpu.memory_space<vmem>>, vector<48x4xf32>
    tpu.vector_store %arg28[%c0_44, %c0_45], %46 {strides = array<i32>} : memref<48x4xf32, #tpu.memory_space<vmem>>, vector<48x4xf32>,
    %c0_46 = arith.constant 0 : index
    %c0_47 = arith.constant 0 : index
    %48 = vector.load %arg4[%c0_46, %c0_47] : memref<104x17xf32, #tpu.memory_space<vmem>>, vector<104x17xf32>
    %c0_48 = arith.constant 0 : index
    %c0_49 = arith.constant 0 : index
    %49 = vector.load %arg18[%c0_48, %c0_49] : memref<17x8xf32, #tpu.memory_space<vmem>>, vector<17x8xf32>
    %cst_50 = arith.constant dense<0.000000e+00> : vector<104x8xf32>
    %50 = tpu.matmul %48, %49, %cst_50 {dimension_numbers = #tpu.dot_dimension_numbers<[1], [0], [0], [1], [0, 0, 1, 1], [], []>} : vector<104x17xf32>, vector<17x8xf32>, vector<104x8xf32> -> vector<104x8xf32>
    %c0_51 = arith.constant 0 : index
    %c0_52 = arith.constant 0 : index
    %51 = vector.load %arg19[%c0_51, %c0_52] : memref<1x8xf32, #tpu.memory_space<vmem>>, vector<1x8xf32>
    %52 = vector.broadcast %51 : vector<1x8xf32> to vector<104x8xf32>
    %53 = arith.addf %50, %52 : vector<104x8xf32>
    %cst_53 = arith.constant 0.000000e+00 : f32
    %54 = vector.broadcast %cst_53 : f32 to vector<104x8xf32>
    %55 = arith.maximumf %53, %54 : vector<104x8xf32>
    %c0_54 = arith.constant 0 : index
    %c0_55 = arith.constant 0 : index
    %56 = vector.load %arg20[%c0_54, %c0_55] : memref<8x4xf32, #tpu.memory_space<vmem>>, vector<8x4xf32>
    %cst_56 = arith.constant dense<0.000000e+00> : vector<104x4xf32>
    %57 = tpu.matmul %55, %56, %cst_56 {dimension_numbers = #tpu.dot_dimension_numbers<[1], [0], [0], [1], [0, 0, 1, 1], [], []>} : vector<104x8xf32>, vector<8x4xf32>, vector<104x4xf32> -> vector<104x4xf32>
    %c0_57 = arith.constant 0 : index
    %c0_58 = arith.constant 0 : index
    %58 = vector.load %arg21[%c0_57, %c0_58] : memref<1x4xf32, #tpu.memory_space<vmem>>, vector<1x4xf32>
    %59 = vector.broadcast %58 : vector<1x4xf32> to vector<104x4xf32>
    %60 = arith.addf %57, %59 : vector<104x4xf32>
    %cst_59 = arith.constant 0.000000e+00 : f32
    %61 = vector.broadcast %cst_59 : f32 to vector<104x4xf32>
    %62 = arith.maximumf %60, %61 : vector<104x4xf32>
    %c0_60 = arith.constant 0 : index
    %c0_61 = arith.constant 0 : index
    %63 = vector.load %arg29[%c0_60, %c0_61] : memref<104x4xf32, #tpu.memory_space<vmem>>, vector<104x4xf32>
    tpu.vector_store %arg29[%c0_60, %c0_61], %62 {strides = array<i32>} : memref<104x4xf32, #tpu.memory_space<vmem>>, vector<104x4xf32>,
    %c0_62 = arith.constant 0 : index
    %c0_63 = arith.constant 0 : index
    %64 = vector.load %arg5[%c0_62, %c0_63] : memref<60x17xf32, #tpu.memory_space<vmem>>, vector<60x17xf32>
    %c0_64 = arith.constant 0 : index
    %c0_65 = arith.constant 0 : index
    %65 = vector.load %arg22[%c0_64, %c0_65] : memref<17x8xf32, #tpu.memory_space<vmem>>, vector<17x8xf32>
    %cst_66 = arith.constant dense<0.000000e+00> : vector<60x8xf32>
    %66 = tpu.matmul %64, %65, %cst_66 {dimension_numbers = #tpu.dot_dimension_numbers<[1], [0], [0], [1], [0, 0, 1, 1], [], []>} : vector<60x17xf32>, vector<17x8xf32>, vector<60x8xf32> -> vector<60x8xf32>
    %c0_67 = arith.constant 0 : index
    %c0_68 = arith.constant 0 : index
    %67 = vector.load %arg23[%c0_67, %c0_68] : memref<1x8xf32, #tpu.memory_space<vmem>>, vector<1x8xf32>
    %68 = vector.broadcast %67 : vector<1x8xf32> to vector<60x8xf32>
    %69 = arith.addf %66, %68 : vector<60x8xf32>
    %cst_69 = arith.constant 0.000000e+00 : f32
    %70 = vector.broadcast %cst_69 : f32 to vector<60x8xf32>
    %71 = arith.maximumf %69, %70 : vector<60x8xf32>
    %c0_70 = arith.constant 0 : index
    %c0_71 = arith.constant 0 : index
    %72 = vector.load %arg24[%c0_70, %c0_71] : memref<8x4xf32, #tpu.memory_space<vmem>>, vector<8x4xf32>
    %cst_72 = arith.constant dense<0.000000e+00> : vector<60x4xf32>
    %73 = tpu.matmul %71, %72, %cst_72 {dimension_numbers = #tpu.dot_dimension_numbers<[1], [0], [0], [1], [0, 0, 1, 1], [], []>} : vector<60x8xf32>, vector<8x4xf32>, vector<60x4xf32> -> vector<60x4xf32>
    %c0_73 = arith.constant 0 : index
    %c0_74 = arith.constant 0 : index
    %74 = vector.load %arg25[%c0_73, %c0_74] : memref<1x4xf32, #tpu.memory_space<vmem>>, vector<1x4xf32>
    %75 = vector.broadcast %74 : vector<1x4xf32> to vector<60x4xf32>
    %76 = arith.addf %73, %75 : vector<60x4xf32>
    %cst_75 = arith.constant 0.000000e+00 : f32
    %77 = vector.broadcast %cst_75 : f32 to vector<60x4xf32>
    %78 = arith.maximumf %76, %77 : vector<60x4xf32>
    %c0_76 = arith.constant 0 : index
    %c0_77 = arith.constant 0 : index
    %79 = vector.load %arg30[%c0_76, %c0_77] : memref<60x4xf32, #tpu.memory_space<vmem>>, vector<60x4xf32>
    tpu.vector_store %arg30[%c0_76, %c0_77], %78 {strides = array<i32>} : memref<60x4xf32, #tpu.memory_space<vmem>>, vector<60x4xf32>,
    return
  }
  func.func @transform_0(%arg0: i32) -> (i32, i32) {
    %c0_i32 = arith.constant 0 : i32
    %c0_i32_0 = arith.constant 0 : i32
    %c0_i32_1 = arith.constant 0 : i32
    return %c0_i32, %c0_i32_0 : i32, i32
  }
  func.func @transform_1(%arg0: i32) -> (i32, i32) {
    %c0_i32 = arith.constant 0 : i32
    %c0_i32_0 = arith.constant 0 : i32
    %c0_i32_1 = arith.constant 0 : i32
    return %c0_i32, %c0_i32_0 : i32, i32
  }
  func.func @transform_2(%arg0: i32) -> (i32, i32) {
    %c0_i32 = arith.constant 0 : i32
    %c0_i32_0 = arith.constant 0 : i32
    %c0_i32_1 = arith.constant 0 : i32
    return %c0_i32, %c0_i32_0 : i32, i32
  }
  func.func @transform_3(%arg0: i32) -> (i32, i32) {
    %c0_i32 = arith.constant 0 : i32
    %c0_i32_0 = arith.constant 0 : i32
    %c0_i32_1 = arith.constant 0 : i32
    return %c0_i32, %c0_i32_0 : i32, i32
  }
  func.func @transform_4(%arg0: i32) -> (i32, i32) {
    %c0_i32 = arith.constant 0 : i32
    %c0_i32_0 = arith.constant 0 : i32
    %c0_i32_1 = arith.constant 0 : i32
    return %c0_i32, %c0_i32_0 : i32, i32
  }
  func.func @transform_5(%arg0: i32) -> (i32, i32) {
    %c0_i32 = arith.constant 0 : i32
    %c0_i32_0 = arith.constant 0 : i32
    %c0_i32_1 = arith.constant 0 : i32
    return %c0_i32, %c0_i32_0 : i32, i32
  }
  func.func @transform_6(%arg0: i32) -> (i32, i32) {
    %c0_i32 = arith.constant 0 : i32
    %c0_i32_0 = arith.constant 0 : i32
    %c0_i32_1 = arith.constant 0 : i32
    return %c0_i32, %c0_i32_0 : i32, i32
  }
  func.func @transform_7(%arg0: i32) -> (i32, i32) {
    %c0_i32 = arith.constant 0 : i32
    %c0_i32_0 = arith.constant 0 : i32
    %c0_i32_1 = arith.constant 0 : i32
    return %c0_i32, %c0_i32_0 : i32, i32
  }
  func.func @transform_8(%arg0: i32) -> (i32, i32) {
    %c0_i32 = arith.constant 0 : i32
    %c0_i32_0 = arith.constant 0 : i32
    %c0_i32_1 = arith.constant 0 : i32
    return %c0_i32, %c0_i32_0 : i32, i32
  }
  func.func @transform_9(%arg0: i32) -> (i32, i32) {
    %c0_i32 = arith.constant 0 : i32
    %c0_i32_0 = arith.constant 0 : i32
    %c0_i32_1 = arith.constant 0 : i32
    return %c0_i32, %c0_i32_0 : i32, i32
  }
  func.func @transform_10(%arg0: i32) -> (i32, i32) {
    %c0_i32 = arith.constant 0 : i32
    %c0_i32_0 = arith.constant 0 : i32
    %c0_i32_1 = arith.constant 0 : i32
    return %c0_i32, %c0_i32_0 : i32, i32
  }
  func.func @transform_11(%arg0: i32) -> (i32, i32) {
    %c0_i32 = arith.constant 0 : i32
    %c0_i32_0 = arith.constant 0 : i32
    %c0_i32_1 = arith.constant 0 : i32
    return %c0_i32, %c0_i32_0 : i32, i32
  }
  func.func @transform_12(%arg0: i32) -> (i32, i32) {
    %c0_i32 = arith.constant 0 : i32
    %c0_i32_0 = arith.constant 0 : i32
    %c0_i32_1 = arith.constant 0 : i32
    return %c0_i32, %c0_i32_0 : i32, i32
  }
  func.func @transform_13(%arg0: i32) -> (i32, i32) {
    %c0_i32 = arith.constant 0 : i32
    %c0_i32_0 = arith.constant 0 : i32
    %c0_i32_1 = arith.constant 0 : i32
    return %c0_i32, %c0_i32_0 : i32, i32
  }
  func.func @transform_14(%arg0: i32) -> (i32, i32) {
    %c0_i32 = arith.constant 0 : i32
    %c0_i32_0 = arith.constant 0 : i32
    %c0_i32_1 = arith.constant 0 : i32
    return %c0_i32, %c0_i32_0 : i32, i32
  }
  func.func @transform_15(%arg0: i32) -> (i32, i32) {
    %c0_i32 = arith.constant 0 : i32
    %c0_i32_0 = arith.constant 0 : i32
    %c0_i32_1 = arith.constant 0 : i32
    return %c0_i32, %c0_i32_0 : i32, i32
  }
  func.func @transform_16(%arg0: i32) -> (i32, i32) {
    %c0_i32 = arith.constant 0 : i32
    %c0_i32_0 = arith.constant 0 : i32
    %c0_i32_1 = arith.constant 0 : i32
    return %c0_i32, %c0_i32_0 : i32, i32
  }
  func.func @transform_17(%arg0: i32) -> (i32, i32) {
    %c0_i32 = arith.constant 0 : i32
    %c0_i32_0 = arith.constant 0 : i32
    %c0_i32_1 = arith.constant 0 : i32
    return %c0_i32, %c0_i32_0 : i32, i32
  }
  func.func @transform_18(%arg0: i32) -> (i32, i32) {
    %c0_i32 = arith.constant 0 : i32
    %c0_i32_0 = arith.constant 0 : i32
    %c0_i32_1 = arith.constant 0 : i32
    return %c0_i32, %c0_i32_0 : i32, i32
  }
  func.func @transform_19(%arg0: i32) -> (i32, i32) {
    %c0_i32 = arith.constant 0 : i32
    %c0_i32_0 = arith.constant 0 : i32
    %c0_i32_1 = arith.constant 0 : i32
    return %c0_i32, %c0_i32_0 : i32, i32
  }
  func.func @transform_20(%arg0: i32) -> (i32, i32) {
    %c0_i32 = arith.constant 0 : i32
    %c0_i32_0 = arith.constant 0 : i32
    %c0_i32_1 = arith.constant 0 : i32
    return %c0_i32, %c0_i32_0 : i32, i32
  }
  func.func @transform_21(%arg0: i32) -> (i32, i32) {
    %c0_i32 = arith.constant 0 : i32
    %c0_i32_0 = arith.constant 0 : i32
    %c0_i32_1 = arith.constant 0 : i32
    return %c0_i32, %c0_i32_0 : i32, i32
  }
  func.func @transform_22(%arg0: i32) -> (i32, i32) {
    %c0_i32 = arith.constant 0 : i32
    %c0_i32_0 = arith.constant 0 : i32
    %c0_i32_1 = arith.constant 0 : i32
    return %c0_i32, %c0_i32_0 : i32, i32
  }
  func.func @transform_23(%arg0: i32) -> (i32, i32) {
    %c0_i32 = arith.constant 0 : i32
    %c0_i32_0 = arith.constant 0 : i32
    %c0_i32_1 = arith.constant 0 : i32
    return %c0_i32, %c0_i32_0 : i32, i32
  }
  func.func @transform_24(%arg0: i32) -> (i32, i32) {
    %c0_i32 = arith.constant 0 : i32
    %c0_i32_0 = arith.constant 0 : i32
    %c0_i32_1 = arith.constant 0 : i32
    return %c0_i32, %c0_i32_0 : i32, i32
  }
  func.func @transform_25(%arg0: i32) -> (i32, i32) {
    %c0_i32 = arith.constant 0 : i32
    %c0_i32_0 = arith.constant 0 : i32
    %c0_i32_1 = arith.constant 0 : i32
    return %c0_i32, %c0_i32_0 : i32, i32
  }
  func.func @transform_26(%arg0: i32) -> (i32, i32) {
    %c0_i32 = arith.constant 0 : i32
    %c0_i32_0 = arith.constant 0 : i32
    %c0_i32_1 = arith.constant 0 : i32
    return %c0_i32, %c0_i32_0 : i32, i32
  }
  func.func @transform_27(%arg0: i32) -> (i32, i32) {
    %c0_i32 = arith.constant 0 : i32
    %c0_i32_0 = arith.constant 0 : i32
    %c0_i32_1 = arith.constant 0 : i32
    return %c0_i32, %c0_i32_0 : i32, i32
  }
  func.func @transform_28(%arg0: i32) -> (i32, i32) {
    %c0_i32 = arith.constant 0 : i32
    %c0_i32_0 = arith.constant 0 : i32
    %c0_i32_1 = arith.constant 0 : i32
    return %c0_i32, %c0_i32_0 : i32, i32
  }
  func.func @transform_29(%arg0: i32) -> (i32, i32) {
    %c0_i32 = arith.constant 0 : i32
    %c0_i32_0 = arith.constant 0 : i32
    %c0_i32_1 = arith.constant 0 : i32
    return %c0_i32, %c0_i32_0 : i32, i32
  }
}

module attributes {stable_mosaic.version = 11 : i64} {
  func.func @_head_kernel(%arg0: i32, %arg1: memref<2x96xf32, #tpu.memory_space<vmem>>, %arg2: memref<2x162xf32, #tpu.memory_space<vmem>>, %arg3: memref<2x328xf32, #tpu.memory_space<vmem>>, %arg4: memref<96x48xf32, #tpu.memory_space<vmem>>, %arg5: memref<1x48xf32, #tpu.memory_space<vmem>>, %arg6: memref<48x96xf32, #tpu.memory_space<vmem>>, %arg7: memref<1x96xf32, #tpu.memory_space<vmem>>, %arg8: memref<162x512xf32, #tpu.memory_space<vmem>>, %arg9: memref<96x512xf32, #tpu.memory_space<vmem>>, %arg10: memref<328x512xf32, #tpu.memory_space<vmem>>, %arg11: memref<128x512xf32, #tpu.memory_space<vmem>>, %arg12: memref<1x512xf32, #tpu.memory_space<vmem>>, %arg13: memref<128x1xf32, #tpu.memory_space<vmem>>, %arg14: memref<1x1xf32, #tpu.memory_space<vmem>>, %arg15: memref<2x1xf32, #tpu.memory_space<vmem>>, %arg16: memref<2x512xf32, #tpu.memory_space<vmem>>) attributes {dimension_semantics = [#tpu.dimension_semantics<arbitrary>], iteration_bounds = array<i64: 1>, scalar_prefetch = 0 : i64, scratch_operands = 1 : i64, tpu.core_type = #tpu.core_type<tc>, window_params = [{pipeline_mode = #tpu.pipeline_mode<synchronous>, transform_indices = @transform_0, window_bounds = array<i64: 2, 96>}, {pipeline_mode = #tpu.pipeline_mode<synchronous>, transform_indices = @transform_1, window_bounds = array<i64: 2, 162>}, {pipeline_mode = #tpu.pipeline_mode<synchronous>, transform_indices = @transform_2, window_bounds = array<i64: 2, 328>}, {pipeline_mode = #tpu.pipeline_mode<synchronous>, transform_indices = @transform_3, window_bounds = array<i64: 96, 48>}, {pipeline_mode = #tpu.pipeline_mode<synchronous>, transform_indices = @transform_4, window_bounds = array<i64: 1, 48>}, {pipeline_mode = #tpu.pipeline_mode<synchronous>, transform_indices = @transform_5, window_bounds = array<i64: 48, 96>}, {pipeline_mode = #tpu.pipeline_mode<synchronous>, transform_indices = @transform_6, window_bounds = array<i64: 1, 96>}, {pipeline_mode = #tpu.pipeline_mode<synchronous>, transform_indices = @transform_7, window_bounds = array<i64: 162, 512>}, {pipeline_mode = #tpu.pipeline_mode<synchronous>, transform_indices = @transform_8, window_bounds = array<i64: 96, 512>}, {pipeline_mode = #tpu.pipeline_mode<synchronous>, transform_indices = @transform_9, window_bounds = array<i64: 328, 512>}, {pipeline_mode = #tpu.pipeline_mode<synchronous>, transform_indices = @transform_10, window_bounds = array<i64: 128, 512>}, {pipeline_mode = #tpu.pipeline_mode<synchronous>, transform_indices = @transform_11, window_bounds = array<i64: 1, 512>}, {pipeline_mode = #tpu.pipeline_mode<synchronous>, transform_indices = @transform_12, window_bounds = array<i64: 128, 1>}, {pipeline_mode = #tpu.pipeline_mode<synchronous>, transform_indices = @transform_13, window_bounds = array<i64: 1, 1>}, {pipeline_mode = #tpu.pipeline_mode<synchronous>, transform_indices = @transform_14, window_bounds = array<i64: 2, 1>}]} {
    %c0 = arith.constant 0 : index
    %c0_0 = arith.constant 0 : index
    %0 = vector.load %arg1[%c0, %c0_0] : memref<2x96xf32, #tpu.memory_space<vmem>>, vector<2x96xf32>
    %c0_1 = arith.constant 0 : index
    %c0_2 = arith.constant 0 : index
    %1 = vector.load %arg4[%c0_1, %c0_2] : memref<96x48xf32, #tpu.memory_space<vmem>>, vector<96x48xf32>
    %cst = arith.constant dense<0.000000e+00> : vector<2x48xf32>
    %2 = tpu.matmul %0, %1, %cst {dimension_numbers = #tpu.dot_dimension_numbers<[1], [0], [0], [1], [0, 0, 1, 1], [], []>} : vector<2x96xf32>, vector<96x48xf32>, vector<2x48xf32> -> vector<2x48xf32>
    %c0_3 = arith.constant 0 : index
    %c0_4 = arith.constant 0 : index
    %3 = vector.load %arg5[%c0_3, %c0_4] : memref<1x48xf32, #tpu.memory_space<vmem>>, vector<1x48xf32>
    %4 = vector.broadcast %3 : vector<1x48xf32> to vector<2x48xf32>
    %5 = arith.addf %2, %4 : vector<2x48xf32>
    %cst_5 = arith.constant 0.000000e+00 : f32
    %6 = vector.broadcast %cst_5 : f32 to vector<2x48xf32>
    %7 = arith.maximumf %5, %6 : vector<2x48xf32>
    %c0_6 = arith.constant 0 : index
    %c0_7 = arith.constant 0 : index
    %8 = vector.load %arg6[%c0_6, %c0_7] : memref<48x96xf32, #tpu.memory_space<vmem>>, vector<48x96xf32>
    %cst_8 = arith.constant dense<0.000000e+00> : vector<2x96xf32>
    %9 = tpu.matmul %7, %8, %cst_8 {dimension_numbers = #tpu.dot_dimension_numbers<[1], [0], [0], [1], [0, 0, 1, 1], [], []>} : vector<2x48xf32>, vector<48x96xf32>, vector<2x96xf32> -> vector<2x96xf32>
    %c0_9 = arith.constant 0 : index
    %c0_10 = arith.constant 0 : index
    %10 = vector.load %arg7[%c0_9, %c0_10] : memref<1x96xf32, #tpu.memory_space<vmem>>, vector<1x96xf32>
    %11 = vector.broadcast %10 : vector<1x96xf32> to vector<2x96xf32>
    %12 = arith.addf %9, %11 : vector<2x96xf32>
    %c0_11 = arith.constant 0 : index
    %c0_12 = arith.constant 0 : index
    %13 = vector.load %arg2[%c0_11, %c0_12] : memref<2x162xf32, #tpu.memory_space<vmem>>, vector<2x162xf32>
    %c0_13 = arith.constant 0 : index
    %c0_14 = arith.constant 0 : index
    %14 = vector.load %arg8[%c0_13, %c0_14] : memref<162x512xf32, #tpu.memory_space<vmem>>, vector<162x512xf32>
    %cst_15 = arith.constant dense<0.000000e+00> : vector<2x512xf32>
    %15 = tpu.matmul %13, %14, %cst_15 {dimension_numbers = #tpu.dot_dimension_numbers<[1], [0], [0], [1], [0, 0, 1, 1], [], []>} : vector<2x162xf32>, vector<162x512xf32>, vector<2x512xf32> -> vector<2x512xf32>
    %c0_16 = arith.constant 0 : index
    %c0_17 = arith.constant 0 : index
    %16 = vector.load %arg9[%c0_16, %c0_17] : memref<96x512xf32, #tpu.memory_space<vmem>>, vector<96x512xf32>
    %cst_18 = arith.constant dense<0.000000e+00> : vector<2x512xf32>
    %17 = tpu.matmul %12, %16, %cst_18 {dimension_numbers = #tpu.dot_dimension_numbers<[1], [0], [0], [1], [0, 0, 1, 1], [], []>} : vector<2x96xf32>, vector<96x512xf32>, vector<2x512xf32> -> vector<2x512xf32>
    %18 = arith.addf %15, %17 : vector<2x512xf32>
    %c0_19 = arith.constant 0 : index
    %c0_20 = arith.constant 0 : index
    %19 = vector.load %arg3[%c0_19, %c0_20] : memref<2x328xf32, #tpu.memory_space<vmem>>, vector<2x328xf32>
    %c0_21 = arith.constant 0 : index
    %c0_22 = arith.constant 0 : index
    %20 = vector.load %arg10[%c0_21, %c0_22] : memref<328x512xf32, #tpu.memory_space<vmem>>, vector<328x512xf32>
    %cst_23 = arith.constant dense<0.000000e+00> : vector<2x512xf32>
    %21 = tpu.matmul %19, %20, %cst_23 {dimension_numbers = #tpu.dot_dimension_numbers<[1], [0], [0], [1], [0, 0, 1, 1], [], []>} : vector<2x328xf32>, vector<328x512xf32>, vector<2x512xf32> -> vector<2x512xf32>
    %22 = arith.addf %18, %21 : vector<2x512xf32>
    %c0_24 = arith.constant 0 : index
    %c0_25 = arith.constant 0 : index
    %23 = vector.load %arg12[%c0_24, %c0_25] : memref<1x512xf32, #tpu.memory_space<vmem>>, vector<1x512xf32>
    %24 = vector.broadcast %23 : vector<1x512xf32> to vector<2x512xf32>
    %25 = arith.addf %22, %24 : vector<2x512xf32>
    %c0_26 = arith.constant 0 : index
    %c0_27 = arith.constant 0 : index
    %26 = vector.load %arg16[%c0_26, %c0_27] : memref<2x512xf32, #tpu.memory_space<vmem>>, vector<2x512xf32>
    tpu.vector_store %arg16[%c0_26, %c0_27], %25 {strides = array<i32>} : memref<2x512xf32, #tpu.memory_space<vmem>>, vector<2x512xf32>,
    %c0_28 = arith.constant 0 : index
    %c0_29 = arith.constant 0 : index
    %27 = vector.load %arg11[%c0_28, %c0_29] : memref<128x512xf32, #tpu.memory_space<vmem>>, vector<128x512xf32>
    %c0_30 = arith.constant 0 : index
    %c0_31 = arith.constant 0 : index
    %28 = vector.load %arg13[%c0_30, %c0_31] : memref<128x1xf32, #tpu.memory_space<vmem>>, vector<128x1xf32>
    %c0_32 = arith.constant 0 : index
    %c0_33 = arith.constant 0 : index
    %29 = vector.load %arg14[%c0_32, %c0_33] : memref<1x1xf32, #tpu.memory_space<vmem>>, vector<1x1xf32>
    %cst_34 = arith.constant 0.000000e+00 : f32
    %30 = vector.broadcast %cst_34 : f32 to vector<1x128xf32>
    %cst_35 = arith.constant 0.000000e+00 : f32
    %31 = vector.broadcast %cst_35 : f32 to vector<1x128xf32>
    %c0_36 = arith.constant 0 : index
    %c0_37 = arith.constant 0 : index
    %32 = vector.load %arg16[%c0_36, %c0_37] : memref<2x512xf32, #tpu.memory_space<vmem>>, vector<1x512xf32>
    %cst_38 = arith.constant dense<0.000000e+00> : vector<1x512xf32>
    %33 = tpu.matmul %30, %27, %cst_38 {dimension_numbers = #tpu.dot_dimension_numbers<[1], [0], [0], [1], [0, 0, 1, 1], [], []>} : vector<1x128xf32>, vector<128x512xf32>, vector<1x512xf32> -> vector<1x512xf32>
    %34 = arith.addf %32, %33 : vector<1x512xf32>
    %35 = vector.extract_strided_slice %34 {offsets = [0, 0], sizes = [1, 128], strides = [1, 1]} : vector<1x512xf32> to vector<1x128xf32>
    %36 = arith.negf %35 : vector<1x128xf32>
    %37 = math.exp %36 : vector<1x128xf32>
    %cst_39 = arith.constant 1.000000e+00 : f32
    %38 = vector.broadcast %cst_39 : f32 to vector<1x128xf32>
    %39 = arith.addf %38, %37 : vector<1x128xf32>
    %40 = arith.divf %38, %39 : vector<1x128xf32>
    %41 = vector.extract_strided_slice %34 {offsets = [0, 128], sizes = [1, 128], strides = [1, 1]} : vector<1x512xf32> to vector<1x128xf32>
    %42 = arith.negf %41 : vector<1x128xf32>
    %43 = math.exp %42 : vector<1x128xf32>
    %cst_40 = arith.constant 1.000000e+00 : f32
    %44 = vector.broadcast %cst_40 : f32 to vector<1x128xf32>
    %45 = arith.addf %44, %43 : vector<1x128xf32>
    %46 = arith.divf %44, %45 : vector<1x128xf32>
    %47 = vector.extract_strided_slice %34 {offsets = [0, 256], sizes = [1, 128], strides = [1, 1]} : vector<1x512xf32> to vector<1x128xf32>
    %48 = math.tanh %47 : vector<1x128xf32>
    %49 = vector.extract_strided_slice %34 {offsets = [0, 384], sizes = [1, 128], strides = [1, 1]} : vector<1x512xf32> to vector<1x128xf32>
    %50 = arith.negf %49 : vector<1x128xf32>
    %51 = math.exp %50 : vector<1x128xf32>
    %cst_41 = arith.constant 1.000000e+00 : f32
    %52 = vector.broadcast %cst_41 : f32 to vector<1x128xf32>
    %53 = arith.addf %52, %51 : vector<1x128xf32>
    %54 = arith.divf %52, %53 : vector<1x128xf32>
    %55 = arith.mulf %46, %31 : vector<1x128xf32>
    %56 = arith.mulf %40, %48 : vector<1x128xf32>
    %57 = arith.addf %55, %56 : vector<1x128xf32>
    %58 = math.tanh %57 : vector<1x128xf32>
    %59 = arith.mulf %54, %58 : vector<1x128xf32>
    %cst_42 = arith.constant dense<0.000000e+00> : vector<1x1xf32>
    %60 = tpu.matmul %59, %28, %cst_42 {dimension_numbers = #tpu.dot_dimension_numbers<[1], [0], [0], [1], [0, 0, 1, 1], [], []>} : vector<1x128xf32>, vector<128x1xf32>, vector<1x1xf32> -> vector<1x1xf32>
    %61 = arith.addf %60, %29 : vector<1x1xf32>
    %62 = arith.negf %61 : vector<1x1xf32>
    %63 = math.exp %62 : vector<1x1xf32>
    %cst_43 = arith.constant 1.000000e+00 : f32
    %64 = vector.broadcast %cst_43 : f32 to vector<1x1xf32>
    %65 = arith.addf %64, %63 : vector<1x1xf32>
    %66 = arith.divf %64, %65 : vector<1x1xf32>
    %c0_44 = arith.constant 0 : index
    %c0_45 = arith.constant 0 : index
    %67 = vector.load %arg15[%c0_44, %c0_45] : memref<2x1xf32, #tpu.memory_space<vmem>>, vector<1x1xf32>
    tpu.vector_store %arg15[%c0_44, %c0_45], %66 {strides = array<i32>} : memref<2x1xf32, #tpu.memory_space<vmem>>, vector<1x1xf32>,
    %c1 = arith.constant 1 : index
    %c0_46 = arith.constant 0 : index
    %68 = vector.load %arg16[%c1, %c0_46] : memref<2x512xf32, #tpu.memory_space<vmem>>, vector<1x512xf32>
    %cst_47 = arith.constant dense<0.000000e+00> : vector<1x512xf32>
    %69 = tpu.matmul %59, %27, %cst_47 {dimension_numbers = #tpu.dot_dimension_numbers<[1], [0], [0], [1], [0, 0, 1, 1], [], []>} : vector<1x128xf32>, vector<128x512xf32>, vector<1x512xf32> -> vector<1x512xf32>
    %70 = arith.addf %68, %69 : vector<1x512xf32>
    %71 = vector.extract_strided_slice %70 {offsets = [0, 0], sizes = [1, 128], strides = [1, 1]} : vector<1x512xf32> to vector<1x128xf32>
    %72 = arith.negf %71 : vector<1x128xf32>
    %73 = math.exp %72 : vector<1x128xf32>
    %cst_48 = arith.constant 1.000000e+00 : f32
    %74 = vector.broadcast %cst_48 : f32 to vector<1x128xf32>
    %75 = arith.addf %74, %73 : vector<1x128xf32>
    %76 = arith.divf %74, %75 : vector<1x128xf32>
    %77 = vector.extract_strided_slice %70 {offsets = [0, 128], sizes = [1, 128], strides = [1, 1]} : vector<1x512xf32> to vector<1x128xf32>
    %78 = arith.negf %77 : vector<1x128xf32>
    %79 = math.exp %78 : vector<1x128xf32>
    %cst_49 = arith.constant 1.000000e+00 : f32
    %80 = vector.broadcast %cst_49 : f32 to vector<1x128xf32>
    %81 = arith.addf %80, %79 : vector<1x128xf32>
    %82 = arith.divf %80, %81 : vector<1x128xf32>
    %83 = vector.extract_strided_slice %70 {offsets = [0, 256], sizes = [1, 128], strides = [1, 1]} : vector<1x512xf32> to vector<1x128xf32>
    %84 = math.tanh %83 : vector<1x128xf32>
    %85 = vector.extract_strided_slice %70 {offsets = [0, 384], sizes = [1, 128], strides = [1, 1]} : vector<1x512xf32> to vector<1x128xf32>
    %86 = arith.negf %85 : vector<1x128xf32>
    %87 = math.exp %86 : vector<1x128xf32>
    %cst_50 = arith.constant 1.000000e+00 : f32
    %88 = vector.broadcast %cst_50 : f32 to vector<1x128xf32>
    %89 = arith.addf %88, %87 : vector<1x128xf32>
    %90 = arith.divf %88, %89 : vector<1x128xf32>
    %91 = arith.mulf %82, %57 : vector<1x128xf32>
    %92 = arith.mulf %76, %84 : vector<1x128xf32>
    %93 = arith.addf %91, %92 : vector<1x128xf32>
    %94 = math.tanh %93 : vector<1x128xf32>
    %95 = arith.mulf %90, %94 : vector<1x128xf32>
    %cst_51 = arith.constant dense<0.000000e+00> : vector<1x1xf32>
    %96 = tpu.matmul %95, %28, %cst_51 {dimension_numbers = #tpu.dot_dimension_numbers<[1], [0], [0], [1], [0, 0, 1, 1], [], []>} : vector<1x128xf32>, vector<128x1xf32>, vector<1x1xf32> -> vector<1x1xf32>
    %97 = arith.addf %96, %29 : vector<1x1xf32>
    %98 = arith.negf %97 : vector<1x1xf32>
    %99 = math.exp %98 : vector<1x1xf32>
    %cst_52 = arith.constant 1.000000e+00 : f32
    %100 = vector.broadcast %cst_52 : f32 to vector<1x1xf32>
    %101 = arith.addf %100, %99 : vector<1x1xf32>
    %102 = arith.divf %100, %101 : vector<1x1xf32>
    %c1_53 = arith.constant 1 : index
    %c0_54 = arith.constant 0 : index
    %103 = vector.load %arg15[%c1_53, %c0_54] : memref<2x1xf32, #tpu.memory_space<vmem>>, vector<1x1xf32>
    tpu.vector_store %arg15[%c1_53, %c0_54], %102 {strides = array<i32>} : memref<2x1xf32, #tpu.memory_space<vmem>>, vector<1x1xf32>,
    return
  }
  func.func @transform_0(%arg0: i32) -> (i32, i32) {
    %c0_i32 = arith.constant 0 : i32
    %c0_i32_0 = arith.constant 0 : i32
    %c0_i32_1 = arith.constant 0 : i32
    return %c0_i32, %c0_i32_0 : i32, i32
  }
  func.func @transform_1(%arg0: i32) -> (i32, i32) {
    %c0_i32 = arith.constant 0 : i32
    %c0_i32_0 = arith.constant 0 : i32
    %c0_i32_1 = arith.constant 0 : i32
    return %c0_i32, %c0_i32_0 : i32, i32
  }
  func.func @transform_2(%arg0: i32) -> (i32, i32) {
    %c0_i32 = arith.constant 0 : i32
    %c0_i32_0 = arith.constant 0 : i32
    %c0_i32_1 = arith.constant 0 : i32
    return %c0_i32, %c0_i32_0 : i32, i32
  }
  func.func @transform_3(%arg0: i32) -> (i32, i32) {
    %c0_i32 = arith.constant 0 : i32
    %c0_i32_0 = arith.constant 0 : i32
    %c0_i32_1 = arith.constant 0 : i32
    return %c0_i32, %c0_i32_0 : i32, i32
  }
  func.func @transform_4(%arg0: i32) -> (i32, i32) {
    %c0_i32 = arith.constant 0 : i32
    %c0_i32_0 = arith.constant 0 : i32
    %c0_i32_1 = arith.constant 0 : i32
    return %c0_i32, %c0_i32_0 : i32, i32
  }
  func.func @transform_5(%arg0: i32) -> (i32, i32) {
    %c0_i32 = arith.constant 0 : i32
    %c0_i32_0 = arith.constant 0 : i32
    %c0_i32_1 = arith.constant 0 : i32
    return %c0_i32, %c0_i32_0 : i32, i32
  }
  func.func @transform_6(%arg0: i32) -> (i32, i32) {
    %c0_i32 = arith.constant 0 : i32
    %c0_i32_0 = arith.constant 0 : i32
    %c0_i32_1 = arith.constant 0 : i32
    return %c0_i32, %c0_i32_0 : i32, i32
  }
  func.func @transform_7(%arg0: i32) -> (i32, i32) {
    %c0_i32 = arith.constant 0 : i32
    %c0_i32_0 = arith.constant 0 : i32
    %c0_i32_1 = arith.constant 0 : i32
    return %c0_i32, %c0_i32_0 : i32, i32
  }
  func.func @transform_8(%arg0: i32) -> (i32, i32) {
    %c0_i32 = arith.constant 0 : i32
    %c0_i32_0 = arith.constant 0 : i32
    %c0_i32_1 = arith.constant 0 : i32
    return %c0_i32, %c0_i32_0 : i32, i32
  }
  func.func @transform_9(%arg0: i32) -> (i32, i32) {
    %c0_i32 = arith.constant 0 : i32
    %c0_i32_0 = arith.constant 0 : i32
    %c0_i32_1 = arith.constant 0 : i32
    return %c0_i32, %c0_i32_0 : i32, i32
  }
  func.func @transform_10(%arg0: i32) -> (i32, i32) {
    %c0_i32 = arith.constant 0 : i32
    %c0_i32_0 = arith.constant 0 : i32
    %c0_i32_1 = arith.constant 0 : i32
    return %c0_i32, %c0_i32_0 : i32, i32
  }
  func.func @transform_11(%arg0: i32) -> (i32, i32) {
    %c0_i32 = arith.constant 0 : i32
    %c0_i32_0 = arith.constant 0 : i32
    %c0_i32_1 = arith.constant 0 : i32
    return %c0_i32, %c0_i32_0 : i32, i32
  }
  func.func @transform_12(%arg0: i32) -> (i32, i32) {
    %c0_i32 = arith.constant 0 : i32
    %c0_i32_0 = arith.constant 0 : i32
    %c0_i32_1 = arith.constant 0 : i32
    return %c0_i32, %c0_i32_0 : i32, i32
  }
  func.func @transform_13(%arg0: i32) -> (i32, i32) {
    %c0_i32 = arith.constant 0 : i32
    %c0_i32_0 = arith.constant 0 : i32
    %c0_i32_1 = arith.constant 0 : i32
    return %c0_i32, %c0_i32_0 : i32, i32
  }
  func.func @transform_14(%arg0: i32) -> (i32, i32) {
    %c0_i32 = arith.constant 0 : i32
    %c0_i32_0 = arith.constant 0 : i32
    %c0_i32_1 = arith.constant 0 : i32
    return %c0_i32, %c0_i32_0 : i32, i32
  }
}

</mosaic_0001>

<llo_original>
// kernel: agent_forward.2
$region0: #{agent_forward.2}
  #allocation0 [shape = 'u32[]', space=smem, size = 0x4, offset = 0x4, fixed_abs, tag = 'smem constant byte address 0x4 - core index']
  #allocation1 [shape = 'u32[144,128]{1,0:T(1,128)}', space=vmem, size = 0x12000, scoped, tag = 'internal scratch']
  %s0 = inlined_call_operand.smem [shape: u32[30], index: -1, kind: input, shape index: {}]
  %s1 = sld [smem:[%s0]]
  %s2 = scalar_lea.smem %s0, 1
  %s3 = sld [smem:[%s2]]
  %s4 = scalar_lea.smem %s0, 2
  %s5 = sld [smem:[%s4]]
  %s6 = scalar_lea.smem %s0, 3
  %s7 = sld [smem:[%s6]]
  %s8 = scalar_lea.smem %s0, 4
  %s9 = sld [smem:[%s8]]
  %s10 = scalar_lea.smem %s0, 5
  %s11 = sld [smem:[%s10]]
  %s12 = scalar_lea.smem %s0, 6
  %s13 = sld [smem:[%s12]]
  %s14 = scalar_lea.smem %s0, 7
  %s15 = sld [smem:[%s14]]
  %s16 = scalar_lea.smem %s0, 8
  %s17 = sld [smem:[%s16]]
  %s18 = scalar_lea.smem %s0, 9
  %s19 = sld [smem:[%s18]]
  %s20 = scalar_lea.smem %s0, 10
  %s21 = sld [smem:[%s20]]
  %s22 = scalar_lea.smem %s0, 11
  %s23 = sld [smem:[%s22]]
  %s24 = scalar_lea.smem %s0, 12
  %s25 = sld [smem:[%s24]]
  %s26 = scalar_lea.smem %s0, 13
  %s27 = sld [smem:[%s26]]
  %s28 = scalar_lea.smem %s0, 14
  %s29 = sld [smem:[%s28]]
  %s30 = scalar_lea.smem %s0, 15
  %s31 = sld [smem:[%s30]]
  %s32 = scalar_lea.smem %s0, 16
  %s33 = sld [smem:[%s32]]
  %s34 = scalar_lea.smem %s0, 17
  %s35 = sld [smem:[%s34]]
  %s36 = scalar_lea.smem %s0, 18
  %s37 = sld [smem:[%s36]]
  %s38 = scalar_lea.smem %s0, 19
  %s39 = sld [smem:[%s38]]
  %s40 = scalar_lea.smem %s0, 20
  %s41 = sld [smem:[%s40]]
  %s42 = scalar_lea.smem %s0, 21
  %s43 = sld [smem:[%s42]]
  %s44 = scalar_lea.smem %s0, 22
  %s45 = sld [smem:[%s44]]
  %s46 = scalar_lea.smem %s0, 23
  %s47 = sld [smem:[%s46]]
  %s48 = scalar_lea.smem %s0, 24
  %s49 = sld [smem:[%s48]]
  %s50 = scalar_lea.smem %s0, 25
  %s51 = sld [smem:[%s50]]
  %s52 = scalar_lea.smem %s0, 26
  %s53 = sld [smem:[%s52]]
  %s54 = scalar_lea.smem %s0, 27
  %s55 = sld [smem:[%s54]]
  %s56 = scalar_lea.smem %s0, 28
  %s57 = sld [smem:[%s56]]
  %s58 = scalar_lea.smem %s0, 29
  %s59 = sld [smem:[%s58]]
  %60 = xla_tuple %s51, %s53, %s55, %s57, %s59
  %s61 = sld [smem:[#allocation0]]
  $region182: #{agent_forward.2} parent=0
    _
  %s63 = ssub.s32 1, %s61
  %s64 = scalar_select 0, %s63, %s61
  $region1: #{agent_forward.2} parent=0
    #allocation2 [shape = 'u8[512]{0}', space=vmem, size = 0x400, scoped, tag = 'input window, operand 6, single buffered']
    #allocation3 [shape = 's32[1]{0}', space=sflag, size = 0x4, scoped, tag = 'scoped memory for agent_forward.2']
    #allocation4 [shape = 'u8[512]{0}', space=vmem, size = 0x400, scoped, tag = 'input window, operand 8, single buffered']
    #allocation5 [shape = 's32[1]{0}', space=sflag, size = 0x4, scoped, tag = 'scoped memory for agent_forward.2']
    #allocation6 [shape = 'u8[512]{0}', space=vmem, size = 0x400, scoped, tag = 'input window, operand 10, single buffered']
    #allocation7 [shape = 'u8[512]{0}', space=vmem, size = 0x400, scoped, tag = 'input window, operand 12, single buffered']
    #allocation8 [shape = 's32[1]{0}', space=sflag, size = 0x4, scoped, tag = 'scoped memory for agent_forward.2']
    #allocation9 [shape = 'u8[512]{0}', space=vmem, size = 0x400, scoped, tag = 'input window, operand 14, single buffered']
    #allocation10 [shape = 'u8[512]{0}', space=vmem, size = 0x400, scoped, tag = 'input window, operand 16, single buffered']
    #allocation11 [shape = 's32[1]{0}', space=sflag, size = 0x4, scoped, tag = 'scoped memory for agent_forward.2']
    #allocation12 [shape = 'u8[512]{0}', space=vmem, size = 0x400, scoped, tag = 'input window, operand 18, single buffered']
    #allocation13 [shape = 'u8[512]{0}', space=vmem, size = 0x400, scoped, tag = 'input window, operand 20, single buffered']
    #allocation14 [shape = 's32[1]{0}', space=sflag, size = 0x4, scoped, tag = 'scoped memory for agent_forward.2']
    #allocation15 [shape = 'u8[512]{0}', space=vmem, size = 0x400, scoped, tag = 'input window, operand 22, single buffered']
    #allocation16 [shape = 'u8[512]{0}', space=vmem, size = 0x400, scoped, tag = 'input window, operand 24, single buffered']
    #allocation17 [shape = 's32[1]{0}', space=sflag, size = 0x4, scoped, tag = 'scoped memory for agent_forward.2']
    %65 = vsyncpa [#allocation3], 0
    %66 = vsyncpa [#allocation5], 0
    %67 = vsyncpa [#allocation8], 0
    %68 = vsyncpa [#allocation11], 0
    %69 = vsyncpa [#allocation14], 0
    %70 = vsyncpa [#allocation17], 0
    // Predicated region
    $region2: #{agent_forward.2} parent=1 // pred_check
      _
    $region3: #{agent_forward.2} parent=1 // pred_check_branch
      %72 = sbr.rel (0) target = $region5
    $region4: #{agent_forward.2} parent=1 // pred_region
      _
    $region5: #{agent_forward.2} parent=1 // pred_fallthru
      _
    // Predicated region
    $region6: #{agent_forward.2} parent=1 // pred_check
      _
    $region7: #{agent_forward.2} parent=1 // pred_check_branch
      %74 = sbr.rel (0) target = $region9
    $region8: #{agent_forward.2} parent=1 // pred_region
      _
    $region9: #{agent_forward.2} parent=1 // pred_fallthru
      _
    // Predicated region
    $region10: #{agent_forward.2} parent=1 // pred_check
      _
    $region11: #{agent_forward.2} parent=1 // pred_check_branch
      %76 = sbr.rel (0) target = $region13
    $region12: #{agent_forward.2} parent=1 // pred_region
      _
    $region13: #{agent_forward.2} parent=1 // pred_fallthru
      _
    // Predicated region
    $region14: #{agent_forward.2} parent=1 // pred_check
      _
    $region15: #{agent_forward.2} parent=1 // pred_check_branch
      %78 = sbr.rel (0) target = $region17
    $region16: #{agent_forward.2} parent=1 // pred_region
      _
    $region17: #{agent_forward.2} parent=1 // pred_fallthru
      _
    // Predicated region
    $region18: #{agent_forward.2} parent=1 // pred_check
      _
    $region19: #{agent_forward.2} parent=1 // pred_check_branch
      %80 = sbr.rel (0) target = $region21
    $region20: #{agent_forward.2} parent=1 // pred_region
      _
    $region21: #{agent_forward.2} parent=1 // pred_fallthru
      _
    // Predicated region
    $region22: #{agent_forward.2} parent=1 // pred_check
      _
    $region23: #{agent_forward.2} parent=1 // pred_check_branch
      %82 = sbr.rel (0) target = $region25
    $region24: #{agent_forward.2} parent=1 // pred_region
      _
    $region25: #{agent_forward.2} parent=1 // pred_fallthru
      _
    // Predicated region
    $region26: #{agent_forward.2} parent=1 // pred_check
      _
    $region27: #{agent_forward.2} parent=1 // pred_check_branch
      %84 = sbr.rel (0) target = $region29
    $region28: #{agent_forward.2} parent=1 // pred_region
      %s86 = ssub.s32 16, 16
      %87 = vsyncadd [#allocation3], %s86
      %s89 = sshll.u32 [#allocation2], 4
      %s90 = int_to_ptr.vmem [resolvable:$true] %s89
      %92 = dma.hbm_to_vmem [thread:$0]  %s13, 16, %s90, [#allocation3]
    $region29: #{agent_forward.2} parent=1 // pred_fallthru
      _
    // Predicated region
    $region30: #{agent_forward.2} parent=1 // pred_check
      _
    $region31: #{agent_forward.2} parent=1 // pred_check_branch
      %94 = sbr.rel (0) target = $region33
    $region32: #{agent_forward.2} parent=1 // pred_region
      _
    $region33: #{agent_forward.2} parent=1 // pred_fallthru
      _
    // Predicated region
    $region34: #{agent_forward.2} parent=1 // pred_check
      _
    $region35: #{agent_forward.2} parent=1 // pred_check_branch
      %96 = sbr.rel (0) target = $region37
    $region36: #{agent_forward.2} parent=1 // pred_region
      %s98 = ssub.s32 16, 16
      %99 = vsyncadd [#allocation5], %s98
      %s101 = sshll.u32 [#allocation4], 4
      %s102 = int_to_ptr.vmem [resolvable:$true] %s101
      %104 = dma.hbm_to_vmem [thread:$0]  %s17, 16, %s102, [#allocation5]
    $region37: #{agent_forward.2} parent=1 // pred_fallthru
      _
    // Predicated region
    $region38: #{agent_forward.2} parent=1 // pred_check
      _
    $region39: #{agent_forward.2} parent=1 // pred_check_branch
      %106 = sbr.rel (0) target = $region41
    $region40: #{agent_forward.2} parent=1 // pred_region
      _
    $region41: #{agent_forward.2} parent=1 // pred_fallthru
      _
    // Predicated region
    $region42: #{agent_forward.2} parent=1 // pred_check
      _
    $region43: #{agent_forward.2} parent=1 // pred_check_branch
      %108 = sbr.rel (0) target = $region45
    $region44: #{agent_forward.2} parent=1 // pred_region
      %s110 = ssub.s32 16, 16
      %111 = vsyncadd [#allocation5], %s110
      %s113 = sshll.u32 [#allocation6], 4
      %s114 = int_to_ptr.vmem [resolvable:$true] %s113
      %116 = dma.hbm_to_vmem [thread:$0]  %s21, 16, %s114, [#allocation5]
    $region45: #{agent_forward.2} parent=1 // pred_fallthru
      _
    // Predicated region
    $region46: #{agent_forward.2} parent=1 // pred_check
      _
    $region47: #{agent_forward.2} parent=1 // pred_check_branch
      %118 = sbr.rel (0) target = $region49
    $region48: #{agent_forward.2} parent=1 // pred_region
      _
    $region49: #{agent_forward.2} parent=1 // pred_fallthru
      _
    // Predicated region
    $region50: #{agent_forward.2} parent=1 // pred_check
      _
    $region51: #{agent_forward.2} parent=1 // pred_check_branch
      %120 = sbr.rel (0) target = $region53
    $region52: #{agent_forward.2} parent=1 // pred_region
      %s122 = ssub.s32 16, 16
      %123 = vsyncadd [#allocation8], %s122
      %s125 = sshll.u32 [#allocation7], 4
      %s126 = int_to_ptr.vmem [resolvable:$true] %s125
      %128 = dma.hbm_to_vmem [thread:$0]  %s25, 16, %s126, [#allocation8]
    $region53: #{agent_forward.2} parent=1 // pred_fallthru
      _
    // Predicated region
    $region54: #{agent_forward.2} parent=1 // pred_check
      _
    $region55: #{agent_forward.2} parent=1 // pred_check_branch
      %130 = sbr.rel (0) target = $region57
    $region56: #{agent_forward.2} parent=1 // pred_region
      _
    $region57: #{agent_forward.2} parent=1 // pred_fallthru
      _
    // Predicated region
    $region58: #{agent_forward.2} parent=1 // pred_check
      _
    $region59: #{agent_forward.2} parent=1 // pred_check_branch
      %132 = sbr.rel (0) target = $region61
    $region60: #{agent_forward.2} parent=1 // pred_region
      %s134 = ssub.s32 16, 16
      %135 = vsyncadd [#allocation8], %s134
      %s137 = sshll.u32 [#allocation9], 4
      %s138 = int_to_ptr.vmem [resolvable:$true] %s137
      %140 = dma.hbm_to_vmem [thread:$0]  %s29, 16, %s138, [#allocation8]
    $region61: #{agent_forward.2} parent=1 // pred_fallthru
      _
    // Predicated region
    $region62: #{agent_forward.2} parent=1 // pred_check
      _
    $region63: #{agent_forward.2} parent=1 // pred_check_branch
      %142 = sbr.rel (0) target = $region65
    $region64: #{agent_forward.2} parent=1 // pred_region
      _
    $region65: #{agent_forward.2} parent=1 // pred_fallthru
      _
    // Predicated region
    $region66: #{agent_forward.2} parent=1 // pred_check
      _
    $region67: #{agent_forward.2} parent=1 // pred_check_branch
      %144 = sbr.rel (0) target = $region69
    $region68: #{agent_forward.2} parent=1 // pred_region
      %s146 = ssub.s32 16, 16
      %147 = vsyncadd [#allocation11], %s146
      %s149 = sshll.u32 [#allocation10], 4
      %s150 = int_to_ptr.vmem [resolvable:$true] %s149
      %152 = dma.hbm_to_vmem [thread:$0]  %s33, 16, %s150, [#allocation11]
    $region69: #{agent_forward.2} parent=1 // pred_fallthru
      _
    // Predicated region
    $region70: #{agent_forward.2} parent=1 // pred_check
      _
    $region71: #{agent_forward.2} parent=1 // pred_check_branch
      %154 = sbr.rel (0) target = $region73
    $region72: #{agent_forward.2} parent=1 // pred_region
      _
    $region73: #{agent_forward.2} parent=1 // pred_fallthru
      _
    // Predicated region
    $region74: #{agent_forward.2} parent=1 // pred_check
      _
    $region75: #{agent_forward.2} parent=1 // pred_check_branch
      %156 = sbr.rel (0) target = $region77
    $region76: #{agent_forward.2} parent=1 // pred_region
      %s158 = ssub.s32 16, 16
      %159 = vsyncadd [#allocation11], %s158
      %s161 = sshll.u32 [#allocation12], 4
      %s162 = int_to_ptr.vmem [resolvable:$true] %s161
      %164 = dma.hbm_to_vmem [thread:$0]  %s37, 16, %s162, [#allocation11]
    $region77: #{agent_forward.2} parent=1 // pred_fallthru
      _
    // Predicated region
    $region78: #{agent_forward.2} parent=1 // pred_check
      _
    $region79: #{agent_forward.2} parent=1 // pred_check_branch
      %166 = sbr.rel (0) target = $region81
    $region80: #{agent_forward.2} parent=1 // pred_region
      _
    $region81: #{agent_forward.2} parent=1 // pred_fallthru
      _
    // Predicated region
    $region82: #{agent_forward.2} parent=1 // pred_check
      _
    $region83: #{agent_forward.2} parent=1 // pred_check_branch
      %168 = sbr.rel (0) target = $region85
    $region84: #{agent_forward.2} parent=1 // pred_region
      %s170 = ssub.s32 16, 16
      %171 = vsyncadd [#allocation14], %s170
      %s173 = sshll.u32 [#allocation13], 4
      %s174 = int_to_ptr.vmem [resolvable:$true] %s173
      %176 = dma.hbm_to_vmem [thread:$0]  %s41, 16, %s174, [#allocation14]
    $region85: #{agent_forward.2} parent=1 // pred_fallthru
      _
    // Predicated region
    $region86: #{agent_forward.2} parent=1 // pred_check
      _
    $region87: #{agent_forward.2} parent=1 // pred_check_branch
      %178 = sbr.rel (0) target = $region89
    $region88: #{agent_forward.2} parent=1 // pred_region
      _
    $region89: #{agent_forward.2} parent=1 // pred_fallthru
      _
    // Predicated region
    $region90: #{agent_forward.2} parent=1 // pred_check
      _
    $region91: #{agent_forward.2} parent=1 // pred_check_branch
      %180 = sbr.rel (0) target = $region93
    $region92: #{agent_forward.2} parent=1 // pred_region
      %s182 = ssub.s32 16, 16
      %183 = vsyncadd [#allocation14], %s182
      %s185 = sshll.u32 [#allocation15], 4
      %s186 = int_to_ptr.vmem [resolvable:$true] %s185
      %188 = dma.hbm_to_vmem [thread:$0]  %s45, 16, %s186, [#allocation14]
    $region93: #{agent_forward.2} parent=1 // pred_fallthru
      _
    // Predicated region
    $region94: #{agent_forward.2} parent=1 // pred_check
      _
    $region95: #{agent_forward.2} parent=1 // pred_check_branch
      %190 = sbr.rel (0) target = $region97
    $region96: #{agent_forward.2} parent=1 // pred_region
      _
    $region97: #{agent_forward.2} parent=1 // pred_fallthru
      _
    // Predicated region
    $region98: #{agent_forward.2} parent=1 // pred_check
      _
    $region99: #{agent_forward.2} parent=1 // pred_check_branch
      %192 = sbr.rel (0) target = $region101
    $region100: #{agent_forward.2} parent=1 // pred_region
      %s194 = ssub.s32 16, 16
      %195 = vsyncadd [#allocation17], %s194
      %s197 = sshll.u32 [#allocation16], 4
      %s198 = int_to_ptr.vmem [resolvable:$true] %s197
      %200 = dma.hbm_to_vmem [thread:$0]  %s49, 16, %s198, [#allocation17]
    $region101: #{agent_forward.2} parent=1 // pred_fallthru
      _
    // Predicated region
    $region102: #{agent_forward.2} parent=1 // pred_check
      _
    $region103: #{agent_forward.2} parent=1 // pred_check_branch
      %202 = sbr.rel (0) target = $region105
    $region104: #{agent_forward.2} parent=1 // pred_region
      %203 = dma.done [#allocation3], 16
    $region105: #{agent_forward.2} parent=1 // pred_fallthru
      _
    // Predicated region
    $region106: #{agent_forward.2} parent=1 // pred_check
      _
    $region107: #{agent_forward.2} parent=1 // pred_check_branch
      %205 = sbr.rel (0) target = $region109
    $region108: #{agent_forward.2} parent=1 // pred_region
      %206 = dma.done [#allocation5], 16
    $region109: #{agent_forward.2} parent=1 // pred_fallthru
      _
    // Predicated region
    $region110: #{agent_forward.2} parent=1 // pred_check
      _
    $region111: #{agent_forward.2} parent=1 // pred_check_branch
      %208 = sbr.rel (0) target = $region113
    $region112: #{agent_forward.2} parent=1 // pred_region
      %209 = dma.done [#allocation5], 16
    $region113: #{agent_forward.2} parent=1 // pred_fallthru
      _
    // Predicated region
    $region114: #{agent_forward.2} parent=1 // pred_check
      _
    $region115: #{agent_forward.2} parent=1 // pred_check_branch
      %211 = sbr.rel (0) target = $region117
    $region116: #{agent_forward.2} parent=1 // pred_region
      %212 = dma.done [#allocation8], 16
    $region117: #{agent_forward.2} parent=1 // pred_fallthru
      _
    // Predicated region
    $region118: #{agent_forward.2} parent=1 // pred_check
      _
    $region119: #{agent_forward.2} parent=1 // pred_check_branch
      %214 = sbr.rel (0) target = $region121
    $region120: #{agent_forward.2} parent=1 // pred_region
      %215 = dma.done [#allocation8], 16
    $region121: #{agent_forward.2} parent=1 // pred_fallthru
      _
    // Predicated region
    $region122: #{agent_forward.2} parent=1 // pred_check
      _
    $region123: #{agent_forward.2} parent=1 // pred_check_branch
      %217 = sbr.rel (0) target = $region125
    $region124: #{agent_forward.2} parent=1 // pred_region
      %218 = dma.done [#allocation11], 16
    $region125: #{agent_forward.2} parent=1 // pred_fallthru
      _
    // Predicated region
    $region126: #{agent_forward.2} parent=1 // pred_check
      _
    $region127: #{agent_forward.2} parent=1 // pred_check_branch
      %220 = sbr.rel (0) target = $region129
    $region128: #{agent_forward.2} parent=1 // pred_region
      %221 = dma.done [#allocation11], 16
    $region129: #{agent_forward.2} parent=1 // pred_fallthru
      _
    // Predicated region
    $region130: #{agent_forward.2} parent=1 // pred_check
      _
    $region131: #{agent_forward.2} parent=1 // pred_check_branch
      %223 = sbr.rel (0) target = $region133
    $region132: #{agent_forward.2} parent=1 // pred_region
      %224 = dma.done [#allocation14], 16
    $region133: #{agent_forward.2} parent=1 // pred_fallthru
      _
    // Predicated region
    $region134: #{agent_forward.2} parent=1 // pred_check
      _
    $region135: #{agent_forward.2} parent=1 // pred_check_branch
      %226 = sbr.rel (0) target = $region137
    $region136: #{agent_forward.2} parent=1 // pred_region
      %227 = dma.done [#allocation14], 16
    $region137: #{agent_forward.2} parent=1 // pred_fallthru
      _
    // Predicated region
    $region138: #{agent_forward.2} parent=1 // pred_check
      _
    $region139: #{agent_forward.2} parent=1 // pred_check_branch
      %229 = sbr.rel (0) target = $region141
    $region140: #{agent_forward.2} parent=1 // pred_region
      %230 = dma.done [#allocation17], 16
    $region141: #{agent_forward.2} parent=1 // pred_fallthru
      _
    %v231 = vld [vmem:[%s1] sm:$0xff]
    %v232 = vld [vmem:[%s1 + $0x8] sm:$0x3]
    %v233 = vld [vmem:[%s11] sm:$0xff]
    %v234 = vld [vmem:[%s11 + $0x8] sm:$0xff]
    %v235 = vld [vmem:[%s11 + $0x10] sm:$0xff]
    %v236 = vld [vmem:[%s11 + $0x18] sm:$0xff]
    %v237 = vld [vmem:[%s11 + $0x20] sm:$0xff]
    %v238 = vld [vmem:[%s11 + $0x28] sm:$0xff]
    %v239 = vld [vmem:[%s11 + $0x30] sm:$0x7]
    %v240 = vld [vmem:[#allocation2] sm:$0x1]
    %v242 = vlaneseq
    %v243 = vshrl.u32 %v242, 7
    %v244 = vsub.s32 0, %v243
    %v245 = vrot.slane %v240, %v244
    %vm247 = vcmask 416768
    %v249 = vsel %vm247, %v231, 0
    %v252 = vsel %vm247, %v232, 0
    %vm254 = vcmask 1042432
    %v256 = vsel %vm254, %v239, 0
    %258 = vmatprep.subr.mxu0 0.0
    %259 = vmatpush1.msra.mxu0 %v233
    %260 = vmatprep.subr.mxu0 0.0
    %261 = vmatpush1.msra.mxu0 %v234
    %262 = vmatprep.subr.mxu0 0.0
    %263 = vmatpush1.msra.mxu0 %v235
    %264 = vmatprep.subr.mxu0 0.0
    %265 = vmatpush1.msra.mxu0 %v236
    %266 = vmatprep.subr.mxu0 0.0
    %267 = vmatpush1.msra.mxu0 %v237
    %268 = vmatprep.subr.mxu0 0.0
    %269 = vmatpush1.msra.mxu0 %v238
    %270 = vmatprep.subr.mxu0 0.0
    %271 = vmatpush1.msra.mxu0 %v256
    %272 = vmatprep.subr.mxu0 0.0
    %273 = vmatpush1.msra.mxu0 0.0
    %274 = vmatprep.subr.mxu0 0.0
    %275 = vmatpush1.msra.mxu0 0.0
    %276 = vmatprep.subr.mxu0 0.0
    %277 = vmatpush1.msra.mxu0 0.0
    %278 = vmatprep.subr.mxu0 0.0
    %279 = vmatpush1.msra.mxu0 0.0
    %280 = vmatprep.subr.mxu0 0.0
    %281 = vmatpush1.msra.mxu0 0.0
    %282 = vmatprep.subr.mxu0 0.0
    %283 = vmatpush1.msra.mxu0 0.0
    %284 = vmatprep.subr.mxu0 0.0
    %285 = vmatpush1.msra.mxu0 0.0
    %286 = vmatprep.subr.mxu0 0.0
    %287 = vmatpush1.msra.mxu0 0.0
    %288 = vmatprep.subr.mxu0 0.0
    %289 = vmatpush1.msra.mxu0 0.0
    %290 = vmatprep.subr.mxu0 0.0
    %291 = vmatpush1.msra.mxu0 0.0
    %292 = vmatprep.subr.mxu0 0.0
    %293 = vmatpush1.msra.mxu0 0.0
    %294 = vmatprep.subr.mxu0 0.0
    %295 = vmatpush1.msra.mxu0 0.0
    %296 = vmatprep.subr.mxu0 0.0
    %297 = vmatpush1.msra.mxu0 0.0
    %298 = vmatprep.subr.mxu0 0.0
    %299 = vmatpush1.msra.mxu0 0.0
    %300 = vmatprep.subr.mxu0 0.0
    %301 = vmatpush1.msra.mxu0 0.0
    %302 = vmatprep.subr.mxu0 0.0
    %303 = vmatpush1.msra.mxu0 0.0
    %304 = vmatprep.subr.mxu0 0.0
    %305 = vmatpush1.msra.mxu0 0.0
    %306 = vmatprep.subr.mxu0 0.0
    %307 = vmatpush1.msra.mxu0 0.0
    %308 = vmatprep.subr.mxu0 0.0
    %309 = vmatpush1.msra.mxu0 0.0
    %310 = vmatprep.subr.mxu0 0.0
    %311 = vmatpush1.msra.mxu0 0.0
    %312 = vmatprep.subr.mxu0 0.0
    %313 = vmatpush1.msra.mxu0 0.0
    %314 = vmatprep.subr.mxu0 0.0
    %315 = vmatpush1.msra.mxu0 0.0
    %316 = vmatprep.subr.mxu0 0.0
    %317 = vmatpush1.msra.mxu0 0.0
    %318 = vmatprep.subr.mxu0 0.0
    %319 = vmatpush1.msra.mxu0 0.0
    %320 = vmatprep.subr.mxu0 0.0
    %321 = vmatpush1.msra.mxu0 0.0
    %322 = vmatprep.mubr.f32.mxu0 0.0
    %323 = vmatmul.mubr.f32.gmra.mrb[0].mxu0 %v249
    %v324 = vpop.f32.mrb[0].mxu0
    %v325 = vadd.f32 %v245, %v324
    %v326 = vpop.f32.mrb[0].mxu0
    %327 = vmatprep.mubr.f32.mxu0 0.0
    %328 = vmatmul.mubr.f32.gmra.mrb[0].mxu0 %v252
    %v329 = vpop.f32.mrb[0].mxu0
    %v330 = vadd.f32 %v245, %v329
    %v331 = vpop.f32.mrb[0].mxu0
    %332 = vdwg.mxu0
    %v333 = vmax.f32 %v325, 0.0
    %v334 = vmax.f32 %v330, 0.0
    %v335 = vld [vmem:[%s15] sm:$0xff]
    %v336 = vld [vmem:[%s15 + $0x8] sm:$0xff]
    %v337 = vld [vmem:[%s15 + $0x10] sm:$0xff]
    %v338 = vld [vmem:[%s15 + $0x18] sm:$0x1]
    %v339 = vld [vmem:[#allocation4] sm:$0x1]
    %v341 = vlaneseq
    %v342 = vshrl.u32 %v341, 7
    %v343 = vsub.s32 0, %v342
    %v344 = vrot.slane %v339, %v343
    %vm346 = vcmask 203776
    %v348 = vsel %vm346, %v333, 0
    %v351 = vsel %vm346, %v334, 0
    %vm353 = vcmask 1040384
    %v355 = vsel %vm353, %v338, 0
    %357 = vmatprep.subr.mxu0 0.0
    %358 = vmatpush1.msra.mxu0 %v335
    %359 = vmatprep.subr.mxu0 0.0
    %360 = vmatpush1.msra.mxu0 %v336
    %361 = vmatprep.subr.mxu0 0.0
    %362 = vmatpush1.msra.mxu0 %v337
    %363 = vmatprep.subr.mxu0 0.0
    %364 = vmatpush1.msra.mxu0 %v355
    %365 = vmatprep.subr.mxu0 0.0
    %366 = vmatpush1.msra.mxu0 0.0
    %367 = vmatprep.subr.mxu0 0.0
    %368 = vmatpush1.msra.mxu0 0.0
    %369 = vmatprep.subr.mxu0 0.0
    %370 = vmatpush1.msra.mxu0 0.0
    %371 = vmatprep.subr.mxu0 0.0
    %372 = vmatpush1.msra.mxu0 0.0
    %373 = vmatprep.subr.mxu0 0.0
    %374 = vmatpush1.msra.mxu0 0.0
    %375 = vmatprep.subr.mxu0 0.0
    %376 = vmatpush1.msra.mxu0 0.0
    %377 = vmatprep.subr.mxu0 0.0
    %378 = vmatpush1.msra.mxu0 0.0
    %379 = vmatprep.subr.mxu0 0.0
    %380 = vmatpush1.msra.mxu0 0.0
    %381 = vmatprep.subr.mxu0 0.0
    %382 = vmatpush1.msra.mxu0 0.0
    %383 = vmatprep.subr.mxu0 0.0
    %384 = vmatpush1.msra.mxu0 0.0
    %385 = vmatprep.subr.mxu0 0.0
    %386 = vmatpush1.msra.mxu0 0.0
    %387 = vmatprep.subr.mxu0 0.0
    %388 = vmatpush1.msra.mxu0 0.0
    %389 = vmatprep.subr.mxu0 0.0
    %390 = vmatpush1.msra.mxu0 0.0
    %391 = vmatprep.subr.mxu0 0.0
    %392 = vmatpush1.msra.mxu0 0.0
    %393 = vmatprep.subr.mxu0 0.0
    %394 = vmatpush1.msra.mxu0 0.0
    %395 = vmatprep.subr.mxu0 0.0
    %396 = vmatpush1.msra.mxu0 0.0
    %397 = vmatprep.subr.mxu0 0.0
    %398 = vmatpush1.msra.mxu0 0.0
    %399 = vmatprep.subr.mxu0 0.0
    %400 = vmatpush1.msra.mxu0 0.0
    %401 = vmatprep.subr.mxu0 0.0
    %402 = vmatpush1.msra.mxu0 0.0
    %403 = vmatprep.subr.mxu0 0.0
    %404 = vmatpush1.msra.mxu0 0.0
    %405 = vmatprep.subr.mxu0 0.0
    %406 = vmatpush1.msra.mxu0 0.0
    %407 = vmatprep.subr.mxu0 0.0
    %408 = vmatpush1.msra.mxu0 0.0
    %409 = vmatprep.subr.mxu0 0.0
    %410 = vmatpush1.msra.mxu0 0.0
    %411 = vmatprep.subr.mxu0 0.0
    %412 = vmatpush1.msra.mxu0 0.0
    %413 = vmatprep.subr.mxu0 0.0
    %414 = vmatpush1.msra.mxu0 0.0
    %415 = vmatprep.subr.mxu0 0.0
    %416 = vmatpush1.msra.mxu0 0.0
    %417 = vmatprep.subr.mxu0 0.0
    %418 = vmatpush1.msra.mxu0 0.0
    %419 = vmatprep.subr.mxu0 0.0
    %420 = vmatpush1.msra.mxu0 0.0
    %421 = vmatprep.mubr.f32.mxu0 0.0
    %422 = vmatmul.mubr.f32.gmra.mrb[0].mxu0 %v348
    %v423 = vpop.f32.mrb[0].mxu0
    %v424 = vadd.f32 %v344, %v423
    %v425 = vpop.f32.mrb[0].mxu0
    %426 = vmatprep.mubr.f32.mxu0 0.0
    %427 = vmatmul.mubr.f32.gmra.mrb[0].mxu0 %v351
    %v428 = vpop.f32.mrb[0].mxu0
    %v429 = vadd.f32 %v344, %v428
    %v430 = vpop.f32.mrb[0].mxu0
    %431 = vdwg.mxu0
    %v432 = vmax.f32 %v424, 0.0
    %v433 = vmax.f32 %v429, 0.0
    %vm434 = vcmask 130048
    %435 = vst.msk [vmem:[%s51] sm:$0xff] %vm434, %v432
    %vm436 = vcmask 123904
    %437 = vst.msk [vmem:[%s51 + $0x8] sm:$0x3] %vm436, %v433
    %v438 = vld [vmem:[%s3] sm:$0xff]
    %v439 = vld [vmem:[%s3 + $0x8] sm:$0x3]
    %v440 = vld [vmem:[%s19] sm:$0xff]
    %v441 = vld [vmem:[%s19 + $0x8] sm:$0xff]
    %v442 = vld [vmem:[%s19 + $0x10] sm:$0xff]
    %v443 = vld [vmem:[%s19 + $0x18] sm:$0xff]
    %v444 = vld [vmem:[%s19 + $0x20] sm:$0xff]
    %v445 = vld [vmem:[%s19 + $0x28] sm:$0xff]
    %v446 = vld [vmem:[%s19 + $0x30] sm:$0x7]
    %v447 = vld [vmem:[#allocation6] sm:$0x1]
    %v449 = vlaneseq
    %v450 = vshrl.u32 %v449, 7
    %v451 = vsub.s32 0, %v450
    %v452 = vrot.slane %v447, %v451
    %v455 = vsel %vm247, %v438, 0
    %v458 = vsel %vm247, %v439, 0
    %v461 = vsel %vm254, %v446, 0
    %463 = vmatprep.subr.mxu0 0.0
    %464 = vmatpush1.msra.mxu0 %v440
    %465 = vmatprep.subr.mxu0 0.0
    %466 = vmatpush1.msra.mxu0 %v441
    %467 = vmatprep.subr.mxu0 0.0
    %468 = vmatpush1.msra.mxu0 %v442
    %469 = vmatprep.subr.mxu0 0.0
    %470 = vmatpush1.msra.mxu0 %v443
    %471 = vmatprep.subr.mxu0 0.0
    %472 = vmatpush1.msra.mxu0 %v444
    %473 = vmatprep.subr.mxu0 0.0
    %474 = vmatpush1.msra.mxu0 %v445
    %475 = vmatprep.subr.mxu0 0.0
    %476 = vmatpush1.msra.mxu0 %v461
    %477 = vmatprep.subr.mxu0 0.0
    %478 = vmatpush1.msra.mxu0 0.0
    %479 = vmatprep.subr.mxu0 0.0
    %480 = vmatpush1.msra.mxu0 0.0
    %481 = vmatprep.subr.mxu0 0.0
    %482 = vmatpush1.msra.mxu0 0.0
    %483 = vmatprep.subr.mxu0 0.0
    %484 = vmatpush1.msra.mxu0 0.0
    %485 = vmatprep.subr.mxu0 0.0
    %486 = vmatpush1.msra.mxu0 0.0
    %487 = vmatprep.subr.mxu0 0.0
    %488 = vmatpush1.msra.mxu0 0.0
    %489 = vmatprep.subr.mxu0 0.0
    %490 = vmatpush1.msra.mxu0 0.0
    %491 = vmatprep.subr.mxu0 0.0
    %492 = vmatpush1.msra.mxu0 0.0
    %493 = vmatprep.subr.mxu0 0.0
    %494 = vmatpush1.msra.mxu0 0.0
    %495 = vmatprep.subr.mxu0 0.0
    %496 = vmatpush1.msra.mxu0 0.0
    %497 = vmatprep.subr.mxu0 0.0
    %498 = vmatpush1.msra.mxu0 0.0
    %499 = vmatprep.subr.mxu0 0.0
    %500 = vmatpush1.msra.mxu0 0.0
    %501 = vmatprep.subr.mxu0 0.0
    %502 = vmatpush1.msra.mxu0 0.0
    %503 = vmatprep.subr.mxu0 0.0
    %504 = vmatpush1.msra.mxu0 0.0
    %505 = vmatprep.subr.mxu0 0.0
    %506 = vmatpush1.msra.mxu0 0.0
    %507 = vmatprep.subr.mxu0 0.0
    %508 = vmatpush1.msra.mxu0 0.0
    %509 = vmatprep.subr.mxu0 0.0
    %510 = vmatpush1.msra.mxu0 0.0
    %511 = vmatprep.subr.mxu0 0.0
    %512 = vmatpush1.msra.mxu0 0.0
    %513 = vmatprep.subr.mxu0 0.0
    %514 = vmatpush1.msra.mxu0 0.0
    %515 = vmatprep.subr.mxu0 0.0
    %516 = vmatpush1.msra.mxu0 0.0
    %517 = vmatprep.subr.mxu0 0.0
    %518 = vmatpush1.msra.mxu0 0.0
    %519 = vmatprep.subr.mxu0 0.0
    %520 = vmatpush1.msra.mxu0 0.0
    %521 = vmatprep.subr.mxu0 0.0
    %522 = vmatpush1.msra.mxu0 0.0
    %523 = vmatprep.subr.mxu0 0.0
    %524 = vmatpush1.msra.mxu0 0.0
    %525 = vmatprep.subr.mxu0 0.0
    %526 = vmatpush1.msra.mxu0 0.0
    %527 = vmatprep.mubr.f32.mxu0 0.0
    %528 = vmatmul.mubr.f32.gmra.mrb[0].mxu0 %v455
    %v529 = vpop.f32.mrb[0].mxu0
    %v530 = vadd.f32 %v452, %v529
    %v531 = vpop.f32.mrb[0].mxu0
    %532 = vmatprep.mubr.f32.mxu0 0.0
    %533 = vmatmul.mubr.f32.gmra.mrb[0].mxu0 %v458
    %v534 = vpop.f32.mrb[0].mxu0
    %v535 = vadd.f32 %v452, %v534
    %v536 = vpop.f32.mrb[0].mxu0
    %537 = vdwg.mxu0
    %v538 = vmax.f32 %v530, 0.0
    %v539 = vmax.f32 %v535, 0.0
    %v540 = vld [vmem:[%s23] sm:$0xff]
    %v541 = vld [vmem:[%s23 + $0x8] sm:$0xff]
    %v542 = vld [vmem:[%s23 + $0x10] sm:$0xff]
    %v543 = vld [vmem:[%s23 + $0x18] sm:$0x1]
    %v544 = vld [vmem:[#allocation7] sm:$0x1]
    %v546 = vlaneseq
    %v547 = vshrl.u32 %v546, 7
    %v548 = vsub.s32 0, %v547
    %v549 = vrot.slane %v544, %v548
    %v552 = vsel %vm346, %v538, 0
    %v555 = vsel %vm346, %v539, 0
    %v558 = vsel %vm353, %v543, 0
    %560 = vmatprep.subr.mxu0 0.0
    %561 = vmatpush1.msra.mxu0 %v540
    %562 = vmatprep.subr.mxu0 0.0
    %563 = vmatpush1.msra.mxu0 %v541
    %564 = vmatprep.subr.mxu0 0.0
    %565 = vmatpush1.msra.mxu0 %v542
    %566 = vmatprep.subr.mxu0 0.0
    %567 = vmatpush1.msra.mxu0 %v558
    %568 = vmatprep.subr.mxu0 0.0
    %569 = vmatpush1.msra.mxu0 0.0
    %570 = vmatprep.subr.mxu0 0.0
    %571 = vmatpush1.msra.mxu0 0.0
    %572 = vmatprep.subr.mxu0 0.0
    %573 = vmatpush1.msra.mxu0 0.0
    %574 = vmatprep.subr.mxu0 0.0
    %575 = vmatpush1.msra.mxu0 0.0
    %576 = vmatprep.subr.mxu0 0.0
    %577 = vmatpush1.msra.mxu0 0.0
    %578 = vmatprep.subr.mxu0 0.0
    %579 = vmatpush1.msra.mxu0 0.0
    %580 = vmatprep.subr.mxu0 0.0
    %581 = vmatpush1.msra.mxu0 0.0
    %582 = vmatprep.subr.mxu0 0.0
    %583 = vmatpush1.msra.mxu0 0.0
    %584 = vmatprep.subr.mxu0 0.0
    %585 = vmatpush1.msra.mxu0 0.0
    %586 = vmatprep.subr.mxu0 0.0
    %587 = vmatpush1.msra.mxu0 0.0
    %588 = vmatprep.subr.mxu0 0.0
    %589 = vmatpush1.msra.mxu0 0.0
    %590 = vmatprep.subr.mxu0 0.0
    %591 = vmatpush1.msra.mxu0 0.0
    %592 = vmatprep.subr.mxu0 0.0
    %593 = vmatpush1.msra.mxu0 0.0
    %594 = vmatprep.subr.mxu0 0.0
    %595 = vmatpush1.msra.mxu0 0.0
    %596 = vmatprep.subr.mxu0 0.0
    %597 = vmatpush1.msra.mxu0 0.0
    %598 = vmatprep.subr.mxu0 0.0
    %599 = vmatpush1.msra.mxu0 0.0
    %600 = vmatprep.subr.mxu0 0.0
    %601 = vmatpush1.msra.mxu0 0.0
    %602 = vmatprep.subr.mxu0 0.0
    %603 = vmatpush1.msra.mxu0 0.0
    %604 = vmatprep.subr.mxu0 0.0
    %605 = vmatpush1.msra.mxu0 0.0
    %606 = vmatprep.subr.mxu0 0.0
    %607 = vmatpush1.msra.mxu0 0.0
    %608 = vmatprep.subr.mxu0 0.0
    %609 = vmatpush1.msra.mxu0 0.0
    %610 = vmatprep.subr.mxu0 0.0
    %611 = vmatpush1.msra.mxu0 0.0
    %612 = vmatprep.subr.mxu0 0.0
    %613 = vmatpush1.msra.mxu0 0.0
    %614 = vmatprep.subr.mxu0 0.0
    %615 = vmatpush1.msra.mxu0 0.0
    %616 = vmatprep.subr.mxu0 0.0
    %617 = vmatpush1.msra.mxu0 0.0
    %618 = vmatprep.subr.mxu0 0.0
    %619 = vmatpush1.msra.mxu0 0.0
    %620 = vmatprep.subr.mxu0 0.0
    %621 = vmatpush1.msra.mxu0 0.0
    %622 = vmatprep.subr.mxu0 0.0
    %623 = vmatpush1.msra.mxu0 0.0
    %624 = vmatprep.mubr.f32.mxu0 0.0
    %625 = vmatmul.mubr.f32.gmra.mrb[0].mxu0 %v552
    %v626 = vpop.f32.mrb[0].mxu0
    %v627 = vadd.f32 %v549, %v626
    %v628 = vpop.f32.mrb[0].mxu0
    %629 = vmatprep.mubr.f32.mxu0 0.0
    %630 = vmatmul.mubr.f32.gmra.mrb[0].mxu0 %v555
    %v631 = vpop.f32.mrb[0].mxu0
    %v632 = vadd.f32 %v549, %v631
    %v633 = vpop.f32.mrb[0].mxu0
    %634 = vdwg.mxu0
    %v635 = vmax.f32 %v627, 0.0
    %v636 = vmax.f32 %v632, 0.0
    %637 = vst.msk [vmem:[%s53] sm:$0xff] %vm434, %v635
    %638 = vst.msk [vmem:[%s53 + $0x8] sm:$0x3] %vm436, %v636
    %v639 = vld [vmem:[%s5] sm:$0xff]
    %v640 = vld [vmem:[%s5 + $0x8] sm:$0xff]
    %v641 = vld [vmem:[%s5 + $0x10] sm:$0xff]
    %v642 = vld [vmem:[%s5 + $0x18] sm:$0xff]
    %v643 = vld [vmem:[%s5 + $0x20] sm:$0xff]
    %v644 = vld [vmem:[%s5 + $0x28] sm:$0xff]
    %v645 = vld [vmem:[%s27] sm:$0xff]
    %v646 = vld [vmem:[%s27 + $0x8] sm:$0xff]
    %v647 = vld [vmem:[%s27 + $0x10] sm:$0x1]
    %v648 = vld [vmem:[#allocation9] sm:$0x1]
    %v650 = vlaneseq
    %v651 = vshrl.u32 %v650, 7
    %v652 = vsub.s32 0, %v651
    %v653 = vrot.slane %v648, %v652
    %vm655 = vcmask 138240
    %v657 = vsel %vm655, %v639, 0
    %v660 = vsel %vm655, %v640, 0
    %v663 = vsel %vm655, %v641, 0
    %v666 = vsel %vm655, %v642, 0
    %v669 = vsel %vm655, %v643, 0
    %v672 = vsel %vm655, %v644, 0
    %v675 = vsel %vm353, %v647, 0
    %677 = vmatprep.subr.mxu0 0.0
    %678 = vmatpush1.msra.mxu0 %v645
    %679 = vmatprep.subr.mxu0 0.0
    %680 = vmatpush1.msra.mxu0 %v646
    %681 = vmatprep.subr.mxu0 0.0
    %682 = vmatpush1.msra.mxu0 %v675
    %683 = vmatprep.subr.mxu0 0.0
    %684 = vmatpush1.msra.mxu0 0.0
    %685 = vmatprep.subr.mxu0 0.0
    %686 = vmatpush1.msra.mxu0 0.0
    %687 = vmatprep.subr.mxu0 0.0
    %688 = vmatpush1.msra.mxu0 0.0
    %689 = vmatprep.subr.mxu0 0.0
    %690 = vmatpush1.msra.mxu0 0.0
    %691 = vmatprep.subr.mxu0 0.0
    %692 = vmatpush1.msra.mxu0 0.0
    %693 = vmatprep.subr.mxu0 0.0
    %694 = vmatpush1.msra.mxu0 0.0
    %695 = vmatprep.subr.mxu0 0.0
    %696 = vmatpush1.msra.mxu0 0.0
    %697 = vmatprep.subr.mxu0 0.0
    %698 = vmatpush1.msra.mxu0 0.0
    %699 = vmatprep.subr.mxu0 0.0
    %700 = vmatpush1.msra.mxu0 0.0
    %701 = vmatprep.subr.mxu0 0.0
    %702 = vmatpush1.msra.mxu0 0.0
    %703 = vmatprep.subr.mxu0 0.0
    %704 = vmatpush1.msra.mxu0 0.0
    %705 = vmatprep.subr.mxu0 0.0
    %706 = vmatpush1.msra.mxu0 0.0
    %707 = vmatprep.subr.mxu0 0.0
    %708 = vmatpush1.msra.mxu0 0.0
    %709 = vmatprep.subr.mxu0 0.0
    %710 = vmatpush1.msra.mxu0 0.0
    %711 = vmatprep.subr.mxu0 0.0
    %712 = vmatpush1.msra.mxu0 0.0
    %713 = vmatprep.subr.mxu0 0.0
    %714 = vmatpush1.msra.mxu0 0.0
    %715 = vmatprep.subr.mxu0 0.0
    %716 = vmatpush1.msra.mxu0 0.0
    %717 = vmatprep.subr.mxu0 0.0
    %718 = vmatpush1.msra.mxu0 0.0
    %719 = vmatprep.subr.mxu0 0.0
    %720 = vmatpush1.msra.mxu0 0.0
    %721 = vmatprep.subr.mxu0 0.0
    %722 = vmatpush1.msra.mxu0 0.0
    %723 = vmatprep.subr.mxu0 0.0
    %724 = vmatpush1.msra.mxu0 0.0
    %725 = vmatprep.subr.mxu0 0.0
    %726 = vmatpush1.msra.mxu0 0.0
    %727 = vmatprep.subr.mxu0 0.0
    %728 = vmatpush1.msra.mxu0 0.0
    %729 = vmatprep.subr.mxu0 0.0
    %730 = vmatpush1.msra.mxu0 0.0
    %731 = vmatprep.subr.mxu0 0.0
    %732 = vmatpush1.msra.mxu0 0.0
    %733 = vmatprep.subr.mxu0 0.0
    %734 = vmatpush1.msra.mxu0 0.0
    %735 = vmatprep.subr.mxu0 0.0
    %736 = vmatpush1.msra.mxu0 0.0
    %737 = vmatprep.subr.mxu0 0.0
    %738 = vmatpush1.msra.mxu0 0.0
    %739 = vmatprep.subr.mxu0 0.0
    %740 = vmatpush1.msra.mxu0 0.0
    %741 = vmatprep.mubr.f32.mxu0 0.0
    %742 = vmatmul.mubr.f32.gmra.mrb[0].mxu0 %v657
    %v743 = vpop.f32.mrb[0].mxu0
    %v744 = vadd.f32 %v653, %v743
    %v745 = vpop.f32.mrb[0].mxu0
    %746 = vmatprep.mubr.f32.mxu0 0.0
    %747 = vmatmul.mubr.f32.gmra.mrb[0].mxu0 %v660
    %v748 = vpop.f32.mrb[0].mxu0
    %v749 = vadd.f32 %v653, %v748
    %v750 = vpop.f32.mrb[0].mxu0
    %751 = vmatprep.mubr.f32.mxu0 0.0
    %752 = vmatmul.mubr.f32.gmra.mrb[0].mxu0 %v663
    %v753 = vpop.f32.mrb[0].mxu0
    %v754 = vadd.f32 %v653, %v753
    %v755 = vpop.f32.mrb[0].mxu0
    %756 = vmatprep.mubr.f32.mxu0 0.0
    %757 = vmatmul.mubr.f32.gmra.mrb[0].mxu0 %v666
    %v758 = vpop.f32.mrb[0].mxu0
    %v759 = vadd.f32 %v653, %v758
    %v760 = vpop.f32.mrb[0].mxu0
    %761 = vmatprep.mubr.f32.mxu0 0.0
    %762 = vmatmul.mubr.f32.gmra.mrb[0].mxu0 %v669
    %v763 = vpop.f32.mrb[0].mxu0
    %v764 = vadd.f32 %v653, %v763
    %v765 = vpop.f32.mrb[0].mxu0
    %766 = vmatprep.mubr.f32.mxu0 0.0
    %767 = vmatmul.mubr.f32.gmra.mrb[0].mxu0 %v672
    %v768 = vpop.f32.mrb[0].mxu0
    %v769 = vadd.f32 %v653, %v768
    %v770 = vpop.f32.mrb[0].mxu0
    %771 = vdwg.mxu0
    %v772 = vmax.f32 %v744, 0.0
    %v773 = vmax.f32 %v749, 0.0
    %v774 = vmax.f32 %v754, 0.0
    %v775 = vmax.f32 %v759, 0.0
    %v776 = vmax.f32 %v764, 0.0
    %v777 = vmax.f32 %v769, 0.0
    %v778 = vld [vmem:[%s31] sm:$0xff]
    %v779 = vld [vmem:[#allocation10] sm:$0x1]
    %v781 = vlaneseq
    %v782 = vshrl.u32 %v781, 7
    %v783 = vsub.s32 0, %v782
    %v784 = vrot.slane %v779, %v783
    %vm786 = vcmask 64512
    %v788 = vsel %vm786, %v772, 0
    %v791 = vsel %vm786, %v773, 0
    %v794 = vsel %vm786, %v774, 0
    %v797 = vsel %vm786, %v775, 0
    %v800 = vsel %vm786, %v776, 0
    %v803 = vsel %vm786, %v777, 0
    %805 = vmatprep.subr.mxu0 0.0
    %806 = vmatpush1.msra.mxu0 %v778
    %807 = vmatprep.subr.mxu0 0.0
    %808 = vmatpush1.msra.mxu0 0.0
    %809 = vmatprep.subr.mxu0 0.0
    %810 = vmatpush1.msra.mxu0 0.0
    %811 = vmatprep.subr.mxu0 0.0
    %812 = vmatpush1.msra.mxu0 0.0
    %813 = vmatprep.subr.mxu0 0.0
    %814 = vmatpush1.msra.mxu0 0.0
    %815 = vmatprep.subr.mxu0 0.0
    %816 = vmatpush1.msra.mxu0 0.0
    %817 = vmatprep.subr.mxu0 0.0
    %818 = vmatpush1.msra.mxu0 0.0
    %819 = vmatprep.subr.mxu0 0.0
    %820 = vmatpush1.msra.mxu0 0.0
    %821 = vmatprep.subr.mxu0 0.0
    %822 = vmatpush1.msra.mxu0 0.0
    %823 = vmatprep.subr.mxu0 0.0
    %824 = vmatpush1.msra.mxu0 0.0
    %825 = vmatprep.subr.mxu0 0.0
    %826 = vmatpush1.msra.mxu0 0.0
    %827 = vmatprep.subr.mxu0 0.0
    %828 = vmatpush1.msra.mxu0 0.0
    %829 = vmatprep.subr.mxu0 0.0
    %830 = vmatpush1.msra.mxu0 0.0
    %831 = vmatprep.subr.mxu0 0.0
    %832 = vmatpush1.msra.mxu0 0.0
    %833 = vmatprep.subr.mxu0 0.0
    %834 = vmatpush1.msra.mxu0 0.0
    %835 = vmatprep.subr.mxu0 0.0
    %836 = vmatpush1.msra.mxu0 0.0
    %837 = vmatprep.subr.mxu0 0.0
    %838 = vmatpush1.msra.mxu0 0.0
    %839 = vmatprep.subr.mxu0 0.0
    %840 = vmatpush1.msra.mxu0 0.0
    %841 = vmatprep.subr.mxu0 0.0
    %842 = vmatpush1.msra.mxu0 0.0
    %843 = vmatprep.subr.mxu0 0.0
    %844 = vmatpush1.msra.mxu0 0.0
    %845 = vmatprep.subr.mxu0 0.0
    %846 = vmatpush1.msra.mxu0 0.0
    %847 = vmatprep.subr.mxu0 0.0
    %848 = vmatpush1.msra.mxu0 0.0
    %849 = vmatprep.subr.mxu0 0.0
    %850 = vmatpush1.msra.mxu0 0.0
    %851 = vmatprep.subr.mxu0 0.0
    %852 = vmatpush1.msra.mxu0 0.0
    %853 = vmatprep.subr.mxu0 0.0
    %854 = vmatpush1.msra.mxu0 0.0
    %855 = vmatprep.subr.mxu0 0.0
    %856 = vmatpush1.msra.mxu0 0.0
    %857 = vmatprep.subr.mxu0 0.0
    %858 = vmatpush1.msra.mxu0 0.0
    %859 = vmatprep.subr.mxu0 0.0
    %860 = vmatpush1.msra.mxu0 0.0
    %861 = vmatprep.subr.mxu0 0.0
    %862 = vmatpush1.msra.mxu0 0.0
    %863 = vmatprep.subr.mxu0 0.0
    %864 = vmatpush1.msra.mxu0 0.0
    %865 = vmatprep.subr.mxu0 0.0
    %866 = vmatpush1.msra.mxu0 0.0
    %867 = vmatprep.subr.mxu0 0.0
    %868 = vmatpush1.msra.mxu0 0.0
    %869 = vmatprep.mubr.f32.mxu0 0.0
    %870 = vmatmul.mubr.f32.gmra.mrb[0].mxu0 %v788
    %v871 = vpop.f32.mrb[0].mxu0
    %v872 = vadd.f32 %v784, %v871
    %v873 = vpop.f32.mrb[0].mxu0
    %874 = vmatprep.mubr.f32.mxu0 0.0
    %875 = vmatmul.mubr.f32.gmra.mrb[0].mxu0 %v791
    %v876 = vpop.f32.mrb[0].mxu0
    %v877 = vadd.f32 %v784, %v876
    %v878 = vpop.f32.mrb[0].mxu0
    %879 = vmatprep.mubr.f32.mxu0 0.0
    %880 = vmatmul.mubr.f32.gmra.mrb[0].mxu0 %v794
    %v881 = vpop.f32.mrb[0].mxu0
    %v882 = vadd.f32 %v784, %v881
    %v883 = vpop.f32.mrb[0].mxu0
    %884 = vmatprep.mubr.f32.mxu0 0.0
    %885 = vmatmul.mubr.f32.gmra.mrb[0].mxu0 %v797
    %v886 = vpop.f32.mrb[0].mxu0
    %v887 = vadd.f32 %v784, %v886
    %v888 = vpop.f32.mrb[0].mxu0
    %889 = vmatprep.mubr.f32.mxu0 0.0
    %890 = vmatmul.mubr.f32.gmra.mrb[0].mxu0 %v800
    %v891 = vpop.f32.mrb[0].mxu0
    %v892 = vadd.f32 %v784, %v891
    %v893 = vpop.f32.mrb[0].mxu0
    %894 = vmatprep.mubr.f32.mxu0 0.0
    %895 = vmatmul.mubr.f32.gmra.mrb[0].mxu0 %v803
    %v896 = vpop.f32.mrb[0].mxu0
    %v897 = vadd.f32 %v784, %v896
    %v898 = vpop.f32.mrb[0].mxu0
    %899 = vdwg.mxu0
    %v900 = vmax.f32 %v872, 0.0
    %v901 = vmax.f32 %v877, 0.0
    %v902 = vmax.f32 %v882, 0.0
    %v903 = vmax.f32 %v887, 0.0
    %v904 = vmax.f32 %v892, 0.0
    %v905 = vmax.f32 %v897, 0.0
    %vm906 = vcmask 31744
    %907 = vst.msk [vmem:[%s55] sm:$0xff] %vm906, %v900
    %908 = vst.msk [vmem:[%s55 + $0x8] sm:$0xff] %vm906, %v901
    %909 = vst.msk [vmem:[%s55 + $0x10] sm:$0xff] %vm906, %v902
    %910 = vst.msk [vmem:[%s55 + $0x18] sm:$0xff] %vm906, %v903
    %911 = vst.msk [vmem:[%s55 + $0x20] sm:$0xff] %vm906, %v904
    %912 = vst.msk [vmem:[%s55 + $0x28] sm:$0xff] %vm906, %v905
    %v913 = vld [vmem:[%s7] sm:$0xff]
    %v914 = vld [vmem:[%s7 + $0x8] sm:$0xff]
    %v915 = vld [vmem:[%s7 + $0x10] sm:$0xff]
    %v916 = vld [vmem:[%s7 + $0x18] sm:$0xff]
    %v917 = vld [vmem:[%s7 + $0x20] sm:$0xff]
    %v918 = vld [vmem:[%s7 + $0x28] sm:$0xff]
    %v919 = vld [vmem:[%s7 + $0x30] sm:$0xff]
    %v920 = vld [vmem:[%s7 + $0x38] sm:$0xff]
    %v921 = vld [vmem:[%s7 + $0x40] sm:$0xff]
    %v922 = vld [vmem:[%s7 + $0x48] sm:$0xff]
    %v923 = vld [vmem:[%s7 + $0x50] sm:$0xff]
    %v924 = vld [vmem:[%s7 + $0x58] sm:$0xff]
    %v925 = vld [vmem:[%s7 + $0x60] sm:$0xff]
    %v926 = vld [vmem:[%s35] sm:$0xff]
    %v927 = vld [vmem:[%s35 + $0x8] sm:$0xff]
    %v928 = vld [vmem:[%s35 + $0x10] sm:$0x1]
    %v929 = vld [vmem:[#allocation12] sm:$0x1]
    %v931 = vlaneseq
    %v932 = vshrl.u32 %v931, 7
    %v933 = vsub.s32 0, %v932
    %v934 = vrot.slane %v929, %v933
    %v937 = vsel %vm655, %v913, 0
    %v940 = vsel %vm655, %v914, 0
    %v943 = vsel %vm655, %v915, 0
    %v946 = vsel %vm655, %v916, 0
    %v949 = vsel %vm655, %v917, 0
    %v952 = vsel %vm655, %v918, 0
    %v955 = vsel %vm655, %v919, 0
    %v958 = vsel %vm655, %v920, 0
    %v961 = vsel %vm655, %v921, 0
    %v964 = vsel %vm655, %v922, 0
    %v967 = vsel %vm655, %v923, 0
    %v970 = vsel %vm655, %v924, 0
    %v973 = vsel %vm655, %v925, 0
    %v976 = vsel %vm353, %v928, 0
    %978 = vmatprep.subr.mxu0 0.0
    %979 = vmatpush1.msra.mxu0 %v926
    %980 = vmatprep.subr.mxu0 0.0
    %981 = vmatpush1.msra.mxu0 %v927
    %982 = vmatprep.subr.mxu0 0.0
    %983 = vmatpush1.msra.mxu0 %v976
    %984 = vmatprep.subr.mxu0 0.0
    %985 = vmatpush1.msra.mxu0 0.0
    %986 = vmatprep.subr.mxu0 0.0
    %987 = vmatpush1.msra.mxu0 0.0
    %988 = vmatprep.subr.mxu0 0.0
    %989 = vmatpush1.msra.mxu0 0.0
    %990 = vmatprep.subr.mxu0 0.0
    %991 = vmatpush1.msra.mxu0 0.0
    %992 = vmatprep.subr.mxu0 0.0
    %993 = vmatpush1.msra.mxu0 0.0
    %994 = vmatprep.subr.mxu0 0.0
    %995 = vmatpush1.msra.mxu0 0.0
    %996 = vmatprep.subr.mxu0 0.0
    %997 = vmatpush1.msra.mxu0 0.0
    %998 = vmatprep.subr.mxu0 0.0
    %999 = vmatpush1.msra.mxu0 0.0
    %1000 = vmatprep.subr.mxu0 0.0
    %1001 = vmatpush1.msra.mxu0 0.0
    %1002 = vmatprep.subr.mxu0 0.0
    %1003 = vmatpush1.msra.mxu0 0.0
    %1004 = vmatprep.subr.mxu0 0.0
    %1005 = vmatpush1.msra.mxu0 0.0
    %1006 = vmatprep.subr.mxu0 0.0
    %1007 = vmatpush1.msra.mxu0 0.0
    %1008 = vmatprep.subr.mxu0 0.0
    %1009 = vmatpush1.msra.mxu0 0.0
    %1010 = vmatprep.subr.mxu0 0.0
    %1011 = vmatpush1.msra.mxu0 0.0
    %1012 = vmatprep.subr.mxu0 0.0
    %1013 = vmatpush1.msra.mxu0 0.0
    %1014 = vmatprep.subr.mxu0 0.0
    %1015 = vmatpush1.msra.mxu0 0.0
    %1016 = vmatprep.subr.mxu0 0.0
    %1017 = vmatpush1.msra.mxu0 0.0
    %1018 = vmatprep.subr.mxu0 0.0
    %1019 = vmatpush1.msra.mxu0 0.0
    %1020 = vmatprep.subr.mxu0 0.0
    %1021 = vmatpush1.msra.mxu0 0.0
    %1022 = vmatprep.subr.mxu0 0.0
    %1023 = vmatpush1.msra.mxu0 0.0
    %1024 = vmatprep.subr.mxu0 0.0
    %1025 = vmatpush1.msra.mxu0 0.0
    %1026 = vmatprep.subr.mxu0 0.0
    %1027 = vmatpush1.msra.mxu0 0.0
    %1028 = vmatprep.subr.mxu0 0.0
    %1029 = vmatpush1.msra.mxu0 0.0
    %1030 = vmatprep.subr.mxu0 0.0
    %1031 = vmatpush1.msra.mxu0 0.0
    %1032 = vmatprep.subr.mxu0 0.0
    %1033 = vmatpush1.msra.mxu0 0.0
    %1034 = vmatprep.subr.mxu0 0.0
    %1035 = vmatpush1.msra.mxu0 0.0
    %1036 = vmatprep.subr.mxu0 0.0
    %1037 = vmatpush1.msra.mxu0 0.0
    %1038 = vmatprep.subr.mxu0 0.0
    %1039 = vmatpush1.msra.mxu0 0.0
    %1040 = vmatprep.subr.mxu0 0.0
    %1041 = vmatpush1.msra.mxu0 0.0
    %1042 = vmatprep.mubr.f32.mxu0 0.0
    %1043 = vmatmul.mubr.f32.gmra.mrb[0].mxu0 %v937
    %v1044 = vpop.f32.mrb[0].mxu0
    %v1045 = vadd.f32 %v934, %v1044
    %v1046 = vpop.f32.mrb[0].mxu0
    %1047 = vmatprep.mubr.f32.mxu0 0.0
    %1048 = vmatmul.mubr.f32.gmra.mrb[0].mxu0 %v940
    %v1049 = vpop.f32.mrb[0].mxu0
    %v1050 = vadd.f32 %v934, %v1049
    %v1051 = vpop.f32.mrb[0].mxu0
    %1052 = vmatprep.mubr.f32.mxu0 0.0
    %1053 = vmatmul.mubr.f32.gmra.mrb[0].mxu0 %v943
    %v1054 = vpop.f32.mrb[0].mxu0
    %v1055 = vadd.f32 %v934, %v1054
    %v1056 = vpop.f32.mrb[0].mxu0
    %1057 = vmatprep.mubr.f32.mxu0 0.0
    %1058 = vmatmul.mubr.f32.gmra.mrb[0].mxu0 %v946
    %v1059 = vpop.f32.mrb[0].mxu0
    %v1060 = vadd.f32 %v934, %v1059
    %v1061 = vpop.f32.mrb[0].mxu0
    %1062 = vmatprep.mubr.f32.mxu0 0.0
    %1063 = vmatmul.mubr.f32.gmra.mrb[0].mxu0 %v949
    %v1064 = vpop.f32.mrb[0].mxu0
    %v1065 = vadd.f32 %v934, %v1064
    %v1066 = vpop.f32.mrb[0].mxu0
    %1067 = vmatprep.mubr.f32.mxu0 0.0
    %1068 = vmatmul.mubr.f32.gmra.mrb[0].mxu0 %v952
    %v1069 = vpop.f32.mrb[0].mxu0
    %v1070 = vadd.f32 %v934, %v1069
    %v1071 = vpop.f32.mrb[0].mxu0
    %1072 = vmatprep.mubr.f32.mxu0 0.0
    %1073 = vmatmul.mubr.f32.gmra.mrb[0].mxu0 %v955
    %v1074 = vpop.f32.mrb[0].mxu0
    %v1075 = vadd.f32 %v934, %v1074
    %v1076 = vpop.f32.mrb[0].mxu0
    %1077 = vmatprep.mubr.f32.mxu0 0.0
    %1078 = vmatmul.mubr.f32.gmra.mrb[0].mxu0 %v958
    %v1079 = vpop.f32.mrb[0].mxu0
    %v1080 = vadd.f32 %v934, %v1079
    %v1081 = vpop.f32.mrb[0].mxu0
    %1082 = vmatprep.mubr.f32.mxu0 0.0
    %1083 = vmatmul.mubr.f32.gmra.mrb[0].mxu0 %v961
    %v1084 = vpop.f32.mrb[0].mxu0
    %v1085 = vadd.f32 %v934, %v1084
    %v1086 = vpop.f32.mrb[0].mxu0
    %1087 = vmatprep.mubr.f32.mxu0 0.0
    %1088 = vmatmul.mubr.f32.gmra.mrb[0].mxu0 %v964
    %v1089 = vpop.f32.mrb[0].mxu0
    %v1090 = vadd.f32 %v934, %v1089
    %v1091 = vpop.f32.mrb[0].mxu0
    %1092 = vmatprep.mubr.f32.mxu0 0.0
    %1093 = vmatmul.mubr.f32.gmra.mrb[0].mxu0 %v967
    %v1094 = vpop.f32.mrb[0].mxu0
    %v1095 = vadd.f32 %v934, %v1094
    %v1096 = vpop.f32.mrb[0].mxu0
    %1097 = vmatprep.mubr.f32.mxu0 0.0
    %1098 = vmatmul.mubr.f32.gmra.mrb[0].mxu0 %v970
    %v1099 = vpop.f32.mrb[0].mxu0
    %v1100 = vadd.f32 %v934, %v1099
    %v1101 = vpop.f32.mrb[0].mxu0
    %1102 = vmatprep.mubr.f32.mxu0 0.0
    %1103 = vmatmul.mubr.f32.gmra.mrb[0].mxu0 %v973
    %v1104 = vpop.f32.mrb[0].mxu0
    %v1105 = vadd.f32 %v934, %v1104
    %v1106 = vpop.f32.mrb[0].mxu0
    %1107 = vdwg.mxu0
    %v1108 = vmax.f32 %v1045, 0.0
    %v1109 = vmax.f32 %v1050, 0.0
    %v1110 = vmax.f32 %v1055, 0.0
    %v1111 = vmax.f32 %v1060, 0.0
    %v1112 = vmax.f32 %v1065, 0.0
    %v1113 = vmax.f32 %v1070, 0.0
    %v1114 = vmax.f32 %v1075, 0.0
    %v1115 = vmax.f32 %v1080, 0.0
    %v1116 = vmax.f32 %v1085, 0.0
    %v1117 = vmax.f32 %v1090, 0.0
    %v1118 = vmax.f32 %v1095, 0.0
    %v1119 = vmax.f32 %v1100, 0.0
    %v1120 = vmax.f32 %v1105, 0.0
    %v1121 = vld [vmem:[%s39] sm:$0xff]
    %v1122 = vld [vmem:[#allocation13] sm:$0x1]
    %v1124 = vlaneseq
    %v1125 = vshrl.u32 %v1124, 7
    %v1126 = vsub.s32 0, %v1125
    %v1127 = vrot.slane %v1122, %v1126
    %v1130 = vsel %vm786, %v1108, 0
    %v1133 = vsel %vm786, %v1109, 0
    %v1136 = vsel %vm786, %v1110, 0
    %v1139 = vsel %vm786, %v1111, 0
    %v1142 = vsel %vm786, %v1112, 0
    %v1145 = vsel %vm786, %v1113, 0
    %v1148 = vsel %vm786, %v1114, 0
    %v1151 = vsel %vm786, %v1115, 0
    %v1154 = vsel %vm786, %v1116, 0
    %v1157 = vsel %vm786, %v1117, 0
    %v1160 = vsel %vm786, %v1118, 0
    %v1163 = vsel %vm786, %v1119, 0
    %v1166 = vsel %vm786, %v1120, 0
    %1168 = vmatprep.subr.mxu0 0.0
    %1169 = vmatpush1.msra.mxu0 %v1121
    %1170 = vmatprep.subr.mxu0 0.0
    %1171 = vmatpush1.msra.mxu0 0.0
    %1172 = vmatprep.subr.mxu0 0.0
    %1173 = vmatpush1.msra.mxu0 0.0
    %1174 = vmatprep.subr.mxu0 0.0
    %1175 = vmatpush1.msra.mxu0 0.0
    %1176 = vmatprep.subr.mxu0 0.0
    %1177 = vmatpush1.msra.mxu0 0.0
    %1178 = vmatprep.subr.mxu0 0.0
    %1179 = vmatpush1.msra.mxu0 0.0
    %1180 = vmatprep.subr.mxu0 0.0
    %1181 = vmatpush1.msra.mxu0 0.0
    %1182 = vmatprep.subr.mxu0 0.0
    %1183 = vmatpush1.msra.mxu0 0.0
    %1184 = vmatprep.subr.mxu0 0.0
    %1185 = vmatpush1.msra.mxu0 0.0
    %1186 = vmatprep.subr.mxu0 0.0
    %1187 = vmatpush1.msra.mxu0 0.0
    %1188 = vmatprep.subr.mxu0 0.0
    %1189 = vmatpush1.msra.mxu0 0.0
    %1190 = vmatprep.subr.mxu0 0.0
    %1191 = vmatpush1.msra.mxu0 0.0
    %1192 = vmatprep.subr.mxu0 0.0
    %1193 = vmatpush1.msra.mxu0 0.0
    %1194 = vmatprep.subr.mxu0 0.0
    %1195 = vmatpush1.msra.mxu0 0.0
    %1196 = vmatprep.subr.mxu0 0.0
    %1197 = vmatpush1.msra.mxu0 0.0
    %1198 = vmatprep.subr.mxu0 0.0
    %1199 = vmatpush1.msra.mxu0 0.0
    %1200 = vmatprep.subr.mxu0 0.0
    %1201 = vmatpush1.msra.mxu0 0.0
    %1202 = vmatprep.subr.mxu0 0.0
    %1203 = vmatpush1.msra.mxu0 0.0
    %1204 = vmatprep.subr.mxu0 0.0
    %1205 = vmatpush1.msra.mxu0 0.0
    %1206 = vmatprep.subr.mxu0 0.0
    %1207 = vmatpush1.msra.mxu0 0.0
    %1208 = vmatprep.subr.mxu0 0.0
    %1209 = vmatpush1.msra.mxu0 0.0
    %1210 = vmatprep.subr.mxu0 0.0
    %1211 = vmatpush1.msra.mxu0 0.0
    %1212 = vmatprep.subr.mxu0 0.0
    %1213 = vmatpush1.msra.mxu0 0.0
    %1214 = vmatprep.subr.mxu0 0.0
    %1215 = vmatpush1.msra.mxu0 0.0
    %1216 = vmatprep.subr.mxu0 0.0
    %1217 = vmatpush1.msra.mxu0 0.0
    %1218 = vmatprep.subr.mxu0 0.0
    %1219 = vmatpush1.msra.mxu0 0.0
    %1220 = vmatprep.subr.mxu0 0.0
    %1221 = vmatpush1.msra.mxu0 0.0
    %1222 = vmatprep.subr.mxu0 0.0
    %1223 = vmatpush1.msra.mxu0 0.0
    %1224 = vmatprep.subr.mxu0 0.0
    %1225 = vmatpush1.msra.mxu0 0.0
    %1226 = vmatprep.subr.mxu0 0.0
    %1227 = vmatpush1.msra.mxu0 0.0
    %1228 = vmatprep.subr.mxu0 0.0
    %1229 = vmatpush1.msra.mxu0 0.0
    %1230 = vmatprep.subr.mxu0 0.0
    %1231 = vmatpush1.msra.mxu0 0.0
    %1232 = vmatprep.mubr.f32.mxu0 0.0
    %1233 = vmatmul.mubr.f32.gmra.mrb[0].mxu0 %v1130
    %v1234 = vpop.f32.mrb[0].mxu0
    %v1235 = vadd.f32 %v1127, %v1234
    %v1236 = vpop.f32.mrb[0].mxu0
    %1237 = vmatprep.mubr.f32.mxu0 0.0
    %1238 = vmatmul.mubr.f32.gmra.mrb[0].mxu0 %v1133
    %v1239 = vpop.f32.mrb[0].mxu0
    %v1240 = vadd.f32 %v1127, %v1239
    %v1241 = vpop.f32.mrb[0].mxu0
    %1242 = vmatprep.mubr.f32.mxu0 0.0
    %1243 = vmatmul.mubr.f32.gmra.mrb[0].mxu0 %v1136
    %v1244 = vpop.f32.mrb[0].mxu0
    %v1245 = vadd.f32 %v1127, %v1244
    %v1246 = vpop.f32.mrb[0].mxu0
    %1247 = vmatprep.mubr.f32.mxu0 0.0
    %1248 = vmatmul.mubr.f32.gmra.mrb[0].mxu0 %v1139
    %v1249 = vpop.f32.mrb[0].mxu0
    %v1250 = vadd.f32 %v1127, %v1249
    %v1251 = vpop.f32.mrb[0].mxu0
    %1252 = vmatprep.mubr.f32.mxu0 0.0
    %1253 = vmatmul.mubr.f32.gmra.mrb[0].mxu0 %v1142
    %v1254 = vpop.f32.mrb[0].mxu0
    %v1255 = vadd.f32 %v1127, %v1254
    %v1256 = vpop.f32.mrb[0].mxu0
    %1257 = vmatprep.mubr.f32.mxu0 0.0
    %1258 = vmatmul.mubr.f32.gmra.mrb[0].mxu0 %v1145
    %v1259 = vpop.f32.mrb[0].mxu0
    %v1260 = vadd.f32 %v1127, %v1259
    %v1261 = vpop.f32.mrb[0].mxu0
    %1262 = vmatprep.mubr.f32.mxu0 0.0
    %1263 = vmatmul.mubr.f32.gmra.mrb[0].mxu0 %v1148
    %v1264 = vpop.f32.mrb[0].mxu0
    %v1265 = vadd.f32 %v1127, %v1264
    %v1266 = vpop.f32.mrb[0].mxu0
    %1267 = vmatprep.mubr.f32.mxu0 0.0
    %1268 = vmatmul.mubr.f32.gmra.mrb[0].mxu0 %v1151
    %v1269 = vpop.f32.mrb[0].mxu0
    %v1270 = vadd.f32 %v1127, %v1269
    %v1271 = vpop.f32.mrb[0].mxu0
    %1272 = vmatprep.mubr.f32.mxu0 0.0
    %1273 = vmatmul.mubr.f32.gmra.mrb[0].mxu0 %v1154
    %v1274 = vpop.f32.mrb[0].mxu0
    %v1275 = vadd.f32 %v1127, %v1274
    %v1276 = vpop.f32.mrb[0].mxu0
    %1277 = vmatprep.mubr.f32.mxu0 0.0
    %1278 = vmatmul.mubr.f32.gmra.mrb[0].mxu0 %v1157
    %v1279 = vpop.f32.mrb[0].mxu0
    %v1280 = vadd.f32 %v1127, %v1279
    %v1281 = vpop.f32.mrb[0].mxu0
    %1282 = vmatprep.mubr.f32.mxu0 0.0
    %1283 = vmatmul.mubr.f32.gmra.mrb[0].mxu0 %v1160
    %v1284 = vpop.f32.mrb[0].mxu0
    %v1285 = vadd.f32 %v1127, %v1284
    %v1286 = vpop.f32.mrb[0].mxu0
    %1287 = vmatprep.mubr.f32.mxu0 0.0
    %1288 = vmatmul.mubr.f32.gmra.mrb[0].mxu0 %v1163
    %v1289 = vpop.f32.mrb[0].mxu0
    %v1290 = vadd.f32 %v1127, %v1289
    %v1291 = vpop.f32.mrb[0].mxu0
    %1292 = vmatprep.mubr.f32.mxu0 0.0
    %1293 = vmatmul.mubr.f32.gmra.mrb[0].mxu0 %v1166
    %v1294 = vpop.f32.mrb[0].mxu0
    %v1295 = vadd.f32 %v1127, %v1294
    %v1296 = vpop.f32.mrb[0].mxu0
    %1297 = vdwg.mxu0
    %v1298 = vmax.f32 %v1235, 0.0
    %v1299 = vmax.f32 %v1240, 0.0
    %v1300 = vmax.f32 %v1245, 0.0
    %v1301 = vmax.f32 %v1250, 0.0
    %v1302 = vmax.f32 %v1255, 0.0
    %v1303 = vmax.f32 %v1260, 0.0
    %v1304 = vmax.f32 %v1265, 0.0
    %v1305 = vmax.f32 %v1270, 0.0
    %v1306 = vmax.f32 %v1275, 0.0
    %v1307 = vmax.f32 %v1280, 0.0
    %v1308 = vmax.f32 %v1285, 0.0
    %v1309 = vmax.f32 %v1290, 0.0
    %v1310 = vmax.f32 %v1295, 0.0
    %1311 = vst.msk [vmem:[%s57] sm:$0xff] %vm906, %v1298
    %1312 = vst.msk [vmem:[%s57 + $0x8] sm:$0xff] %vm906, %v1299
    %1313 = vst.msk [vmem:[%s57 + $0x10] sm:$0xff] %vm906, %v1300
    %1314 = vst.msk [vmem:[%s57 + $0x18] sm:$0xff] %vm906, %v1301
    %1315 = vst.msk [vmem:[%s57 + $0x20] sm:$0xff] %vm906, %v1302
    %1316 = vst.msk [vmem:[%s57 + $0x28] sm:$0xff] %vm906, %v1303
    %1317 = vst.msk [vmem:[%s57 + $0x30] sm:$0xff] %vm906, %v1304
    %1318 = vst.msk [vmem:[%s57 + $0x38] sm:$0xff] %vm906, %v1305
    %1319 = vst.msk [vmem:[%s57 + $0x40] sm:$0xff] %vm906, %v1306
    %1320 = vst.msk [vmem:[%s57 + $0x48] sm:$0xff] %vm906, %v1307
    %1321 = vst.msk [vmem:[%s57 + $0x50] sm:$0xff] %vm906, %v1308
    %1322 = vst.msk [vmem:[%s57 + $0x58] sm:$0xff] %vm906, %v1309
    %1323 = vst.msk [vmem:[%s57 + $0x60] sm:$0xff] %vm906, %v1310
    %v1324 = vld [vmem:[%s9] sm:$0xff]
    %v1325 = vld [vmem:[%s9 + $0x8] sm:$0xff]
    %v1326 = vld [vmem:[%s9 + $0x10] sm:$0xff]
    %v1327 = vld [vmem:[%s9 + $0x18] sm:$0xff]
    %v1328 = vld [vmem:[%s9 + $0x20] sm:$0xff]
    %v1329 = vld [vmem:[%s9 + $0x28] sm:$0xff]
    %v1330 = vld [vmem:[%s9 + $0x30] sm:$0xff]
    %v1331 = vld [vmem:[%s9 + $0x38] sm:$0xf]
    %v1332 = vld [vmem:[%s43] sm:$0xff]
    %v1333 = vld [vmem:[%s43 + $0x8] sm:$0xff]
    %v1334 = vld [vmem:[%s43 + $0x10] sm:$0x1]
    %v1335 = vld [vmem:[#allocation15] sm:$0x1]
    %v1337 = vlaneseq
    %v1338 = vshrl.u32 %v1337, 7
    %v1339 = vsub.s32 0, %v1338
    %v1340 = vrot.slane %v1335, %v1339
    %v1343 = vsel %vm655, %v1324, 0
    %v1346 = vsel %vm655, %v1325, 0
    %v1349 = vsel %vm655, %v1326, 0
    %v1352 = vsel %vm655, %v1327, 0
    %v1355 = vsel %vm655, %v1328, 0
    %v1358 = vsel %vm655, %v1329, 0
    %v1361 = vsel %vm655, %v1330, 0
    %v1364 = vsel %vm655, %v1331, 0
    %v1367 = vsel %vm353, %v1334, 0
    %1369 = vmatprep.subr.mxu0 0.0
    %1370 = vmatpush1.msra.mxu0 %v1332
    %1371 = vmatprep.subr.mxu0 0.0
    %1372 = vmatpush1.msra.mxu0 %v1333
    %1373 = vmatprep.subr.mxu0 0.0
    %1374 = vmatpush1.msra.mxu0 %v1367
    %1375 = vmatprep.subr.mxu0 0.0
    %1376 = vmatpush1.msra.mxu0 0.0
    %1377 = vmatprep.subr.mxu0 0.0
    %1378 = vmatpush1.msra.mxu0 0.0
    %1379 = vmatprep.subr.mxu0 0.0
    %1380 = vmatpush1.msra.mxu0 0.0
    %1381 = vmatprep.subr.mxu0 0.0
    %1382 = vmatpush1.msra.mxu0 0.0
    %1383 = vmatprep.subr.mxu0 0.0
    %1384 = vmatpush1.msra.mxu0 0.0
    %1385 = vmatprep.subr.mxu0 0.0
    %1386 = vmatpush1.msra.mxu0 0.0
    %1387 = vmatprep.subr.mxu0 0.0
    %1388 = vmatpush1.msra.mxu0 0.0
    %1389 = vmatprep.subr.mxu0 0.0
    %1390 = vmatpush1.msra.mxu0 0.0
    %1391 = vmatprep.subr.mxu0 0.0
    %1392 = vmatpush1.msra.mxu0 0.0
    %1393 = vmatprep.subr.mxu0 0.0
    %1394 = vmatpush1.msra.mxu0 0.0
    %1395 = vmatprep.subr.mxu0 0.0
    %1396 = vmatpush1.msra.mxu0 0.0
    %1397 = vmatprep.subr.mxu0 0.0
    %1398 = vmatpush1.msra.mxu0 0.0
    %1399 = vmatprep.subr.mxu0 0.0
    %1400 = vmatpush1.msra.mxu0 0.0
    %1401 = vmatprep.subr.mxu0 0.0
    %1402 = vmatpush1.msra.mxu0 0.0
    %1403 = vmatprep.subr.mxu0 0.0
    %1404 = vmatpush1.msra.mxu0 0.0
    %1405 = vmatprep.subr.mxu0 0.0
    %1406 = vmatpush1.msra.mxu0 0.0
    %1407 = vmatprep.subr.mxu0 0.0
    %1408 = vmatpush1.msra.mxu0 0.0
    %1409 = vmatprep.subr.mxu0 0.0
    %1410 = vmatpush1.msra.mxu0 0.0
    %1411 = vmatprep.subr.mxu0 0.0
    %1412 = vmatpush1.msra.mxu0 0.0
    %1413 = vmatprep.subr.mxu0 0.0
    %1414 = vmatpush1.msra.mxu0 0.0
    %1415 = vmatprep.subr.mxu0 0.0
    %1416 = vmatpush1.msra.mxu0 0.0
    %1417 = vmatprep.subr.mxu0 0.0
    %1418 = vmatpush1.msra.mxu0 0.0
    %1419 = vmatprep.subr.mxu0 0.0
    %1420 = vmatpush1.msra.mxu0 0.0
    %1421 = vmatprep.subr.mxu0 0.0
    %1422 = vmatpush1.msra.mxu0 0.0
    %1423 = vmatprep.subr.mxu0 0.0
    %1424 = vmatpush1.msra.mxu0 0.0
    %1425 = vmatprep.subr.mxu0 0.0
    %1426 = vmatpush1.msra.mxu0 0.0
    %1427 = vmatprep.subr.mxu0 0.0
    %1428 = vmatpush1.msra.mxu0 0.0
    %1429 = vmatprep.subr.mxu0 0.0
    %1430 = vmatpush1.msra.mxu0 0.0
    %1431 = vmatprep.subr.mxu0 0.0
    %1432 = vmatpush1.msra.mxu0 0.0
    %1433 = vmatprep.mubr.f32.mxu0 0.0
    %1434 = vmatmul.mubr.f32.gmra.mrb[0].mxu0 %v1343
    %v1435 = vpop.f32.mrb[0].mxu0
    %v1436 = vadd.f32 %v1340, %v1435
    %v1437 = vpop.f32.mrb[0].mxu0
    %1438 = vmatprep.mubr.f32.mxu0 0.0
    %1439 = vmatmul.mubr.f32.gmra.mrb[0].mxu0 %v1346
    %v1440 = vpop.f32.mrb[0].mxu0
    %v1441 = vadd.f32 %v1340, %v1440
    %v1442 = vpop.f32.mrb[0].mxu0
    %1443 = vmatprep.mubr.f32.mxu0 0.0
    %1444 = vmatmul.mubr.f32.gmra.mrb[0].mxu0 %v1349
    %v1445 = vpop.f32.mrb[0].mxu0
    %v1446 = vadd.f32 %v1340, %v1445
    %v1447 = vpop.f32.mrb[0].mxu0
    %1448 = vmatprep.mubr.f32.mxu0 0.0
    %1449 = vmatmul.mubr.f32.gmra.mrb[0].mxu0 %v1352
    %v1450 = vpop.f32.mrb[0].mxu0
    %v1451 = vadd.f32 %v1340, %v1450
    %v1452 = vpop.f32.mrb[0].mxu0
    %1453 = vmatprep.mubr.f32.mxu0 0.0
    %1454 = vmatmul.mubr.f32.gmra.mrb[0].mxu0 %v1355
    %v1455 = vpop.f32.mrb[0].mxu0
    %v1456 = vadd.f32 %v1340, %v1455
    %v1457 = vpop.f32.mrb[0].mxu0
    %1458 = vmatprep.mubr.f32.mxu0 0.0
    %1459 = vmatmul.mubr.f32.gmra.mrb[0].mxu0 %v1358
    %v1460 = vpop.f32.mrb[0].mxu0
    %v1461 = vadd.f32 %v1340, %v1460
    %v1462 = vpop.f32.mrb[0].mxu0
    %1463 = vmatprep.mubr.f32.mxu0 0.0
    %1464 = vmatmul.mubr.f32.gmra.mrb[0].mxu0 %v1361
    %v1465 = vpop.f32.mrb[0].mxu0
    %v1466 = vadd.f32 %v1340, %v1465
    %v1467 = vpop.f32.mrb[0].mxu0
    %1468 = vmatprep.mubr.f32.mxu0 0.0
    %1469 = vmatmul.mubr.f32.gmra.mrb[0].mxu0 %v1364
    %v1470 = vpop.f32.mrb[0].mxu0
    %v1471 = vadd.f32 %v1340, %v1470
    %v1472 = vpop.f32.mrb[0].mxu0
    %1473 = vdwg.mxu0
    %v1474 = vmax.f32 %v1436, 0.0
    %v1475 = vmax.f32 %v1441, 0.0
    %v1476 = vmax.f32 %v1446, 0.0
    %v1477 = vmax.f32 %v1451, 0.0
    %v1478 = vmax.f32 %v1456, 0.0
    %v1479 = vmax.f32 %v1461, 0.0
    %v1480 = vmax.f32 %v1466, 0.0
    %v1481 = vmax.f32 %v1471, 0.0
    %v1482 = vld [vmem:[%s47] sm:$0xff]
    %v1483 = vld [vmem:[#allocation16] sm:$0x1]
    %v1485 = vlaneseq
    %v1486 = vshrl.u32 %v1485, 7
    %v1487 = vsub.s32 0, %v1486
    %v1488 = vrot.slane %v1483, %v1487
    %v1491 = vsel %vm786, %v1474, 0
    %v1494 = vsel %vm786, %v1475, 0
    %v1497 = vsel %vm786, %v1476, 0
    %v1500 = vsel %vm786, %v1477, 0
    %v1503 = vsel %vm786, %v1478, 0
    %v1506 = vsel %vm786, %v1479, 0
    %v1509 = vsel %vm786, %v1480, 0
    %v1512 = vsel %vm786, %v1481, 0
    %1514 = vmatprep.subr.mxu0 0.0
    %1515 = vmatpush1.msra.mxu0 %v1482
    %1516 = vmatprep.subr.mxu0 0.0
    %1517 = vmatpush1.msra.mxu0 0.0
    %1518 = vmatprep.subr.mxu0 0.0
    %1519 = vmatpush1.msra.mxu0 0.0
    %1520 = vmatprep.subr.mxu0 0.0
    %1521 = vmatpush1.msra.mxu0 0.0
    %1522 = vmatprep.subr.mxu0 0.0
    %1523 = vmatpush1.msra.mxu0 0.0
    %1524 = vmatprep.subr.mxu0 0.0
    %1525 = vmatpush1.msra.mxu0 0.0
    %1526 = vmatprep.subr.mxu0 0.0
    %1527 = vmatpush1.msra.mxu0 0.0
    %1528 = vmatprep.subr.mxu0 0.0
    %1529 = vmatpush1.msra.mxu0 0.0
    %1530 = vmatprep.subr.mxu0 0.0
    %1531 = vmatpush1.msra.mxu0 0.0
    %1532 = vmatprep.subr.mxu0 0.0
    %1533 = vmatpush1.msra.mxu0 0.0
    %1534 = vmatprep.subr.mxu0 0.0
    %1535 = vmatpush1.msra.mxu0 0.0
    %1536 = vmatprep.subr.mxu0 0.0
    %1537 = vmatpush1.msra.mxu0 0.0
    %1538 = vmatprep.subr.mxu0 0.0
    %1539 = vmatpush1.msra.mxu0 0.0
    %1540 = vmatprep.subr.mxu0 0.0
    %1541 = vmatpush1.msra.mxu0 0.0
    %1542 = vmatprep.subr.mxu0 0.0
    %1543 = vmatpush1.msra.mxu0 0.0
    %1544 = vmatprep.subr.mxu0 0.0
    %1545 = vmatpush1.msra.mxu0 0.0
    %1546 = vmatprep.subr.mxu0 0.0
    %1547 = vmatpush1.msra.mxu0 0.0
    %1548 = vmatprep.subr.mxu0 0.0
    %1549 = vmatpush1.msra.mxu0 0.0
    %1550 = vmatprep.subr.mxu0 0.0
    %1551 = vmatpush1.msra.mxu0 0.0
    %1552 = vmatprep.subr.mxu0 0.0
    %1553 = vmatpush1.msra.mxu0 0.0
    %1554 = vmatprep.subr.mxu0 0.0
    %1555 = vmatpush1.msra.mxu0 0.0
    %1556 = vmatprep.subr.mxu0 0.0
    %1557 = vmatpush1.msra.mxu0 0.0
    %1558 = vmatprep.subr.mxu0 0.0
    %1559 = vmatpush1.msra.mxu0 0.0
    %1560 = vmatprep.subr.mxu0 0.0
    %1561 = vmatpush1.msra.mxu0 0.0
    %1562 = vmatprep.subr.mxu0 0.0
    %1563 = vmatpush1.msra.mxu0 0.0
    %1564 = vmatprep.subr.mxu0 0.0
    %1565 = vmatpush1.msra.mxu0 0.0
    %1566 = vmatprep.subr.mxu0 0.0
    %1567 = vmatpush1.msra.mxu0 0.0
    %1568 = vmatprep.subr.mxu0 0.0
    %1569 = vmatpush1.msra.mxu0 0.0
    %1570 = vmatprep.subr.mxu0 0.0
    %1571 = vmatpush1.msra.mxu0 0.0
    %1572 = vmatprep.subr.mxu0 0.0
    %1573 = vmatpush1.msra.mxu0 0.0
    %1574 = vmatprep.subr.mxu0 0.0
    %1575 = vmatpush1.msra.mxu0 0.0
    %1576 = vmatprep.subr.mxu0 0.0
    %1577 = vmatpush1.msra.mxu0 0.0
    %1578 = vmatprep.mubr.f32.mxu0 0.0
    %1579 = vmatmul.mubr.f32.gmra.mrb[0].mxu0 %v1491
    %v1580 = vpop.f32.mrb[0].mxu0
    %v1581 = vadd.f32 %v1488, %v1580
    %v1582 = vpop.f32.mrb[0].mxu0
    %1583 = vmatprep.mubr.f32.mxu0 0.0
    %1584 = vmatmul.mubr.f32.gmra.mrb[0].mxu0 %v1494
    %v1585 = vpop.f32.mrb[0].mxu0
    %v1586 = vadd.f32 %v1488, %v1585
    %v1587 = vpop.f32.mrb[0].mxu0
    %1588 = vmatprep.mubr.f32.mxu0 0.0
    %1589 = vmatmul.mubr.f32.gmra.mrb[0].mxu0 %v1497
    %v1590 = vpop.f32.mrb[0].mxu0
    %v1591 = vadd.f32 %v1488, %v1590
    %v1592 = vpop.f32.mrb[0].mxu0
    %1593 = vmatprep.mubr.f32.mxu0 0.0
    %1594 = vmatmul.mubr.f32.gmra.mrb[0].mxu0 %v1500
    %v1595 = vpop.f32.mrb[0].mxu0
    %v1596 = vadd.f32 %v1488, %v1595
    %v1597 = vpop.f32.mrb[0].mxu0
    %1598 = vmatprep.mubr.f32.mxu0 0.0
    %1599 = vmatmul.mubr.f32.gmra.mrb[0].mxu0 %v1503
    %v1600 = vpop.f32.mrb[0].mxu0
    %v1601 = vadd.f32 %v1488, %v1600
    %v1602 = vpop.f32.mrb[0].mxu0
    %1603 = vmatprep.mubr.f32.mxu0 0.0
    %1604 = vmatmul.mubr.f32.gmra.mrb[0].mxu0 %v1506
    %v1605 = vpop.f32.mrb[0].mxu0
    %v1606 = vadd.f32 %v1488, %v1605
    %v1607 = vpop.f32.mrb[0].mxu0
    %1608 = vmatprep.mubr.f32.mxu0 0.0
    %1609 = vmatmul.mubr.f32.gmra.mrb[0].mxu0 %v1509
    %v1610 = vpop.f32.mrb[0].mxu0
    %v1611 = vadd.f32 %v1488, %v1610
    %v1612 = vpop.f32.mrb[0].mxu0
    %1613 = vmatprep.mubr.f32.mxu0 0.0
    %1614 = vmatmul.mubr.f32.gmra.mrb[0].mxu0 %v1512
    %v1615 = vpop.f32.mrb[0].mxu0
    %v1616 = vadd.f32 %v1488, %v1615
    %v1617 = vpop.f32.mrb[0].mxu0
    %1618 = vdwg.mxu0
    %v1619 = vmax.f32 %v1581, 0.0
    %v1620 = vmax.f32 %v1586, 0.0
    %v1621 = vmax.f32 %v1591, 0.0
    %v1622 = vmax.f32 %v1596, 0.0
    %v1623 = vmax.f32 %v1601, 0.0
    %v1624 = vmax.f32 %v1606, 0.0
    %v1625 = vmax.f32 %v1611, 0.0
    %v1626 = vmax.f32 %v1616, 0.0
    %1627 = vst.msk [vmem:[%s59] sm:$0xff] %vm906, %v1619
    %1628 = vst.msk [vmem:[%s59 + $0x8] sm:$0xff] %vm906, %v1620
    %1629 = vst.msk [vmem:[%s59 + $0x10] sm:$0xff] %vm906, %v1621
    %1630 = vst.msk [vmem:[%s59 + $0x18] sm:$0xff] %vm906, %v1622
    %1631 = vst.msk [vmem:[%s59 + $0x20] sm:$0xff] %vm906, %v1623
    %1632 = vst.msk [vmem:[%s59 + $0x28] sm:$0xff] %vm906, %v1624
    %1633 = vst.msk [vmem:[%s59 + $0x30] sm:$0xff] %vm906, %v1625
    %vm1634 = vcmask 27648
    %1635 = vst.msk [vmem:[%s59 + $0x38] sm:$0xf] %vm1634, %v1626
    // Predicated region
    $region142: #{agent_forward.2} parent=1 // pred_check
      _
    $region143: #{agent_forward.2} parent=1 // pred_check_branch
      %1637 = sbr.rel (0) target = $region145
    $region144: #{agent_forward.2} parent=1 // pred_region
      _
    $region145: #{agent_forward.2} parent=1 // pred_fallthru
      _
    // Predicated region
    $region146: #{agent_forward.2} parent=1 // pred_check
      _
    $region147: #{agent_forward.2} parent=1 // pred_check_branch
      %1639 = sbr.rel (0) target = $region149
    $region148: #{agent_forward.2} parent=1 // pred_region
      _
    $region149: #{agent_forward.2} parent=1 // pred_fallthru
      _
    // Predicated region
    $region150: #{agent_forward.2} parent=1 // pred_check
      _
    $region151: #{agent_forward.2} parent=1 // pred_check_branch
      %1641 = sbr.rel (0) target = $region153
    $region152: #{agent_forward.2} parent=1 // pred_region
      _
    $region153: #{agent_forward.2} parent=1 // pred_fallthru
      _
    // Predicated region
    $region154: #{agent_forward.2} parent=1 // pred_check
      _
    $region155: #{agent_forward.2} parent=1 // pred_check_branch
      %1643 = sbr.rel (0) target = $region157
    $region156: #{agent_forward.2} parent=1 // pred_region
      _
    $region157: #{agent_forward.2} parent=1 // pred_fallthru
      _
    // Predicated region
    $region158: #{agent_forward.2} parent=1 // pred_check
      _
    $region159: #{agent_forward.2} parent=1 // pred_check_branch
      %1645 = sbr.rel (0) target = $region161
    $region160: #{agent_forward.2} parent=1 // pred_region
      _
    $region161: #{agent_forward.2} parent=1 // pred_fallthru
      _
    // Predicated region
    $region162: #{agent_forward.2} parent=1 // pred_check
      _
    $region163: #{agent_forward.2} parent=1 // pred_check_branch
      %1647 = sbr.rel (0) target = $region165
    $region164: #{agent_forward.2} parent=1 // pred_region
      _
    $region165: #{agent_forward.2} parent=1 // pred_fallthru
      _
    // Predicated region
    $region166: #{agent_forward.2} parent=1 // pred_check
      _
    $region167: #{agent_forward.2} parent=1 // pred_check_branch
      %1649 = sbr.rel (0) target = $region169
    $region168: #{agent_forward.2} parent=1 // pred_region
      _
    $region169: #{agent_forward.2} parent=1 // pred_fallthru
      _
    // Predicated region
    $region170: #{agent_forward.2} parent=1 // pred_check
      _
    $region171: #{agent_forward.2} parent=1 // pred_check_branch
      %1651 = sbr.rel (0) target = $region173
    $region172: #{agent_forward.2} parent=1 // pred_region
      _
    $region173: #{agent_forward.2} parent=1 // pred_fallthru
      _
    // Predicated region
    $region174: #{agent_forward.2} parent=1 // pred_check
      _
    $region175: #{agent_forward.2} parent=1 // pred_check_branch
      %1653 = sbr.rel (0) target = $region177
    $region176: #{agent_forward.2} parent=1 // pred_region
      _
    $region177: #{agent_forward.2} parent=1 // pred_fallthru
      _
    // Predicated region
    $region178: #{agent_forward.2} parent=1 // pred_check
      _
    $region179: #{agent_forward.2} parent=1 // pred_check_branch
      %1655 = sbr.rel (0) target = $region181
    $region180: #{agent_forward.2} parent=1 // pred_region
      _
    $region181: #{agent_forward.2} parent=1 // pred_fallthru
      _
    %1656 = vsyncpa [#allocation3], 1
    %1657 = vsyncpa [#allocation5], 1
    %1658 = vsyncpa [#allocation8], 1
    %1659 = vsyncpa [#allocation11], 1
    %1660 = vsyncpa [#allocation14], 1
    %1661 = vsyncpa [#allocation17], 1

// kernel: agent_forward.3
$region0: #{agent_forward.3}
  #allocation0 [shape = 'u32[]', space=smem, size = 0x4, offset = 0x4, fixed_abs, tag = 'smem constant byte address 0x4 - core index']
  #allocation1 [shape = 'u32[144,128]{1,0:T(1,128)}', space=vmem, size = 0x12000, scoped, tag = 'internal scratch']
  #allocation2 [shape = 'f32[2,512]{1,0:T(2,128)}', space=vmem, size = 0x1000, scoped, tag = 'scratch operand']
  #allocation3 [shape = 'f32[1,1]{1,0:T(1,128)S(1)}', space=vmem, size = 0x200, scoped, tag = 'scoped memory for agent_forward.3']
  %s0 = inlined_call_operand.vmem [shape: f32[2,96], index: 0, kind: input, shape index: {}]
  %s1 = inlined_call_operand.vmem [shape: f32[2,162], index: 1, kind: input, shape index: {}]
  %s2 = inlined_call_operand.vmem [shape: f32[2,328], index: 2, kind: input, shape index: {}]
  %s3 = inlined_call_operand.vmem [shape: f32[96,48], index: 3, kind: input, shape index: {}]
  %s4 = inlined_call_operand.hbm [shape: f32[1,48], index: 4, kind: input, shape index: {}]
  %s5 = inlined_call_operand.hbm [shape: f32[48,96], index: 5, kind: input, shape index: {}]
  %s6 = inlined_call_operand.hbm [shape: f32[1,96], index: 6, kind: input, shape index: {}]
  %s7 = inlined_call_operand.vmem [shape: f32[162,512], index: 7, kind: input, shape index: {}]
  %s8 = inlined_call_operand.vmem [shape: f32[96,512], index: 8, kind: input, shape index: {}]
  %s9 = inlined_call_operand.vmem [shape: f32[328,512], index: 9, kind: input, shape index: {}]
  %s10 = inlined_call_operand.vmem [shape: f32[128,512], index: 10, kind: input, shape index: {}]
  %s11 = inlined_call_operand.hbm [shape: f32[1,512], index: 11, kind: input, shape index: {}]
  %s12 = inlined_call_operand.vmem [shape: f32[128,1], index: 12, kind: input, shape index: {}]
  %s13 = inlined_call_operand.<no memory space> [shape: f32[1,1], index: 13, kind: input, shape index: {}]
  %s14 = inlined_call_operand.vmem [shape: f32[2,1], index: 14, kind: output, shape index: {}]
  %s15 = sld [smem:[#allocation0]]
  $region82: #{agent_forward.3} parent=0
    _
  %s17 = ssub.s32 1, %s15
  %s18 = scalar_select 0, %s17, %s15
  %v19 = vstv %s13
  %20 = vst [vmem:[#allocation3] sm:$0x1] %v19
  $region1: #{agent_forward.3} parent=0
    #allocation4 [shape = 'u8[512]{0}', space=vmem, size = 0x400, scoped, tag = 'input window, operand 4, single buffered']
    #allocation5 [shape = 's32[1]{0}', space=sflag, size = 0x4, scoped, tag = 'scoped memory for agent_forward.3']
    #allocation6 [shape = 'u8[24576]{0}', space=vmem, size = 0x6000, scoped, tag = 'input window, operand 5, single buffered']
    #allocation7 [shape = 's32[1]{0}', space=sflag, size = 0x4, scoped, tag = 'scoped memory for agent_forward.3']
    #allocation8 [shape = 'u8[512]{0}', space=vmem, size = 0x400, scoped, tag = 'input window, operand 6, single buffered']
    #allocation9 [shape = 'u8[2048]{0}', space=vmem, size = 0x800, scoped, tag = 'input window, operand 11, single buffered']
    #allocation10 [shape = 's32[1]{0}', space=sflag, size = 0x4, scoped, tag = 'scoped memory for agent_forward.3']
    %21 = vsyncpa [#allocation5], 0
    %22 = vsyncpa [#allocation7], 0
    %23 = vsyncpa [#allocation10], 0
    // Predicated region
    $region2: #{agent_forward.3} parent=1 // pred_check
      _
    $region3: #{agent_forward.3} parent=1 // pred_check_branch
      %25 = sbr.rel (0) target = $region5
    $region4: #{agent_forward.3} parent=1 // pred_region
      _
    $region5: #{agent_forward.3} parent=1 // pred_fallthru
      _
    // Predicated region
    $region6: #{agent_forward.3} parent=1 // pred_check
      _
    $region7: #{agent_forward.3} parent=1 // pred_check_branch
      %27 = sbr.rel (0) target = $region9
    $region8: #{agent_forward.3} parent=1 // pred_region
      _
    $region9: #{agent_forward.3} parent=1 // pred_fallthru
      _
    // Predicated region
    $region10: #{agent_forward.3} parent=1 // pred_check
      _
    $region11: #{agent_forward.3} parent=1 // pred_check_branch
      %29 = sbr.rel (0) target = $region13
    $region12: #{agent_forward.3} parent=1 // pred_region
      _
    $region13: #{agent_forward.3} parent=1 // pred_fallthru
      _
    // Predicated region
    $region14: #{agent_forward.3} parent=1 // pred_check
      _
    $region15: #{agent_forward.3} parent=1 // pred_check_branch
      %31 = sbr.rel (0) target = $region17
    $region16: #{agent_forward.3} parent=1 // pred_region
      _
    $region17: #{agent_forward.3} parent=1 // pred_fallthru
      _
    // Predicated region
    $region18: #{agent_forward.3} parent=1 // pred_check
      _
    $region19: #{agent_forward.3} parent=1 // pred_check_branch
      %33 = sbr.rel (0) target = $region21
    $region20: #{agent_forward.3} parent=1 // pred_region
      %s35 = ssub.s32 16, 16
      %36 = vsyncadd [#allocation5], %s35
      %s38 = sshll.u32 [#allocation4], 4
      %s39 = int_to_ptr.vmem [resolvable:$true] %s38
      %41 = dma.hbm_to_vmem [thread:$0]  %s4, 16, %s39, [#allocation5]
    $region21: #{agent_forward.3} parent=1 // pred_fallthru
      _
    // Predicated region
    $region22: #{agent_forward.3} parent=1 // pred_check
      _
    $region23: #{agent_forward.3} parent=1 // pred_check_branch
      %43 = sbr.rel (0) target = $region25
    $region24: #{agent_forward.3} parent=1 // pred_region
      %s45 = ssub.s32 768, 768
      %46 = vsyncadd [#allocation7], %s45
      %s47 = sshll.u32 [#allocation6], 4
      %s48 = int_to_ptr.vmem [resolvable:$true] %s47
      %53 = dma.hbm_to_vmem [thread:$0]  %s5, 768, %s48, [#allocation7], 128, 128, 8
    $region25: #{agent_forward.3} parent=1 // pred_fallthru
      _
    // Predicated region
    $region26: #{agent_forward.3} parent=1 // pred_check
      _
    $region27: #{agent_forward.3} parent=1 // pred_check_branch
      %55 = sbr.rel (0) target = $region29
    $region28: #{agent_forward.3} parent=1 // pred_region
      %s57 = ssub.s32 16, 16
      %58 = vsyncadd [#allocation7], %s57
      %s60 = sshll.u32 [#allocation8], 4
      %s61 = int_to_ptr.vmem [resolvable:$true] %s60
      %63 = dma.hbm_to_vmem [thread:$0]  %s6, 16, %s61, [#allocation7]
    $region29: #{agent_forward.3} parent=1 // pred_fallthru
      _
    // Predicated region
    $region30: #{agent_forward.3} parent=1 // pred_check
      _
    $region31: #{agent_forward.3} parent=1 // pred_check_branch
      %65 = sbr.rel (0) target = $region33
    $region32: #{agent_forward.3} parent=1 // pred_region
      _
    $region33: #{agent_forward.3} parent=1 // pred_fallthru
      _
    // Predicated region
    $region34: #{agent_forward.3} parent=1 // pred_check
      _
    $region35: #{agent_forward.3} parent=1 // pred_check_branch
      %67 = sbr.rel (0) target = $region37
    $region36: #{agent_forward.3} parent=1 // pred_region
      _
    $region37: #{agent_forward.3} parent=1 // pred_fallthru
      _
    // Predicated region
    $region38: #{agent_forward.3} parent=1 // pred_check
      _
    $region39: #{agent_forward.3} parent=1 // pred_check_branch
      %69 = sbr.rel (0) target = $region41
    $region40: #{agent_forward.3} parent=1 // pred_region
      _
    $region41: #{agent_forward.3} parent=1 // pred_fallthru
      _
    // Predicated region
    $region42: #{agent_forward.3} parent=1 // pred_check
      _
    $region43: #{agent_forward.3} parent=1 // pred_check_branch
      %71 = sbr.rel (0) target = $region45
    $region44: #{agent_forward.3} parent=1 // pred_region
      _
    $region45: #{agent_forward.3} parent=1 // pred_fallthru
      _
    // Predicated region
    $region46: #{agent_forward.3} parent=1 // pred_check
      _
    $region47: #{agent_forward.3} parent=1 // pred_check_branch
      %73 = sbr.rel (0) target = $region49
    $region48: #{agent_forward.3} parent=1 // pred_region
      %s75 = ssub.s32 64, 64
      %76 = vsyncadd [#allocation10], %s75
      %s78 = sshll.u32 [#allocation9], 4
      %s79 = int_to_ptr.vmem [resolvable:$true] %s78
      %81 = dma.hbm_to_vmem [thread:$0]  %s11, 64, %s79, [#allocation10]
    $region49: #{agent_forward.3} parent=1 // pred_fallthru
      _
    // Predicated region
    $region50: #{agent_forward.3} parent=1 // pred_check
      _
    $region51: #{agent_forward.3} parent=1 // pred_check_branch
      %83 = sbr.rel (0) target = $region53
    $region52: #{agent_forward.3} parent=1 // pred_region
      _
    $region53: #{agent_forward.3} parent=1 // pred_fallthru
      _
    // Predicated region
    $region54: #{agent_forward.3} parent=1 // pred_check
      _
    $region55: #{agent_forward.3} parent=1 // pred_check_branch
      %85 = sbr.rel (0) target = $region57
    $region56: #{agent_forward.3} parent=1 // pred_region
      _
    $region57: #{agent_forward.3} parent=1 // pred_fallthru
      _
    // Predicated region
    $region58: #{agent_forward.3} parent=1 // pred_check
      _
    $region59: #{agent_forward.3} parent=1 // pred_check_branch
      %87 = sbr.rel (0) target = $region61
    $region60: #{agent_forward.3} parent=1 // pred_region
      %88 = dma.done [#allocation5], 16
    $region61: #{agent_forward.3} parent=1 // pred_fallthru
      _
    // Predicated region
    $region62: #{agent_forward.3} parent=1 // pred_check
      _
    $region63: #{agent_forward.3} parent=1 // pred_check_branch
      %90 = sbr.rel (0) target = $region65
    $region64: #{agent_forward.3} parent=1 // pred_region
      %91 = dma.done [#allocation7], 768
    $region65: #{agent_forward.3} parent=1 // pred_fallthru
      _
    // Predicated region
    $region66: #{agent_forward.3} parent=1 // pred_check
      _
    $region67: #{agent_forward.3} parent=1 // pred_check_branch
      %93 = sbr.rel (0) target = $region69
    $region68: #{agent_forward.3} parent=1 // pred_region
      %94 = dma.done [#allocation7], 16
    $region69: #{agent_forward.3} parent=1 // pred_fallthru
      _
    // Predicated region
    $region70: #{agent_forward.3} parent=1 // pred_check
      _
    $region71: #{agent_forward.3} parent=1 // pred_check_branch
      %96 = sbr.rel (0) target = $region73
    $region72: #{agent_forward.3} parent=1 // pred_region
      %97 = dma.done [#allocation10], 64
    $region73: #{agent_forward.3} parent=1 // pred_fallthru
      _
    %v98 = vld [vmem:[%s0] sm:$0x3]
    %v99 = vld [vmem:[%s3] sm:$0xff]
    %v100 = vld [vmem:[%s3 + $0x8] sm:$0xff]
    %v101 = vld [vmem:[%s3 + $0x10] sm:$0xff]
    %v102 = vld [vmem:[%s3 + $0x18] sm:$0xff]
    %v103 = vld [vmem:[%s3 + $0x20] sm:$0xff]
    %v104 = vld [vmem:[%s3 + $0x28] sm:$0xff]
    %v105 = vld [vmem:[%s3 + $0x30] sm:$0xff]
    %v106 = vld [vmem:[%s3 + $0x38] sm:$0xff]
    %v107 = vld [vmem:[%s3 + $0x40] sm:$0xff]
    %v108 = vld [vmem:[%s3 + $0x48] sm:$0xff]
    %v109 = vld [vmem:[%s3 + $0x50] sm:$0xff]
    %v110 = vld [vmem:[%s3 + $0x58] sm:$0xff]
    %v111 = vld [vmem:[#allocation4] sm:$0x1]
    %v113 = vlaneseq
    %v114 = vshrl.u32 %v113, 7
    %v115 = vsub.s32 0, %v114
    %v116 = vrot.slane %v111, %v115
    %vm118 = vcmask 785408
    %v120 = vsel %vm118, %v98, 0
    %122 = vmatprep.subr.mxu0 0.0
    %123 = vmatpush1.msra.mxu0 %v99
    %124 = vmatprep.subr.mxu0 0.0
    %125 = vmatpush1.msra.mxu0 %v100
    %126 = vmatprep.subr.mxu0 0.0
    %127 = vmatpush1.msra.mxu0 %v101
    %128 = vmatprep.subr.mxu0 0.0
    %129 = vmatpush1.msra.mxu0 %v102
    %130 = vmatprep.subr.mxu0 0.0
    %131 = vmatpush1.msra.mxu0 %v103
    %132 = vmatprep.subr.mxu0 0.0
    %133 = vmatpush1.msra.mxu0 %v104
    %134 = vmatprep.subr.mxu0 0.0
    %135 = vmatpush1.msra.mxu0 %v105
    %136 = vmatprep.subr.mxu0 0.0
    %137 = vmatpush1.msra.mxu0 %v106
    %138 = vmatprep.subr.mxu0 0.0
    %139 = vmatpush1.msra.mxu0 %v107
    %140 = vmatprep.subr.mxu0 0.0
    %141 = vmatpush1.msra.mxu0 %v108
    %142 = vmatprep.subr.mxu0 0.0
    %143 = vmatpush1.msra.mxu0 %v109
    %144 = vmatprep.subr.mxu0 0.0
    %145 = vmatpush1.msra.mxu0 %v110
    %146 = vmatprep.subr.mxu0 0.0
    %147 = vmatpush1.msra.mxu0 0.0
    %148 = vmatprep.subr.mxu0 0.0
    %149 = vmatpush1.msra.mxu0 0.0
    %150 = vmatprep.subr.mxu0 0.0
    %151 = vmatpush1.msra.mxu0 0.0
    %152 = vmatprep.subr.mxu0 0.0
    %153 = vmatpush1.msra.mxu0 0.0
    %154 = vmatprep.subr.mxu0 0.0
    %155 = vmatpush1.msra.mxu0 0.0
    %156 = vmatprep.subr.mxu0 0.0
    %157 = vmatpush1.msra.mxu0 0.0
    %158 = vmatprep.subr.mxu0 0.0
    %159 = vmatpush1.msra.mxu0 0.0
    %160 = vmatprep.subr.mxu0 0.0
    %161 = vmatpush1.msra.mxu0 0.0
    %162 = vmatprep.subr.mxu0 0.0
    %163 = vmatpush1.msra.mxu0 0.0
    %164 = vmatprep.subr.mxu0 0.0
    %165 = vmatpush1.msra.mxu0 0.0
    %166 = vmatprep.subr.mxu0 0.0
    %167 = vmatpush1.msra.mxu0 0.0
    %168 = vmatprep.subr.mxu0 0.0
    %169 = vmatpush1.msra.mxu0 0.0
    %170 = vmatprep.subr.mxu0 0.0
    %171 = vmatpush1.msra.mxu0 0.0
    %172 = vmatprep.subr.mxu0 0.0
    %173 = vmatpush1.msra.mxu0 0.0
    %174 = vmatprep.subr.mxu0 0.0
    %175 = vmatpush1.msra.mxu0 0.0
    %176 = vmatprep.subr.mxu0 0.0
    %177 = vmatpush1.msra.mxu0 0.0
    %178 = vmatprep.subr.mxu0 0.0
    %179 = vmatpush1.msra.mxu0 0.0
    %180 = vmatprep.subr.mxu0 0.0
    %181 = vmatpush1.msra.mxu0 0.0
    %182 = vmatprep.subr.mxu0 0.0
    %183 = vmatpush1.msra.mxu0 0.0
    %184 = vmatprep.subr.mxu0 0.0
    %185 = vmatpush1.msra.mxu0 0.0
    %186 = vmatprep.mubr.f32.mxu0 0.0
    %187 = vmatmul.mubr.f32.gmra.mrb[0].mxu0 %v120
    %v188 = vpop.f32.mrb[0].mxu0
    %v189 = vadd.f32 %v116, %v188
    %v190 = vpop.f32.mrb[0].mxu0
    %191 = vdwg.mxu0
    %v192 = vmax.f32 %v189, 0.0
    %v193 = vld [vmem:[#allocation6] sm:$0xff]
    %v194 = vld [vmem:[#allocation6 + $0x8] sm:$0xff]
    %v195 = vld [vmem:[#allocation6 + $0x10] sm:$0xff]
    %v196 = vld [vmem:[#allocation6 + $0x18] sm:$0xff]
    %v197 = vld [vmem:[#allocation6 + $0x20] sm:$0xff]
    %v198 = vld [vmem:[#allocation6 + $0x28] sm:$0xff]
    %v199 = vld [vmem:[#allocation8] sm:$0x1]
    %v201 = vlaneseq
    %v202 = vshrl.u32 %v201, 7
    %v203 = vsub.s32 0, %v202
    %v204 = vrot.slane %v199, %v203
    %vm206 = vcmask 392192
    %v208 = vsel %vm206, %v192, 0
    %210 = vmatprep.subr.mxu0 0.0
    %211 = vmatpush1.msra.mxu0 %v193
    %212 = vmatprep.subr.mxu0 0.0
    %213 = vmatpush1.msra.mxu0 %v194
    %214 = vmatprep.subr.mxu0 0.0
    %215 = vmatpush1.msra.mxu0 %v195
    %216 = vmatprep.subr.mxu0 0.0
    %217 = vmatpush1.msra.mxu0 %v196
    %218 = vmatprep.subr.mxu0 0.0
    %219 = vmatpush1.msra.mxu0 %v197
    %220 = vmatprep.subr.mxu0 0.0
    %221 = vmatpush1.msra.mxu0 %v198
    %222 = vmatprep.subr.mxu0 0.0
    %223 = vmatpush1.msra.mxu0 0.0
    %224 = vmatprep.subr.mxu0 0.0
    %225 = vmatpush1.msra.mxu0 0.0
    %226 = vmatprep.subr.mxu0 0.0
    %227 = vmatpush1.msra.mxu0 0.0
    %228 = vmatprep.subr.mxu0 0.0
    %229 = vmatpush1.msra.mxu0 0.0
    %230 = vmatprep.subr.mxu0 0.0
    %231 = vmatpush1.msra.mxu0 0.0
    %232 = vmatprep.subr.mxu0 0.0
    %233 = vmatpush1.msra.mxu0 0.0
    %234 = vmatprep.subr.mxu0 0.0
    %235 = vmatpush1.msra.mxu0 0.0
    %236 = vmatprep.subr.mxu0 0.0
    %237 = vmatpush1.msra.mxu0 0.0
    %238 = vmatprep.subr.mxu0 0.0
    %239 = vmatpush1.msra.mxu0 0.0
    %240 = vmatprep.subr.mxu0 0.0
    %241 = vmatpush1.msra.mxu0 0.0
    %242 = vmatprep.subr.mxu0 0.0
    %243 = vmatpush1.msra.mxu0 0.0
    %244 = vmatprep.subr.mxu0 0.0
    %245 = vmatpush1.msra.mxu0 0.0
    %246 = vmatprep.subr.mxu0 0.0
    %247 = vmatpush1.msra.mxu0 0.0
    %248 = vmatprep.subr.mxu0 0.0
    %249 = vmatpush1.msra.mxu0 0.0
    %250 = vmatprep.subr.mxu0 0.0
    %251 = vmatpush1.msra.mxu0 0.0
    %252 = vmatprep.subr.mxu0 0.0
    %253 = vmatpush1.msra.mxu0 0.0
    %254 = vmatprep.subr.mxu0 0.0
    %255 = vmatpush1.msra.mxu0 0.0
    %256 = vmatprep.subr.mxu0 0.0
    %257 = vmatpush1.msra.mxu0 0.0
    %258 = vmatprep.subr.mxu0 0.0
    %259 = vmatpush1.msra.mxu0 0.0
    %260 = vmatprep.subr.mxu0 0.0
    %261 = vmatpush1.msra.mxu0 0.0
    %262 = vmatprep.subr.mxu0 0.0
    %263 = vmatpush1.msra.mxu0 0.0
    %264 = vmatprep.subr.mxu0 0.0
    %265 = vmatpush1.msra.mxu0 0.0
    %266 = vmatprep.subr.mxu0 0.0
    %267 = vmatpush1.msra.mxu0 0.0
    %268 = vmatprep.subr.mxu0 0.0
    %269 = vmatpush1.msra.mxu0 0.0
    %270 = vmatprep.subr.mxu0 0.0
    %271 = vmatpush1.msra.mxu0 0.0
    %272 = vmatprep.subr.mxu0 0.0
    %273 = vmatpush1.msra.mxu0 0.0
    %274 = vmatprep.mubr.f32.mxu0 0.0
    %275 = vmatmul.mubr.f32.gmra.mrb[0].mxu0 %v208
    %v276 = vpop.f32.mrb[0].mxu0
    %v277 = vadd.f32 %v204, %v276
    %v278 = vpop.f32.mrb[0].mxu0
    %279 = vdwg.mxu0
    %v280 = vld [vmem:[%s1] sm:$0xf]
    %v281 = vld [vmem:[%s7] sm:$0xff]
    %v282 = vld [vmem:[%s7 + $0x8] sm:$0xff]
    %v283 = vld [vmem:[%s7 + $0x10] sm:$0xff]
    %v284 = vld [vmem:[%s7 + $0x18] sm:$0xff]
    %v285 = vld [vmem:[%s7 + $0x20] sm:$0xff]
    %v286 = vld [vmem:[%s7 + $0x28] sm:$0xff]
    %v287 = vld [vmem:[%s7 + $0x30] sm:$0xff]
    %v288 = vld [vmem:[%s7 + $0x38] sm:$0xff]
    %v289 = vld [vmem:[%s7 + $0x40] sm:$0xff]
    %v290 = vld [vmem:[%s7 + $0x48] sm:$0xff]
    %v291 = vld [vmem:[%s7 + $0x50] sm:$0xff]
    %v292 = vld [vmem:[%s7 + $0x58] sm:$0xff]
    %v293 = vld [vmem:[%s7 + $0x60] sm:$0xff]
    %v294 = vld [vmem:[%s7 + $0x68] sm:$0xff]
    %v295 = vld [vmem:[%s7 + $0x70] sm:$0xff]
    %v296 = vld [vmem:[%s7 + $0x78] sm:$0xff]
    %v297 = vld [vmem:[%s7 + $0x80] sm:$0xff]
    %v298 = vld [vmem:[%s7 + $0x88] sm:$0xff]
    %v299 = vld [vmem:[%s7 + $0x90] sm:$0xff]
    %v300 = vld [vmem:[%s7 + $0x98] sm:$0xff]
    %v301 = vld [vmem:[%s7 + $0xa0] sm:$0xff]
    %v302 = vld [vmem:[%s7 + $0xa8] sm:$0xff]
    %v303 = vld [vmem:[%s7 + $0xb0] sm:$0xff]
    %v304 = vld [vmem:[%s7 + $0xb8] sm:$0xff]
    %v305 = vld [vmem:[%s7 + $0xc0] sm:$0xff]
    %v306 = vld [vmem:[%s7 + $0xc8] sm:$0xff]
    %v307 = vld [vmem:[%s7 + $0xd0] sm:$0xff]
    %v308 = vld [vmem:[%s7 + $0xd8] sm:$0xff]
    %v309 = vld [vmem:[%s7 + $0xe0] sm:$0xff]
    %v310 = vld [vmem:[%s7 + $0xe8] sm:$0xff]
    %v311 = vld [vmem:[%s7 + $0xf0] sm:$0xff]
    %v312 = vld [vmem:[%s7 + $0xf8] sm:$0xff]
    %v313 = vld [vmem:[%s7 + $0x100] sm:$0xff]
    %v314 = vld [vmem:[%s7 + $0x108] sm:$0xff]
    %v315 = vld [vmem:[%s7 + $0x110] sm:$0xff]
    %v316 = vld [vmem:[%s7 + $0x118] sm:$0xff]
    %v317 = vld [vmem:[%s7 + $0x120] sm:$0xff]
    %v318 = vld [vmem:[%s7 + $0x128] sm:$0xff]
    %v319 = vld [vmem:[%s7 + $0x130] sm:$0xff]
    %v320 = vld [vmem:[%s7 + $0x138] sm:$0xff]
    %v321 = vld [vmem:[%s7 + $0x140] sm:$0xff]
    %v322 = vld [vmem:[%s7 + $0x148] sm:$0xff]
    %v323 = vld [vmem:[%s7 + $0x150] sm:$0xff]
    %v324 = vld [vmem:[%s7 + $0x158] sm:$0xff]
    %v325 = vld [vmem:[%s7 + $0x160] sm:$0xff]
    %v326 = vld [vmem:[%s7 + $0x168] sm:$0xff]
    %v327 = vld [vmem:[%s7 + $0x170] sm:$0xff]
    %v328 = vld [vmem:[%s7 + $0x178] sm:$0xff]
    %v329 = vld [vmem:[%s7 + $0x180] sm:$0xff]
    %v330 = vld [vmem:[%s7 + $0x188] sm:$0xff]
    %v331 = vld [vmem:[%s7 + $0x190] sm:$0xff]
    %v332 = vld [vmem:[%s7 + $0x198] sm:$0xff]
    %v333 = vld [vmem:[%s7 + $0x1a0] sm:$0xff]
    %v334 = vld [vmem:[%s7 + $0x1a8] sm:$0xff]
    %v335 = vld [vmem:[%s7 + $0x1b0] sm:$0xff]
    %v336 = vld [vmem:[%s7 + $0x1b8] sm:$0xff]
    %v337 = vld [vmem:[%s7 + $0x1c0] sm:$0xff]
    %v338 = vld [vmem:[%s7 + $0x1c8] sm:$0xff]
    %v339 = vld [vmem:[%s7 + $0x1d0] sm:$0xff]
    %v340 = vld [vmem:[%s7 + $0x1d8] sm:$0xff]
    %v341 = vld [vmem:[%s7 + $0x1e0] sm:$0xff]
    %v342 = vld [vmem:[%s7 + $0x1e8] sm:$0xff]
    %v343 = vld [vmem:[%s7 + $0x1f0] sm:$0xff]
    %v344 = vld [vmem:[%s7 + $0x1f8] sm:$0xff]
    %v345 = vld [vmem:[%s7 + $0x200] sm:$0xff]
    %v346 = vld [vmem:[%s7 + $0x208] sm:$0xff]
    %v347 = vld [vmem:[%s7 + $0x210] sm:$0xff]
    %v348 = vld [vmem:[%s7 + $0x218] sm:$0xff]
    %v349 = vld [vmem:[%s7 + $0x220] sm:$0xff]
    %v350 = vld [vmem:[%s7 + $0x228] sm:$0xff]
    %v351 = vld [vmem:[%s7 + $0x230] sm:$0xff]
    %v352 = vld [vmem:[%s7 + $0x238] sm:$0xff]
    %v353 = vld [vmem:[%s7 + $0x240] sm:$0xff]
    %v354 = vld [vmem:[%s7 + $0x248] sm:$0xff]
    %v355 = vld [vmem:[%s7 + $0x250] sm:$0xff]
    %v356 = vld [vmem:[%s7 + $0x258] sm:$0xff]
    %v357 = vld [vmem:[%s7 + $0x260] sm:$0xff]
    %v358 = vld [vmem:[%s7 + $0x268] sm:$0xff]
    %v359 = vld [vmem:[%s7 + $0x270] sm:$0xff]
    %v360 = vld [vmem:[%s7 + $0x278] sm:$0xff]
    %v361 = vld [vmem:[%s7 + $0x280] sm:$0x3]
    %v362 = vld [vmem:[%s7 + $0x288] sm:$0x3]
    %v363 = vld [vmem:[%s7 + $0x290] sm:$0x3]
    %v364 = vld [vmem:[%s7 + $0x298] sm:$0x3]
    %v365 = vld [vmem:[%s8] sm:$0xff]
    %v366 = vld [vmem:[%s8 + $0x8] sm:$0xff]
    %v367 = vld [vmem:[%s8 + $0x10] sm:$0xff]
    %v368 = vld [vmem:[%s8 + $0x18] sm:$0xff]
    %v369 = vld [vmem:[%s8 + $0x20] sm:$0xff]
    %v370 = vld [vmem:[%s8 + $0x28] sm:$0xff]
    %v371 = vld [vmem:[%s8 + $0x30] sm:$0xff]
    %v372 = vld [vmem:[%s8 + $0x38] sm:$0xff]
    %v373 = vld [vmem:[%s8 + $0x40] sm:$0xff]
    %v374 = vld [vmem:[%s8 + $0x48] sm:$0xff]
    %v375 = vld [vmem:[%s8 + $0x50] sm:$0xff]
    %v376 = vld [vmem:[%s8 + $0x58] sm:$0xff]
    %v377 = vld [vmem:[%s8 + $0x60] sm:$0xff]
    %v378 = vld [vmem:[%s8 + $0x68] sm:$0xff]
    %v379 = vld [vmem:[%s8 + $0x70] sm:$0xff]
    %v380 = vld [vmem:[%s8 + $0x78] sm:$0xff]
    %v381 = vld [vmem:[%s8 + $0x80] sm:$0xff]
    %v382 = vld [vmem:[%s8 + $0x88] sm:$0xff]
    %v383 = vld [vmem:[%s8 + $0x90] sm:$0xff]
    %v384 = vld [vmem:[%s8 + $0x98] sm:$0xff]
    %v385 = vld [vmem:[%s8 + $0xa0] sm:$0xff]
    %v386 = vld [vmem:[%s8 + $0xa8] sm:$0xff]
    %v387 = vld [vmem:[%s8 + $0xb0] sm:$0xff]
    %v388 = vld [vmem:[%s8 + $0xb8] sm:$0xff]
    %v389 = vld [vmem:[%s8 + $0xc0] sm:$0xff]
    %v390 = vld [vmem:[%s8 + $0xc8] sm:$0xff]
    %v391 = vld [vmem:[%s8 + $0xd0] sm:$0xff]
    %v392 = vld [vmem:[%s8 + $0xd8] sm:$0xff]
    %v393 = vld [vmem:[%s8 + $0xe0] sm:$0xff]
    %v394 = vld [vmem:[%s8 + $0xe8] sm:$0xff]
    %v395 = vld [vmem:[%s8 + $0xf0] sm:$0xff]
    %v396 = vld [vmem:[%s8 + $0xf8] sm:$0xff]
    %v397 = vld [vmem:[%s8 + $0x100] sm:$0xff]
    %v398 = vld [vmem:[%s8 + $0x108] sm:$0xff]
    %v399 = vld [vmem:[%s8 + $0x110] sm:$0xff]
    %v400 = vld [vmem:[%s8 + $0x118] sm:$0xff]
    %v401 = vld [vmem:[%s8 + $0x120] sm:$0xff]
    %v402 = vld [vmem:[%s8 + $0x128] sm:$0xff]
    %v403 = vld [vmem:[%s8 + $0x130] sm:$0xff]
    %v404 = vld [vmem:[%s8 + $0x138] sm:$0xff]
    %v405 = vld [vmem:[%s8 + $0x140] sm:$0xff]
    %v406 = vld [vmem:[%s8 + $0x148] sm:$0xff]
    %v407 = vld [vmem:[%s8 + $0x150] sm:$0xff]
    %v408 = vld [vmem:[%s8 + $0x158] sm:$0xff]
    %v409 = vld [vmem:[%s8 + $0x160] sm:$0xff]
    %v410 = vld [vmem:[%s8 + $0x168] sm:$0xff]
    %v411 = vld [vmem:[%s8 + $0x170] sm:$0xff]
    %v412 = vld [vmem:[%s8 + $0x178] sm:$0xff]
    %v414 = vsel %vm118, %v277, 0
    %416 = vmatprep.subr.mxu0 %v366
    %417 = vmatpush1.msra.mxu0 %v365
    %418 = vmatprep.subr.mxu0 %v370
    %419 = vmatpush1.msra.mxu0 %v369
    %420 = vmatprep.subr.mxu0 %v374
    %421 = vmatpush1.msra.mxu0 %v373
    %422 = vmatprep.subr.mxu0 %v378
    %423 = vmatpush1.msra.mxu0 %v377
    %424 = vmatprep.subr.mxu0 %v382
    %425 = vmatpush1.msra.mxu0 %v381
    %426 = vmatprep.subr.mxu0 %v386
    %427 = vmatpush1.msra.mxu0 %v385
    %428 = vmatprep.subr.mxu0 %v390
    %429 = vmatpush1.msra.mxu0 %v389
    %430 = vmatprep.subr.mxu0 %v394
    %431 = vmatpush1.msra.mxu0 %v393
    %432 = vmatprep.subr.mxu0 %v398
    %433 = vmatpush1.msra.mxu0 %v397
    %434 = vmatprep.subr.mxu0 %v402
    %435 = vmatpush1.msra.mxu0 %v401
    %436 = vmatprep.subr.mxu0 %v406
    %437 = vmatpush1.msra.mxu0 %v405
    %438 = vmatprep.subr.mxu0 %v410
    %439 = vmatpush1.msra.mxu0 %v409
    %440 = vmatprep.subr.mxu0 0.0
    %441 = vmatpush1.msra.mxu0 0.0
    %442 = vmatprep.subr.mxu0 0.0
    %443 = vmatpush1.msra.mxu0 0.0
    %444 = vmatprep.subr.mxu0 0.0
    %445 = vmatpush1.msra.mxu0 0.0
    %446 = vmatprep.subr.mxu0 0.0
    %447 = vmatpush1.msra.mxu0 0.0
    %448 = vmatprep.subr.mxu0 0.0
    %449 = vmatpush1.msra.mxu0 0.0
    %450 = vmatprep.subr.mxu0 0.0
    %451 = vmatpush1.msra.mxu0 0.0
    %452 = vmatprep.subr.mxu0 0.0
    %453 = vmatpush1.msra.mxu0 0.0
    %454 = vmatprep.subr.mxu0 0.0
    %455 = vmatpush1.msra.mxu0 0.0
    %456 = vmatprep.subr.mxu0 0.0
    %457 = vmatpush1.msra.mxu0 0.0
    %458 = vmatprep.subr.mxu0 0.0
    %459 = vmatpush1.msra.mxu0 0.0
    %460 = vmatprep.subr.mxu0 0.0
    %461 = vmatpush1.msra.mxu0 0.0
    %462 = vmatprep.subr.mxu0 0.0
    %463 = vmatpush1.msra.mxu0 0.0
    %464 = vmatprep.subr.mxu0 0.0
    %465 = vmatpush1.msra.mxu0 0.0
    %466 = vmatprep.subr.mxu0 0.0
    %467 = vmatpush1.msra.mxu0 0.0
    %468 = vmatprep.subr.mxu0 0.0
    %469 = vmatpush1.msra.mxu0 0.0
    %470 = vmatprep.subr.mxu0 0.0
    %471 = vmatpush1.msra.mxu0 0.0
    %472 = vmatprep.subr.mxu0 0.0
    %473 = vmatpush1.msra.mxu0 0.0
    %474 = vmatprep.subr.mxu0 0.0
    %475 = vmatpush1.msra.mxu0 0.0
    %476 = vmatprep.subr.mxu0 0.0
    %477 = vmatpush1.msra.mxu0 0.0
    %478 = vmatprep.subr.mxu0 0.0
    %479 = vmatpush1.msra.mxu0 0.0
    %480 = vmatprep.mubr.f32.mxu0 0.0
    %481 = vmatmul.mubr.f32.gmra.mrb[0].mxu0 %v414
    %v482 = vpop.f32.mrb[0].mxu0
    %v483 = vadd.f32 0.0, %v482
    %v484 = vpop.f32.mrb[0].mxu0
    %v485 = vadd.f32 0.0, %v484
    %486 = vdwg.mxu0
    %487 = vmatprep.subr.mxu0 %v368
    %488 = vmatpush1.msra.mxu0 %v367
    %489 = vmatprep.subr.mxu0 %v372
    %490 = vmatpush1.msra.mxu0 %v371
    %491 = vmatprep.subr.mxu0 %v376
    %492 = vmatpush1.msra.mxu0 %v375
    %493 = vmatprep.subr.mxu0 %v380
    %494 = vmatpush1.msra.mxu0 %v379
    %495 = vmatprep.subr.mxu0 %v384
    %496 = vmatpush1.msra.mxu0 %v383
    %497 = vmatprep.subr.mxu0 %v388
    %498 = vmatpush1.msra.mxu0 %v387
    %499 = vmatprep.subr.mxu0 %v392
    %500 = vmatpush1.msra.mxu0 %v391
    %501 = vmatprep.subr.mxu0 %v396
    %502 = vmatpush1.msra.mxu0 %v395
    %503 = vmatprep.subr.mxu0 %v400
    %504 = vmatpush1.msra.mxu0 %v399
    %505 = vmatprep.subr.mxu0 %v404
    %506 = vmatpush1.msra.mxu0 %v403
    %507 = vmatprep.subr.mxu0 %v408
    %508 = vmatpush1.msra.mxu0 %v407
    %509 = vmatprep.subr.mxu0 %v412
    %510 = vmatpush1.msra.mxu0 %v411
    %511 = vmatprep.subr.mxu0 0.0
    %512 = vmatpush1.msra.mxu0 0.0
    %513 = vmatprep.subr.mxu0 0.0
    %514 = vmatpush1.msra.mxu0 0.0
    %515 = vmatprep.subr.mxu0 0.0
    %516 = vmatpush1.msra.mxu0 0.0
    %517 = vmatprep.subr.mxu0 0.0
    %518 = vmatpush1.msra.mxu0 0.0
    %519 = vmatprep.subr.mxu0 0.0
    %520 = vmatpush1.msra.mxu0 0.0
    %521 = vmatprep.subr.mxu0 0.0
    %522 = vmatpush1.msra.mxu0 0.0
    %523 = vmatprep.subr.mxu0 0.0
    %524 = vmatpush1.msra.mxu0 0.0
    %525 = vmatprep.subr.mxu0 0.0
    %526 = vmatpush1.msra.mxu0 0.0
    %527 = vmatprep.subr.mxu0 0.0
    %528 = vmatpush1.msra.mxu0 0.0
    %529 = vmatprep.subr.mxu0 0.0
    %530 = vmatpush1.msra.mxu0 0.0
    %531 = vmatprep.subr.mxu0 0.0
    %532 = vmatpush1.msra.mxu0 0.0
    %533 = vmatprep.subr.mxu0 0.0
    %534 = vmatpush1.msra.mxu0 0.0
    %535 = vmatprep.subr.mxu0 0.0
    %536 = vmatpush1.msra.mxu0 0.0
    %537 = vmatprep.subr.mxu0 0.0
    %538 = vmatpush1.msra.mxu0 0.0
    %539 = vmatprep.subr.mxu0 0.0
    %540 = vmatpush1.msra.mxu0 0.0
    %541 = vmatprep.subr.mxu0 0.0
    %542 = vmatpush1.msra.mxu0 0.0
    %543 = vmatprep.subr.mxu0 0.0
    %544 = vmatpush1.msra.mxu0 0.0
    %545 = vmatprep.subr.mxu0 0.0
    %546 = vmatpush1.msra.mxu0 0.0
    %547 = vmatprep.subr.mxu0 0.0
    %548 = vmatpush1.msra.mxu0 0.0
    %549 = vmatprep.subr.mxu0 0.0
    %550 = vmatpush1.msra.mxu0 0.0
    %551 = vmatprep.mubr.f32.mxu0 0.0
    %552 = vmatmul.mubr.f32.gmra.mrb[0].mxu0 %v414
    %v553 = vpop.f32.mrb[0].mxu0
    %v554 = vadd.f32 0.0, %v553
    %v555 = vpop.f32.mrb[0].mxu0
    %v556 = vadd.f32 0.0, %v555
    %557 = vdwg.mxu0
    %v560 = vunpack.c.l.s4 1983009808
    %v561 = vunpack.c.0.s8 %v560
    %v562 = vlaneseq
    %v563 = vshrl.u32 %v562, 7
    %v564 = vsub.s32 %v561, %v563
    %v565 = vrot.slane %v280, %v564
    %v566 = vcombine.high %v565, %v565
    %vm568 = vcmask 277504
    %v569 = vsel %vm568, %v566, 0
    %vm571 = vcmask 1041408
    %v573 = vsel %vm571, %v361, 0
    %v576 = vsel %vm571, %v362, 0
    %v579 = vsel %vm571, %v363, 0
    %v582 = vsel %vm571, %v364, 0
    %584 = vmatprep.subr.mxu0 %v282
    %585 = vmatpush1.msra.mxu0 %v281
    %586 = vmatprep.subr.mxu0 %v286
    %587 = vmatpush1.msra.mxu0 %v285
    %588 = vmatprep.subr.mxu0 %v290
    %589 = vmatpush1.msra.mxu0 %v289
    %590 = vmatprep.subr.mxu0 %v294
    %591 = vmatpush1.msra.mxu0 %v293
    %592 = vmatprep.subr.mxu0 %v298
    %593 = vmatpush1.msra.mxu0 %v297
    %594 = vmatprep.subr.mxu0 %v302
    %595 = vmatpush1.msra.mxu0 %v301
    %596 = vmatprep.subr.mxu0 %v306
    %597 = vmatpush1.msra.mxu0 %v305
    %598 = vmatprep.subr.mxu0 %v310
    %599 = vmatpush1.msra.mxu0 %v309
    %600 = vmatprep.subr.mxu0 %v314
    %601 = vmatpush1.msra.mxu0 %v313
    %602 = vmatprep.subr.mxu0 %v318
    %603 = vmatpush1.msra.mxu0 %v317
    %604 = vmatprep.subr.mxu0 %v322
    %605 = vmatpush1.msra.mxu0 %v321
    %606 = vmatprep.subr.mxu0 %v326
    %607 = vmatpush1.msra.mxu0 %v325
    %608 = vmatprep.subr.mxu0 %v330
    %609 = vmatpush1.msra.mxu0 %v329
    %610 = vmatprep.subr.mxu0 %v334
    %611 = vmatpush1.msra.mxu0 %v333
    %612 = vmatprep.subr.mxu0 %v338
    %613 = vmatpush1.msra.mxu0 %v337
    %614 = vmatprep.subr.mxu0 %v342
    %615 = vmatpush1.msra.mxu0 %v341
    %616 = vmatprep.subr.mxu0 %v346
    %617 = vmatpush1.msra.mxu0 %v345
    %618 = vmatprep.subr.mxu0 %v350
    %619 = vmatpush1.msra.mxu0 %v349
    %620 = vmatprep.subr.mxu0 %v354
    %621 = vmatpush1.msra.mxu0 %v353
    %622 = vmatprep.subr.mxu0 %v358
    %623 = vmatpush1.msra.mxu0 %v357
    %624 = vmatprep.subr.mxu0 %v576
    %625 = vmatpush1.msra.mxu0 %v573
    %626 = vmatprep.subr.mxu0 0.0
    %627 = vmatpush1.msra.mxu0 0.0
    %628 = vmatprep.subr.mxu0 0.0
    %629 = vmatpush1.msra.mxu0 0.0
    %630 = vmatprep.subr.mxu0 0.0
    %631 = vmatpush1.msra.mxu0 0.0
    %632 = vmatprep.subr.mxu0 0.0
    %633 = vmatpush1.msra.mxu0 0.0
    %634 = vmatprep.subr.mxu0 0.0
    %635 = vmatpush1.msra.mxu0 0.0
    %636 = vmatprep.subr.mxu0 0.0
    %637 = vmatpush1.msra.mxu0 0.0
    %638 = vmatprep.subr.mxu0 0.0
    %639 = vmatpush1.msra.mxu0 0.0
    %640 = vmatprep.subr.mxu0 0.0
    %641 = vmatpush1.msra.mxu0 0.0
    %642 = vmatprep.subr.mxu0 0.0
    %643 = vmatpush1.msra.mxu0 0.0
    %644 = vmatprep.subr.mxu0 0.0
    %645 = vmatpush1.msra.mxu0 0.0
    %646 = vmatprep.subr.mxu0 0.0
    %647 = vmatpush1.msra.mxu0 0.0
    %648 = vmatprep.mubr.f32.mxu0 %v569
    %649 = vmatmul.mubr.f32.gmra.mrb[0].mxu0 %v565
    %v650 = vpop.f32.mrb[0].mxu0
    %v651 = vadd.f32 %v483, %v650
    %v652 = vpop.f32.mrb[0].mxu0
    %v653 = vadd.f32 %v485, %v652
    %654 = vdwg.mxu0
    %655 = vmatprep.subr.mxu0 %v284
    %656 = vmatpush1.msra.mxu0 %v283
    %657 = vmatprep.subr.mxu0 %v288
    %658 = vmatpush1.msra.mxu0 %v287
    %659 = vmatprep.subr.mxu0 %v292
    %660 = vmatpush1.msra.mxu0 %v291
    %661 = vmatprep.subr.mxu0 %v296
    %662 = vmatpush1.msra.mxu0 %v295
    %663 = vmatprep.subr.mxu0 %v300
    %664 = vmatpush1.msra.mxu0 %v299
    %665 = vmatprep.subr.mxu0 %v304
    %666 = vmatpush1.msra.mxu0 %v303
    %667 = vmatprep.subr.mxu0 %v308
    %668 = vmatpush1.msra.mxu0 %v307
    %669 = vmatprep.subr.mxu0 %v312
    %670 = vmatpush1.msra.mxu0 %v311
    %671 = vmatprep.subr.mxu0 %v316
    %672 = vmatpush1.msra.mxu0 %v315
    %673 = vmatprep.subr.mxu0 %v320
    %674 = vmatpush1.msra.mxu0 %v319
    %675 = vmatprep.subr.mxu0 %v324
    %676 = vmatpush1.msra.mxu0 %v323
    %677 = vmatprep.subr.mxu0 %v328
    %678 = vmatpush1.msra.mxu0 %v327
    %679 = vmatprep.subr.mxu0 %v332
    %680 = vmatpush1.msra.mxu0 %v331
    %681 = vmatprep.subr.mxu0 %v336
    %682 = vmatpush1.msra.mxu0 %v335
    %683 = vmatprep.subr.mxu0 %v340
    %684 = vmatpush1.msra.mxu0 %v339
    %685 = vmatprep.subr.mxu0 %v344
    %686 = vmatpush1.msra.mxu0 %v343
    %687 = vmatprep.subr.mxu0 %v348
    %688 = vmatpush1.msra.mxu0 %v347
    %689 = vmatprep.subr.mxu0 %v352
    %690 = vmatpush1.msra.mxu0 %v351
    %691 = vmatprep.subr.mxu0 %v356
    %692 = vmatpush1.msra.mxu0 %v355
    %693 = vmatprep.subr.mxu0 %v360
    %694 = vmatpush1.msra.mxu0 %v359
    %695 = vmatprep.subr.mxu0 %v582
    %696 = vmatpush1.msra.mxu0 %v579
    %697 = vmatprep.subr.mxu0 0.0
    %698 = vmatpush1.msra.mxu0 0.0
    %699 = vmatprep.subr.mxu0 0.0
    %700 = vmatpush1.msra.mxu0 0.0
    %701 = vmatprep.subr.mxu0 0.0
    %702 = vmatpush1.msra.mxu0 0.0
    %703 = vmatprep.subr.mxu0 0.0
    %704 = vmatpush1.msra.mxu0 0.0
    %705 = vmatprep.subr.mxu0 0.0
    %706 = vmatpush1.msra.mxu0 0.0
    %707 = vmatprep.subr.mxu0 0.0
    %708 = vmatpush1.msra.mxu0 0.0
    %709 = vmatprep.subr.mxu0 0.0
    %710 = vmatpush1.msra.mxu0 0.0
    %711 = vmatprep.subr.mxu0 0.0
    %712 = vmatpush1.msra.mxu0 0.0
    %713 = vmatprep.subr.mxu0 0.0
    %714 = vmatpush1.msra.mxu0 0.0
    %715 = vmatprep.subr.mxu0 0.0
    %716 = vmatpush1.msra.mxu0 0.0
    %717 = vmatprep.subr.mxu0 0.0
    %718 = vmatpush1.msra.mxu0 0.0
    %719 = vmatprep.mubr.f32.mxu0 %v569
    %720 = vmatmul.mubr.f32.gmra.mrb[0].mxu0 %v565
    %v721 = vpop.f32.mrb[0].mxu0
    %v722 = vadd.f32 %v554, %v721
    %v723 = vpop.f32.mrb[0].mxu0
    %v724 = vadd.f32 %v556, %v723
    %725 = vdwg.mxu0
    %v726 = vld [vmem:[%s2] sm:$0x3f]
    %v727 = vld [vmem:[%s9] sm:$0xff]
    %v728 = vld [vmem:[%s9 + $0x8] sm:$0xff]
    %v729 = vld [vmem:[%s9 + $0x10] sm:$0xff]
    %v730 = vld [vmem:[%s9 + $0x18] sm:$0xff]
    %v731 = vld [vmem:[%s9 + $0x20] sm:$0xff]
    %v732 = vld [vmem:[%s9 + $0x28] sm:$0xff]
    %v733 = vld [vmem:[%s9 + $0x30] sm:$0xff]
    %v734 = vld [vmem:[%s9 + $0x38] sm:$0xff]
    %v735 = vld [vmem:[%s9 + $0x40] sm:$0xff]
    %v736 = vld [vmem:[%s9 + $0x48] sm:$0xff]
    %v737 = vld [vmem:[%s9 + $0x50] sm:$0xff]
    %v738 = vld [vmem:[%s9 + $0x58] sm:$0xff]
    %v739 = vld [vmem:[%s9 + $0x60] sm:$0xff]
    %v740 = vld [vmem:[%s9 + $0x68] sm:$0xff]
    %v741 = vld [vmem:[%s9 + $0x70] sm:$0xff]
    %v742 = vld [vmem:[%s9 + $0x78] sm:$0xff]
    %v743 = vld [vmem:[%s9 + $0x80] sm:$0xff]
    %v744 = vld [vmem:[%s9 + $0x88] sm:$0xff]
    %v745 = vld [vmem:[%s9 + $0x90] sm:$0xff]
    %v746 = vld [vmem:[%s9 + $0x98] sm:$0xff]
    %v747 = vld [vmem:[%s9 + $0xa0] sm:$0xff]
    %v748 = vld [vmem:[%s9 + $0xa8] sm:$0xff]
    %v749 = vld [vmem:[%s9 + $0xb0] sm:$0xff]
    %v750 = vld [vmem:[%s9 + $0xb8] sm:$0xff]
    %v751 = vld [vmem:[%s9 + $0xc0] sm:$0xff]
    %v752 = vld [vmem:[%s9 + $0xc8] sm:$0xff]
    %v753 = vld [vmem:[%s9 + $0xd0] sm:$0xff]
    %v754 = vld [vmem:[%s9 + $0xd8] sm:$0xff]
    %v755 = vld [vmem:[%s9 + $0xe0] sm:$0xff]
    %v756 = vld [vmem:[%s9 + $0xe8] sm:$0xff]
    %v757 = vld [vmem:[%s9 + $0xf0] sm:$0xff]
    %v758 = vld [vmem:[%s9 + $0xf8] sm:$0xff]
    %v759 = vld [vmem:[%s9 + $0x100] sm:$0xff]
    %v760 = vld [vmem:[%s9 + $0x108] sm:$0xff]
    %v761 = vld [vmem:[%s9 + $0x110] sm:$0xff]
    %v762 = vld [vmem:[%s9 + $0x118] sm:$0xff]
    %v763 = vld [vmem:[%s9 + $0x120] sm:$0xff]
    %v764 = vld [vmem:[%s9 + $0x128] sm:$0xff]
    %v765 = vld [vmem:[%s9 + $0x130] sm:$0xff]
    %v766 = vld [vmem:[%s9 + $0x138] sm:$0xff]
    %v767 = vld [vmem:[%s9 + $0x140] sm:$0xff]
    %v768 = vld [vmem:[%s9 + $0x148] sm:$0xff]
    %v769 = vld [vmem:[%s9 + $0x150] sm:$0xff]
    %v770 = vld [vmem:[%s9 + $0x158] sm:$0xff]
    %v771 = vld [vmem:[%s9 + $0x160] sm:$0xff]
    %v772 = vld [vmem:[%s9 + $0x168] sm:$0xff]
    %v773 = vld [vmem:[%s9 + $0x170] sm:$0xff]
    %v774 = vld [vmem:[%s9 + $0x178] sm:$0xff]
    %v775 = vld [vmem:[%s9 + $0x180] sm:$0xff]
    %v776 = vld [vmem:[%s9 + $0x188] sm:$0xff]
    %v777 = vld [vmem:[%s9 + $0x190] sm:$0xff]
    %v778 = vld [vmem:[%s9 + $0x198] sm:$0xff]
    %v779 = vld [vmem:[%s9 + $0x1a0] sm:$0xff]
    %v780 = vld [vmem:[%s9 + $0x1a8] sm:$0xff]
    %v781 = vld [vmem:[%s9 + $0x1b0] sm:$0xff]
    %v782 = vld [vmem:[%s9 + $0x1b8] sm:$0xff]
    %v783 = vld [vmem:[%s9 + $0x1c0] sm:$0xff]
    %v784 = vld [vmem:[%s9 + $0x1c8] sm:$0xff]
    %v785 = vld [vmem:[%s9 + $0x1d0] sm:$0xff]
    %v786 = vld [vmem:[%s9 + $0x1d8] sm:$0xff]
    %v787 = vld [vmem:[%s9 + $0x1e0] sm:$0xff]
    %v788 = vld [vmem:[%s9 + $0x1e8] sm:$0xff]
    %v789 = vld [vmem:[%s9 + $0x1f0] sm:$0xff]
    %v790 = vld [vmem:[%s9 + $0x1f8] sm:$0xff]
    %v791 = vld [vmem:[%s9 + $0x200] sm:$0xff]
    %v792 = vld [vmem:[%s9 + $0x208] sm:$0xff]
    %v793 = vld [vmem:[%s9 + $0x210] sm:$0xff]
    %v794 = vld [vmem:[%s9 + $0x218] sm:$0xff]
    %v795 = vld [vmem:[%s9 + $0x220] sm:$0xff]
    %v796 = vld [vmem:[%s9 + $0x228] sm:$0xff]
    %v797 = vld [vmem:[%s9 + $0x230] sm:$0xff]
    %v798 = vld [vmem:[%s9 + $0x238] sm:$0xff]
    %v799 = vld [vmem:[%s9 + $0x240] sm:$0xff]
    %v800 = vld [vmem:[%s9 + $0x248] sm:$0xff]
    %v801 = vld [vmem:[%s9 + $0x250] sm:$0xff]
    %v802 = vld [vmem:[%s9 + $0x258] sm:$0xff]
    %v803 = vld [vmem:[%s9 + $0x260] sm:$0xff]
    %v804 = vld [vmem:[%s9 + $0x268] sm:$0xff]
    %v805 = vld [vmem:[%s9 + $0x270] sm:$0xff]
    %v806 = vld [vmem:[%s9 + $0x278] sm:$0xff]
    %v807 = vld [vmem:[%s9 + $0x280] sm:$0xff]
    %v808 = vld [vmem:[%s9 + $0x288] sm:$0xff]
    %v809 = vld [vmem:[%s9 + $0x290] sm:$0xff]
    %v810 = vld [vmem:[%s9 + $0x298] sm:$0xff]
    %v811 = vld [vmem:[%s9 + $0x2a0] sm:$0xff]
    %v812 = vld [vmem:[%s9 + $0x2a8] sm:$0xff]
    %v813 = vld [vmem:[%s9 + $0x2b0] sm:$0xff]
    %v814 = vld [vmem:[%s9 + $0x2b8] sm:$0xff]
    %v815 = vld [vmem:[%s9 + $0x2c0] sm:$0xff]
    %v816 = vld [vmem:[%s9 + $0x2c8] sm:$0xff]
    %v817 = vld [vmem:[%s9 + $0x2d0] sm:$0xff]
    %v818 = vld [vmem:[%s9 + $0x2d8] sm:$0xff]
    %v819 = vld [vmem:[%s9 + $0x2e0] sm:$0xff]
    %v820 = vld [vmem:[%s9 + $0x2e8] sm:$0xff]
    %v821 = vld [vmem:[%s9 + $0x2f0] sm:$0xff]
    %v822 = vld [vmem:[%s9 + $0x2f8] sm:$0xff]
    %v823 = vld [vmem:[%s9 + $0x300] sm:$0xff]
    %v824 = vld [vmem:[%s9 + $0x308] sm:$0xff]
    %v825 = vld [vmem:[%s9 + $0x310] sm:$0xff]
    %v826 = vld [vmem:[%s9 + $0x318] sm:$0xff]
    %v827 = vld [vmem:[%s9 + $0x320] sm:$0xff]
    %v828 = vld [vmem:[%s9 + $0x328] sm:$0xff]
    %v829 = vld [vmem:[%s9 + $0x330] sm:$0xff]
    %v830 = vld [vmem:[%s9 + $0x338] sm:$0xff]
    %v831 = vld [vmem:[%s9 + $0x340] sm:$0xff]
    %v832 = vld [vmem:[%s9 + $0x348] sm:$0xff]
    %v833 = vld [vmem:[%s9 + $0x350] sm:$0xff]
    %v834 = vld [vmem:[%s9 + $0x358] sm:$0xff]
    %v835 = vld [vmem:[%s9 + $0x360] sm:$0xff]
    %v836 = vld [vmem:[%s9 + $0x368] sm:$0xff]
    %v837 = vld [vmem:[%s9 + $0x370] sm:$0xff]
    %v838 = vld [vmem:[%s9 + $0x378] sm:$0xff]
    %v839 = vld [vmem:[%s9 + $0x380] sm:$0xff]
    %v840 = vld [vmem:[%s9 + $0x388] sm:$0xff]
    %v841 = vld [vmem:[%s9 + $0x390] sm:$0xff]
    %v842 = vld [vmem:[%s9 + $0x398] sm:$0xff]
    %v843 = vld [vmem:[%s9 + $0x3a0] sm:$0xff]
    %v844 = vld [vmem:[%s9 + $0x3a8] sm:$0xff]
    %v845 = vld [vmem:[%s9 + $0x3b0] sm:$0xff]
    %v846 = vld [vmem:[%s9 + $0x3b8] sm:$0xff]
    %v847 = vld [vmem:[%s9 + $0x3c0] sm:$0xff]
    %v848 = vld [vmem:[%s9 + $0x3c8] sm:$0xff]
    %v849 = vld [vmem:[%s9 + $0x3d0] sm:$0xff]
    %v850 = vld [vmem:[%s9 + $0x3d8] sm:$0xff]
    %v851 = vld [vmem:[%s9 + $0x3e0] sm:$0xff]
    %v852 = vld [vmem:[%s9 + $0x3e8] sm:$0xff]
    %v853 = vld [vmem:[%s9 + $0x3f0] sm:$0xff]
    %v854 = vld [vmem:[%s9 + $0x3f8] sm:$0xff]
    %v855 = vld [vmem:[%s9 + $0x400] sm:$0xff]
    %v856 = vld [vmem:[%s9 + $0x408] sm:$0xff]
    %v857 = vld [vmem:[%s9 + $0x410] sm:$0xff]
    %v858 = vld [vmem:[%s9 + $0x418] sm:$0xff]
    %v859 = vld [vmem:[%s9 + $0x420] sm:$0xff]
    %v860 = vld [vmem:[%s9 + $0x428] sm:$0xff]
    %v861 = vld [vmem:[%s9 + $0x430] sm:$0xff]
    %v862 = vld [vmem:[%s9 + $0x438] sm:$0xff]
    %v863 = vld [vmem:[%s9 + $0x440] sm:$0xff]
    %v864 = vld [vmem:[%s9 + $0x448] sm:$0xff]
    %v865 = vld [vmem:[%s9 + $0x450] sm:$0xff]
    %v866 = vld [vmem:[%s9 + $0x458] sm:$0xff]
    %v867 = vld [vmem:[%s9 + $0x460] sm:$0xff]
    %v868 = vld [vmem:[%s9 + $0x468] sm:$0xff]
    %v869 = vld [vmem:[%s9 + $0x470] sm:$0xff]
    %v870 = vld [vmem:[%s9 + $0x478] sm:$0xff]
    %v871 = vld [vmem:[%s9 + $0x480] sm:$0xff]
    %v872 = vld [vmem:[%s9 + $0x488] sm:$0xff]
    %v873 = vld [vmem:[%s9 + $0x490] sm:$0xff]
    %v874 = vld [vmem:[%s9 + $0x498] sm:$0xff]
    %v875 = vld [vmem:[%s9 + $0x4a0] sm:$0xff]
    %v876 = vld [vmem:[%s9 + $0x4a8] sm:$0xff]
    %v877 = vld [vmem:[%s9 + $0x4b0] sm:$0xff]
    %v878 = vld [vmem:[%s9 + $0x4b8] sm:$0xff]
    %v879 = vld [vmem:[%s9 + $0x4c0] sm:$0xff]
    %v880 = vld [vmem:[%s9 + $0x4c8] sm:$0xff]
    %v881 = vld [vmem:[%s9 + $0x4d0] sm:$0xff]
    %v882 = vld [vmem:[%s9 + $0x4d8] sm:$0xff]
    %v883 = vld [vmem:[%s9 + $0x4e0] sm:$0xff]
    %v884 = vld [vmem:[%s9 + $0x4e8] sm:$0xff]
    %v885 = vld [vmem:[%s9 + $0x4f0] sm:$0xff]
    %v886 = vld [vmem:[%s9 + $0x4f8] sm:$0xff]
    %v887 = vld [vmem:[%s9 + $0x500] sm:$0xff]
    %v888 = vld [vmem:[%s9 + $0x508] sm:$0xff]
    %v889 = vld [vmem:[%s9 + $0x510] sm:$0xff]
    %v890 = vld [vmem:[%s9 + $0x518] sm:$0xff]
    %v892 = vcombine.high %v726, %v726
    %v894 = vunpack.c.l.s4 1983009808
    %v895 = vunpack.c.0.s8 %v894
    %v896 = vlaneseq
    %v897 = vshrl.u32 %v896, 7
    %v898 = vsub.s32 %v895, %v897
    %v899 = vrot.slane %v726, %v898
    %v901 = vunpack.c.l.s4 1983009808
    %v902 = vunpack.c.0.s8 %v901
    %v903 = vlaneseq
    %v904 = vshrl.u32 %v903, 7
    %v905 = vsub.s32 %v902, %v904
    %v906 = vrot.slane %v892, %v905
    %v907 = vcombine.high %v899, %v899
    %vm910 = vcmask 588800
    %v911 = vsel %vm910, %v906, 0
    %913 = vmatprep.subr.mxu0 %v728
    %914 = vmatpush1.msra.mxu0 %v727
    %915 = vmatprep.subr.mxu0 %v732
    %916 = vmatpush1.msra.mxu0 %v731
    %917 = vmatprep.subr.mxu0 %v736
    %918 = vmatpush1.msra.mxu0 %v735
    %919 = vmatprep.subr.mxu0 %v740
    %920 = vmatpush1.msra.mxu0 %v739
    %921 = vmatprep.subr.mxu0 %v744
    %922 = vmatpush1.msra.mxu0 %v743
    %923 = vmatprep.subr.mxu0 %v748
    %924 = vmatpush1.msra.mxu0 %v747
    %925 = vmatprep.subr.mxu0 %v752
    %926 = vmatpush1.msra.mxu0 %v751
    %927 = vmatprep.subr.mxu0 %v756
    %928 = vmatpush1.msra.mxu0 %v755
    %929 = vmatprep.subr.mxu0 %v760
    %930 = vmatpush1.msra.mxu0 %v759
    %931 = vmatprep.subr.mxu0 %v764
    %932 = vmatpush1.msra.mxu0 %v763
    %933 = vmatprep.subr.mxu0 %v768
    %934 = vmatpush1.msra.mxu0 %v767
    %935 = vmatprep.subr.mxu0 %v772
    %936 = vmatpush1.msra.mxu0 %v771
    %937 = vmatprep.subr.mxu0 %v776
    %938 = vmatpush1.msra.mxu0 %v775
    %939 = vmatprep.subr.mxu0 %v780
    %940 = vmatpush1.msra.mxu0 %v779
    %941 = vmatprep.subr.mxu0 %v784
    %942 = vmatpush1.msra.mxu0 %v783
    %943 = vmatprep.subr.mxu0 %v788
    %944 = vmatpush1.msra.mxu0 %v787
    %945 = vmatprep.subr.mxu0 %v792
    %946 = vmatpush1.msra.mxu0 %v791
    %947 = vmatprep.subr.mxu0 %v796
    %948 = vmatpush1.msra.mxu0 %v795
    %949 = vmatprep.subr.mxu0 %v800
    %950 = vmatpush1.msra.mxu0 %v799
    %951 = vmatprep.subr.mxu0 %v804
    %952 = vmatpush1.msra.mxu0 %v803
    %953 = vmatprep.subr.mxu0 %v808
    %954 = vmatpush1.msra.mxu0 %v807
    %955 = vmatprep.subr.mxu0 %v812
    %956 = vmatpush1.msra.mxu0 %v811
    %957 = vmatprep.subr.mxu0 %v816
    %958 = vmatpush1.msra.mxu0 %v815
    %959 = vmatprep.subr.mxu0 %v820
    %960 = vmatpush1.msra.mxu0 %v819
    %961 = vmatprep.subr.mxu0 %v824
    %962 = vmatpush1.msra.mxu0 %v823
    %963 = vmatprep.subr.mxu0 %v828
    %964 = vmatpush1.msra.mxu0 %v827
    %965 = vmatprep.subr.mxu0 %v832
    %966 = vmatpush1.msra.mxu0 %v831
    %967 = vmatprep.subr.mxu0 %v836
    %968 = vmatpush1.msra.mxu0 %v835
    %969 = vmatprep.subr.mxu0 %v840
    %970 = vmatpush1.msra.mxu0 %v839
    %971 = vmatprep.subr.mxu0 %v844
    %972 = vmatpush1.msra.mxu0 %v843
    %973 = vmatprep.subr.mxu0 %v848
    %974 = vmatpush1.msra.mxu0 %v847
    %975 = vmatprep.subr.mxu0 %v852
    %976 = vmatpush1.msra.mxu0 %v851
    %977 = vmatprep.mubr.f32.mxu0 %v907
    %978 = vmatmul.mubr.f32.gmra.mrb[0].mxu0 %v899
    %v979 = vpop.f32.mrb[0].mxu0
    %v980 = vadd.f32 0.0, %v979
    %v981 = vpop.f32.mrb[0].mxu0
    %v982 = vadd.f32 0.0, %v981
    %983 = vdwg.mxu0
    %984 = vmatprep.subr.mxu0 %v856
    %985 = vmatpush1.msra.mxu0 %v855
    %986 = vmatprep.subr.mxu0 %v860
    %987 = vmatpush1.msra.mxu0 %v859
    %988 = vmatprep.subr.mxu0 %v864
    %989 = vmatpush1.msra.mxu0 %v863
    %990 = vmatprep.subr.mxu0 %v868
    %991 = vmatpush1.msra.mxu0 %v867
    %992 = vmatprep.subr.mxu0 %v872
    %993 = vmatpush1.msra.mxu0 %v871
    %994 = vmatprep.subr.mxu0 %v876
    %995 = vmatpush1.msra.mxu0 %v875
    %996 = vmatprep.subr.mxu0 %v880
    %997 = vmatpush1.msra.mxu0 %v879
    %998 = vmatprep.subr.mxu0 %v884
    %999 = vmatpush1.msra.mxu0 %v883
    %1000 = vmatprep.subr.mxu0 %v888
    %1001 = vmatpush1.msra.mxu0 %v887
    %1002 = vmatprep.subr.mxu0 0.0
    %1003 = vmatpush1.msra.mxu0 0.0
    %1004 = vmatprep.subr.mxu0 0.0
    %1005 = vmatpush1.msra.mxu0 0.0
    %1006 = vmatprep.subr.mxu0 0.0
    %1007 = vmatpush1.msra.mxu0 0.0
    %1008 = vmatprep.subr.mxu0 0.0
    %1009 = vmatpush1.msra.mxu0 0.0
    %1010 = vmatprep.subr.mxu0 0.0
    %1011 = vmatpush1.msra.mxu0 0.0
    %1012 = vmatprep.subr.mxu0 0.0
    %1013 = vmatpush1.msra.mxu0 0.0
    %1014 = vmatprep.subr.mxu0 0.0
    %1015 = vmatpush1.msra.mxu0 0.0
    %1016 = vmatprep.subr.mxu0 0.0
    %1017 = vmatpush1.msra.mxu0 0.0
    %1018 = vmatprep.subr.mxu0 0.0
    %1019 = vmatpush1.msra.mxu0 0.0
    %1020 = vmatprep.subr.mxu0 0.0
    %1021 = vmatpush1.msra.mxu0 0.0
    %1022 = vmatprep.subr.mxu0 0.0
    %1023 = vmatpush1.msra.mxu0 0.0
    %1024 = vmatprep.subr.mxu0 0.0
    %1025 = vmatpush1.msra.mxu0 0.0
    %1026 = vmatprep.subr.mxu0 0.0
    %1027 = vmatpush1.msra.mxu0 0.0
    %1028 = vmatprep.subr.mxu0 0.0
    %1029 = vmatpush1.msra.mxu0 0.0
    %1030 = vmatprep.subr.mxu0 0.0
    %1031 = vmatpush1.msra.mxu0 0.0
    %1032 = vmatprep.subr.mxu0 0.0
    %1033 = vmatpush1.msra.mxu0 0.0
    %1034 = vmatprep.subr.mxu0 0.0
    %1035 = vmatpush1.msra.mxu0 0.0
    %1036 = vmatprep.subr.mxu0 0.0
    %1037 = vmatpush1.msra.mxu0 0.0
    %1038 = vmatprep.subr.mxu0 0.0
    %1039 = vmatpush1.msra.mxu0 0.0
    %1040 = vmatprep.subr.mxu0 0.0
    %1041 = vmatpush1.msra.mxu0 0.0
    %1042 = vmatprep.subr.mxu0 0.0
    %1043 = vmatpush1.msra.mxu0 0.0
    %1044 = vmatprep.subr.mxu0 0.0
    %1045 = vmatpush1.msra.mxu0 0.0
    %1046 = vmatprep.subr.mxu0 0.0
    %1047 = vmatpush1.msra.mxu0 0.0
    %1048 = vmatprep.mubr.f32.mxu0 0.0
    %1049 = vmatmul.mubr.f32.gmra.mrb[0].mxu0 %v911
    %v1050 = vpop.f32.mrb[0].mxu0
    %v1051 = vadd.f32 %v980, %v1050
    %v1052 = vpop.f32.mrb[0].mxu0
    %v1053 = vadd.f32 %v982, %v1052
    %1054 = vdwg.mxu0
    %1055 = vmatprep.subr.mxu0 %v730
    %1056 = vmatpush1.msra.mxu0 %v729
    %1057 = vmatprep.subr.mxu0 %v734
    %1058 = vmatpush1.msra.mxu0 %v733
    %1059 = vmatprep.subr.mxu0 %v738
    %1060 = vmatpush1.msra.mxu0 %v737
    %1061 = vmatprep.subr.mxu0 %v742
    %1062 = vmatpush1.msra.mxu0 %v741
    %1063 = vmatprep.subr.mxu0 %v746
    %1064 = vmatpush1.msra.mxu0 %v745
    %1065 = vmatprep.subr.mxu0 %v750
    %1066 = vmatpush1.msra.mxu0 %v749
    %1067 = vmatprep.subr.mxu0 %v754
    %1068 = vmatpush1.msra.mxu0 %v753
    %1069 = vmatprep.subr.mxu0 %v758
    %1070 = vmatpush1.msra.mxu0 %v757
    %1071 = vmatprep.subr.mxu0 %v762
    %1072 = vmatpush1.msra.mxu0 %v761
    %1073 = vmatprep.subr.mxu0 %v766
    %1074 = vmatpush1.msra.mxu0 %v765
    %1075 = vmatprep.subr.mxu0 %v770
    %1076 = vmatpush1.msra.mxu0 %v769
    %1077 = vmatprep.subr.mxu0 %v774
    %1078 = vmatpush1.msra.mxu0 %v773
    %1079 = vmatprep.subr.mxu0 %v778
    %1080 = vmatpush1.msra.mxu0 %v777
    %1081 = vmatprep.subr.mxu0 %v782
    %1082 = vmatpush1.msra.mxu0 %v781
    %1083 = vmatprep.subr.mxu0 %v786
    %1084 = vmatpush1.msra.mxu0 %v785
    %1085 = vmatprep.subr.mxu0 %v790
    %1086 = vmatpush1.msra.mxu0 %v789
    %1087 = vmatprep.subr.mxu0 %v794
    %1088 = vmatpush1.msra.mxu0 %v793
    %1089 = vmatprep.subr.mxu0 %v798
    %1090 = vmatpush1.msra.mxu0 %v797
    %1091 = vmatprep.subr.mxu0 %v802
    %1092 = vmatpush1.msra.mxu0 %v801
    %1093 = vmatprep.subr.mxu0 %v806
    %1094 = vmatpush1.msra.mxu0 %v805
    %1095 = vmatprep.subr.mxu0 %v810
    %1096 = vmatpush1.msra.mxu0 %v809
    %1097 = vmatprep.subr.mxu0 %v814
    %1098 = vmatpush1.msra.mxu0 %v813
    %1099 = vmatprep.subr.mxu0 %v818
    %1100 = vmatpush1.msra.mxu0 %v817
    %1101 = vmatprep.subr.mxu0 %v822
    %1102 = vmatpush1.msra.mxu0 %v821
    %1103 = vmatprep.subr.mxu0 %v826
    %1104 = vmatpush1.msra.mxu0 %v825
    %1105 = vmatprep.subr.mxu0 %v830
    %1106 = vmatpush1.msra.mxu0 %v829
    %1107 = vmatprep.subr.mxu0 %v834
    %1108 = vmatpush1.msra.mxu0 %v833
    %1109 = vmatprep.subr.mxu0 %v838
    %1110 = vmatpush1.msra.mxu0 %v837
    %1111 = vmatprep.subr.mxu0 %v842
    %1112 = vmatpush1.msra.mxu0 %v841
    %1113 = vmatprep.subr.mxu0 %v846
    %1114 = vmatpush1.msra.mxu0 %v845
    %1115 = vmatprep.subr.mxu0 %v850
    %1116 = vmatpush1.msra.mxu0 %v849
    %1117 = vmatprep.subr.mxu0 %v854
    %1118 = vmatpush1.msra.mxu0 %v853
    %1119 = vmatprep.mubr.f32.mxu0 %v907
    %1120 = vmatmul.mubr.f32.gmra.mrb[0].mxu0 %v899
    %v1121 = vpop.f32.mrb[0].mxu0
    %v1122 = vadd.f32 0.0, %v1121
    %v1123 = vpop.f32.mrb[0].mxu0
    %v1124 = vadd.f32 0.0, %v1123
    %1125 = vdwg.mxu0
    %1126 = vmatprep.subr.mxu0 %v858
    %1127 = vmatpush1.msra.mxu0 %v857
    %1128 = vmatprep.subr.mxu0 %v862
    %1129 = vmatpush1.msra.mxu0 %v861
    %1130 = vmatprep.subr.mxu0 %v866
    %1131 = vmatpush1.msra.mxu0 %v865
    %1132 = vmatprep.subr.mxu0 %v870
    %1133 = vmatpush1.msra.mxu0 %v869
    %1134 = vmatprep.subr.mxu0 %v874
    %1135 = vmatpush1.msra.mxu0 %v873
    %1136 = vmatprep.subr.mxu0 %v878
    %1137 = vmatpush1.msra.mxu0 %v877
    %1138 = vmatprep.subr.mxu0 %v882
    %1139 = vmatpush1.msra.mxu0 %v881
    %1140 = vmatprep.subr.mxu0 %v886
    %1141 = vmatpush1.msra.mxu0 %v885
    %1142 = vmatprep.subr.mxu0 %v890
    %1143 = vmatpush1.msra.mxu0 %v889
    %1144 = vmatprep.subr.mxu0 0.0
    %1145 = vmatpush1.msra.mxu0 0.0
    %1146 = vmatprep.subr.mxu0 0.0
    %1147 = vmatpush1.msra.mxu0 0.0
    %1148 = vmatprep.subr.mxu0 0.0
    %1149 = vmatpush1.msra.mxu0 0.0
    %1150 = vmatprep.subr.mxu0 0.0
    %1151 = vmatpush1.msra.mxu0 0.0
    %1152 = vmatprep.subr.mxu0 0.0
    %1153 = vmatpush1.msra.mxu0 0.0
    %1154 = vmatprep.subr.mxu0 0.0
    %1155 = vmatpush1.msra.mxu0 0.0
    %1156 = vmatprep.subr.mxu0 0.0
    %1157 = vmatpush1.msra.mxu0 0.0
    %1158 = vmatprep.subr.mxu0 0.0
    %1159 = vmatpush1.msra.mxu0 0.0
    %1160 = vmatprep.subr.mxu0 0.0
    %1161 = vmatpush1.msra.mxu0 0.0
    %1162 = vmatprep.subr.mxu0 0.0
    %1163 = vmatpush1.msra.mxu0 0.0
    %1164 = vmatprep.subr.mxu0 0.0
    %1165 = vmatpush1.msra.mxu0 0.0
    %1166 = vmatprep.subr.mxu0 0.0
    %1167 = vmatpush1.msra.mxu0 0.0
    %1168 = vmatprep.subr.mxu0 0.0
    %1169 = vmatpush1.msra.mxu0 0.0
    %1170 = vmatprep.subr.mxu0 0.0
    %1171 = vmatpush1.msra.mxu0 0.0
    %1172 = vmatprep.subr.mxu0 0.0
    %1173 = vmatpush1.msra.mxu0 0.0
    %1174 = vmatprep.subr.mxu0 0.0
    %1175 = vmatpush1.msra.mxu0 0.0
    %1176 = vmatprep.subr.mxu0 0.0
    %1177 = vmatpush1.msra.mxu0 0.0
    %1178 = vmatprep.subr.mxu0 0.0
    %1179 = vmatpush1.msra.mxu0 0.0
    %1180 = vmatprep.subr.mxu0 0.0
    %1181 = vmatpush1.msra.mxu0 0.0
    %1182 = vmatprep.subr.mxu0 0.0
    %1183 = vmatpush1.msra.mxu0 0.0
    %1184 = vmatprep.subr.mxu0 0.0
    %1185 = vmatpush1.msra.mxu0 0.0
    %1186 = vmatprep.subr.mxu0 0.0
    %1187 = vmatpush1.msra.mxu0 0.0
    %1188 = vmatprep.subr.mxu0 0.0
    %1189 = vmatpush1.msra.mxu0 0.0
    %1190 = vmatprep.mubr.f32.mxu0 0.0
    %1191 = vmatmul.mubr.f32.gmra.mrb[0].mxu0 %v911
    %v1192 = vpop.f32.mrb[0].mxu0
    %v1193 = vadd.f32 %v1122, %v1192
    %v1194 = vpop.f32.mrb[0].mxu0
    %v1195 = vadd.f32 %v1124, %v1194
    %1196 = vdwg.mxu0
    %v1197 = vadd.f32 %v651, %v1051
    %v1198 = vadd.f32 %v653, %v1053
    %v1199 = vadd.f32 %v722, %v1193
    %v1200 = vadd.f32 %v724, %v1195
    %v1201 = vld [vmem:[#allocation9] sm:$0xf]
    %v1203 = vlaneseq
    %v1204 = vshrl.u32 %v1203, 7
    %v1205 = vsub.s32 0, %v1204
    %v1206 = vrot.slane %v1201, %v1205
    %v1207 = vlaneseq
    %v1208 = vshrl.u32 %v1207, 7
    %v1209 = vsub.s32 1, %v1208
    %v1210 = vrot.slane %v1201, %v1209
    %v1211 = vlaneseq
    %v1212 = vshrl.u32 %v1211, 7
    %v1213 = vsub.s32 2, %v1212
    %v1214 = vrot.slane %v1201, %v1213
    %v1215 = vlaneseq
    %v1216 = vshrl.u32 %v1215, 7
    %v1217 = vsub.s32 3, %v1216
    %v1218 = vrot.slane %v1201, %v1217
    %v1223 = vadd.f32 %v1197, %v1206
    %v1224 = vadd.f32 %v1198, %v1210
    %v1225 = vadd.f32 %v1199, %v1214
    %v1226 = vadd.f32 %v1200, %v1218
    %v1231 = vcombine.low %v1223, %v1224
    %v1232 = vcombine.low %v1225, %v1226
    %v1234 = vunpack.c.l.s4 1983009808
    %v1235 = vunpack.c.0.s8 %v1234
    %v1236 = vlaneseq
    %v1237 = vshrl.u32 %v1236, 7
    %v1238 = vsub.s32 %v1235, %v1237
    %v1239 = vrot.slane %v1231, %v1238
    %v1241 = vunpack.c.l.s4 1983009808
    %v1242 = vunpack.c.0.s8 %v1241
    %v1243 = vlaneseq
    %v1244 = vshrl.u32 %v1243, 7
    %v1245 = vsub.s32 %v1242, %v1244
    %v1246 = vrot.slane %v1232, %v1245
    %v1247 = vcombine.low %v1239, %v1246
    %1249 = vst [vmem:[#allocation2] sm:$0xff] %v1247
    %v1250 = vld [vmem:[%s10] sm:$0xff]
    %v1251 = vld [vmem:[%s10 + $0x8] sm:$0xff]
    %v1252 = vld [vmem:[%s10 + $0x10] sm:$0xff]
    %v1253 = vld [vmem:[%s10 + $0x18] sm:$0xff]
    %v1254 = vld [vmem:[%s10 + $0x20] sm:$0xff]
    %v1255 = vld [vmem:[%s10 + $0x28] sm:$0xff]
    %v1256 = vld [vmem:[%s10 + $0x30] sm:$0xff]
    %v1257 = vld [vmem:[%s10 + $0x38] sm:$0xff]
    %v1258 = vld [vmem:[%s10 + $0x40] sm:$0xff]
    %v1259 = vld [vmem:[%s10 + $0x48] sm:$0xff]
    %v1260 = vld [vmem:[%s10 + $0x50] sm:$0xff]
    %v1261 = vld [vmem:[%s10 + $0x58] sm:$0xff]
    %v1262 = vld [vmem:[%s10 + $0x60] sm:$0xff]
    %v1263 = vld [vmem:[%s10 + $0x68] sm:$0xff]
    %v1264 = vld [vmem:[%s10 + $0x70] sm:$0xff]
    %v1265 = vld [vmem:[%s10 + $0x78] sm:$0xff]
    %v1266 = vld [vmem:[%s10 + $0x80] sm:$0xff]
    %v1267 = vld [vmem:[%s10 + $0x88] sm:$0xff]
    %v1268 = vld [vmem:[%s10 + $0x90] sm:$0xff]
    %v1269 = vld [vmem:[%s10 + $0x98] sm:$0xff]
    %v1270 = vld [vmem:[%s10 + $0xa0] sm:$0xff]
    %v1271 = vld [vmem:[%s10 + $0xa8] sm:$0xff]
    %v1272 = vld [vmem:[%s10 + $0xb0] sm:$0xff]
    %v1273 = vld [vmem:[%s10 + $0xb8] sm:$0xff]
    %v1274 = vld [vmem:[%s10 + $0xc0] sm:$0xff]
    %v1275 = vld [vmem:[%s10 + $0xc8] sm:$0xff]
    %v1276 = vld [vmem:[%s10 + $0xd0] sm:$0xff]
    %v1277 = vld [vmem:[%s10 + $0xd8] sm:$0xff]
    %v1278 = vld [vmem:[%s10 + $0xe0] sm:$0xff]
    %v1279 = vld [vmem:[%s10 + $0xe8] sm:$0xff]
    %v1280 = vld [vmem:[%s10 + $0xf0] sm:$0xff]
    %v1281 = vld [vmem:[%s10 + $0xf8] sm:$0xff]
    %v1282 = vld [vmem:[%s10 + $0x100] sm:$0xff]
    %v1283 = vld [vmem:[%s10 + $0x108] sm:$0xff]
    %v1284 = vld [vmem:[%s10 + $0x110] sm:$0xff]
    %v1285 = vld [vmem:[%s10 + $0x118] sm:$0xff]
    %v1286 = vld [vmem:[%s10 + $0x120] sm:$0xff]
    %v1287 = vld [vmem:[%s10 + $0x128] sm:$0xff]
    %v1288 = vld [vmem:[%s10 + $0x130] sm:$0xff]
    %v1289 = vld [vmem:[%s10 + $0x138] sm:$0xff]
    %v1290 = vld [vmem:[%s10 + $0x140] sm:$0xff]
    %v1291 = vld [vmem:[%s10 + $0x148] sm:$0xff]
    %v1292 = vld [vmem:[%s10 + $0x150] sm:$0xff]
    %v1293 = vld [vmem:[%s10 + $0x158] sm:$0xff]
    %v1294 = vld [vmem:[%s10 + $0x160] sm:$0xff]
    %v1295 = vld [vmem:[%s10 + $0x168] sm:$0xff]
    %v1296 = vld [vmem:[%s10 + $0x170] sm:$0xff]
    %v1297 = vld [vmem:[%s10 + $0x178] sm:$0xff]
    %v1298 = vld [vmem:[%s10 + $0x180] sm:$0xff]
    %v1299 = vld [vmem:[%s10 + $0x188] sm:$0xff]
    %v1300 = vld [vmem:[%s10 + $0x190] sm:$0xff]
    %v1301 = vld [vmem:[%s10 + $0x198] sm:$0xff]
    %v1302 = vld [vmem:[%s10 + $0x1a0] sm:$0xff]
    %v1303 = vld [vmem:[%s10 + $0x1a8] sm:$0xff]
    %v1304 = vld [vmem:[%s10 + $0x1b0] sm:$0xff]
    %v1305 = vld [vmem:[%s10 + $0x1b8] sm:$0xff]
    %v1306 = vld [vmem:[%s10 + $0x1c0] sm:$0xff]
    %v1307 = vld [vmem:[%s10 + $0x1c8] sm:$0xff]
    %v1308 = vld [vmem:[%s10 + $0x1d0] sm:$0xff]
    %v1309 = vld [vmem:[%s10 + $0x1d8] sm:$0xff]
    %v1310 = vld [vmem:[%s10 + $0x1e0] sm:$0xff]
    %v1311 = vld [vmem:[%s10 + $0x1e8] sm:$0xff]
    %v1312 = vld [vmem:[%s10 + $0x1f0] sm:$0xff]
    %v1313 = vld [vmem:[%s10 + $0x1f8] sm:$0xff]
    %v1314 = vld [vmem:[%s12] sm:$0xff]
    %v1315 = vld [vmem:[%s12 + $0x8] sm:$0xff]
    %v1316 = vld [vmem:[%s12 + $0x10] sm:$0xff]
    %v1317 = vld [vmem:[%s12 + $0x18] sm:$0xff]
    %v1318 = vld [vmem:[%s12 + $0x20] sm:$0xff]
    %v1319 = vld [vmem:[%s12 + $0x28] sm:$0xff]
    %v1320 = vld [vmem:[%s12 + $0x30] sm:$0xff]
    %v1321 = vld [vmem:[%s12 + $0x38] sm:$0xff]
    %v1322 = vld [vmem:[%s12 + $0x40] sm:$0xff]
    %v1323 = vld [vmem:[%s12 + $0x48] sm:$0xff]
    %v1324 = vld [vmem:[%s12 + $0x50] sm:$0xff]
    %v1325 = vld [vmem:[%s12 + $0x58] sm:$0xff]
    %v1326 = vld [vmem:[%s12 + $0x60] sm:$0xff]
    %v1327 = vld [vmem:[%s12 + $0x68] sm:$0xff]
    %v1328 = vld [vmem:[%s12 + $0x70] sm:$0xff]
    %v1329 = vld [vmem:[%s12 + $0x78] sm:$0xff]
    %v1330 = vld [vmem:[#allocation3] sm:$0x1]
    %v1331 = vld [vmem:[#allocation2] ss:$2 sm:$0xf]
    %1332 = vmatprep.subr.mxu0 %v1251
    %1333 = vmatpush1.msra.mxu0 %v1250
    %1334 = vmatprep.subr.mxu0 %v1255
    %1335 = vmatpush1.msra.mxu0 %v1254
    %1336 = vmatprep.subr.mxu0 %v1259
    %1337 = vmatpush1.msra.mxu0 %v1258
    %1338 = vmatprep.subr.mxu0 %v1263
    %1339 = vmatpush1.msra.mxu0 %v1262
    %1340 = vmatprep.subr.mxu0 %v1267
    %1341 = vmatpush1.msra.mxu0 %v1266
    %1342 = vmatprep.subr.mxu0 %v1271
    %1343 = vmatpush1.msra.mxu0 %v1270
    %1344 = vmatprep.subr.mxu0 %v1275
    %1345 = vmatpush1.msra.mxu0 %v1274
    %1346 = vmatprep.subr.mxu0 %v1279
    %1347 = vmatpush1.msra.mxu0 %v1278
    %1348 = vmatprep.subr.mxu0 %v1283
    %1349 = vmatpush1.msra.mxu0 %v1282
    %1350 = vmatprep.subr.mxu0 %v1287
    %1351 = vmatpush1.msra.mxu0 %v1286
    %1352 = vmatprep.subr.mxu0 %v1291
    %1353 = vmatpush1.msra.mxu0 %v1290
    %1354 = vmatprep.subr.mxu0 %v1295
    %1355 = vmatpush1.msra.mxu0 %v1294
    %1356 = vmatprep.subr.mxu0 %v1299
    %1357 = vmatpush1.msra.mxu0 %v1298
    %1358 = vmatprep.subr.mxu0 %v1303
    %1359 = vmatpush1.msra.mxu0 %v1302
    %1360 = vmatprep.subr.mxu0 %v1307
    %1361 = vmatpush1.msra.mxu0 %v1306
    %1362 = vmatprep.subr.mxu0 %v1311
    %1363 = vmatpush1.msra.mxu0 %v1310
    %1364 = vmatprep.subr.mxu0 0.0
    %1365 = vmatpush1.msra.mxu0 0.0
    %1366 = vmatprep.subr.mxu0 0.0
    %1367 = vmatpush1.msra.mxu0 0.0
    %1368 = vmatprep.subr.mxu0 0.0
    %1369 = vmatpush1.msra.mxu0 0.0
    %1370 = vmatprep.subr.mxu0 0.0
    %1371 = vmatpush1.msra.mxu0 0.0
    %1372 = vmatprep.subr.mxu0 0.0
    %1373 = vmatpush1.msra.mxu0 0.0
    %1374 = vmatprep.subr.mxu0 0.0
    %1375 = vmatpush1.msra.mxu0 0.0
    %1376 = vmatprep.subr.mxu0 0.0
    %1377 = vmatpush1.msra.mxu0 0.0
    %1378 = vmatprep.subr.mxu0 0.0
    %1379 = vmatpush1.msra.mxu0 0.0
    %1380 = vmatprep.subr.mxu0 0.0
    %1381 = vmatpush1.msra.mxu0 0.0
    %1382 = vmatprep.subr.mxu0 0.0
    %1383 = vmatpush1.msra.mxu0 0.0
    %1384 = vmatprep.subr.mxu0 0.0
    %1385 = vmatpush1.msra.mxu0 0.0
    %1386 = vmatprep.subr.mxu0 0.0
    %1387 = vmatpush1.msra.mxu0 0.0
    %1388 = vmatprep.subr.mxu0 0.0
    %1389 = vmatpush1.msra.mxu0 0.0
    %1390 = vmatprep.subr.mxu0 0.0
    %1391 = vmatpush1.msra.mxu0 0.0
    %1392 = vmatprep.subr.mxu0 0.0
    %1393 = vmatpush1.msra.mxu0 0.0
    %1394 = vmatprep.subr.mxu0 0.0
    %1395 = vmatpush1.msra.mxu0 0.0
    %1396 = vmatprep.mubr.f32.mxu0 0.0
    %1397 = vmatmul.mubr.f32.gmra.mrb[0].mxu0 0.0
    %v1398 = vpop.f32.mrb[0].mxu0
    %v1399 = vadd.f32 0.0, %v1398
    %v1400 = vpop.f32.mrb[0].mxu0
    %v1401 = vadd.f32 0.0, %v1400
    %1402 = vdwg.mxu0
    %1403 = vmatprep.subr.mxu0 %v1253
    %1404 = vmatpush1.msra.mxu0 %v1252
    %1405 = vmatprep.subr.mxu0 %v1257
    %1406 = vmatpush1.msra.mxu0 %v1256
    %1407 = vmatprep.subr.mxu0 %v1261
    %1408 = vmatpush1.msra.mxu0 %v1260
    %1409 = vmatprep.subr.mxu0 %v1265
    %1410 = vmatpush1.msra.mxu0 %v1264
    %1411 = vmatprep.subr.mxu0 %v1269
    %1412 = vmatpush1.msra.mxu0 %v1268
    %1413 = vmatprep.subr.mxu0 %v1273
    %1414 = vmatpush1.msra.mxu0 %v1272
    %1415 = vmatprep.subr.mxu0 %v1277
    %1416 = vmatpush1.msra.mxu0 %v1276
    %1417 = vmatprep.subr.mxu0 %v1281
    %1418 = vmatpush1.msra.mxu0 %v1280
    %1419 = vmatprep.subr.mxu0 %v1285
    %1420 = vmatpush1.msra.mxu0 %v1284
    %1421 = vmatprep.subr.mxu0 %v1289
    %1422 = vmatpush1.msra.mxu0 %v1288
    %1423 = vmatprep.subr.mxu0 %v1293
    %1424 = vmatpush1.msra.mxu0 %v1292
    %1425 = vmatprep.subr.mxu0 %v1297
    %1426 = vmatpush1.msra.mxu0 %v1296
    %1427 = vmatprep.subr.mxu0 %v1301
    %1428 = vmatpush1.msra.mxu0 %v1300
    %1429 = vmatprep.subr.mxu0 %v1305
    %1430 = vmatpush1.msra.mxu0 %v1304
    %1431 = vmatprep.subr.mxu0 %v1309
    %1432 = vmatpush1.msra.mxu0 %v1308
    %1433 = vmatprep.subr.mxu0 %v1313
    %1434 = vmatpush1.msra.mxu0 %v1312
    %1435 = vmatprep.subr.mxu0 0.0
    %1436 = vmatpush1.msra.mxu0 0.0
    %1437 = vmatprep.subr.mxu0 0.0
    %1438 = vmatpush1.msra.mxu0 0.0
    %1439 = vmatprep.subr.mxu0 0.0
    %1440 = vmatpush1.msra.mxu0 0.0
    %1441 = vmatprep.subr.mxu0 0.0
    %1442 = vmatpush1.msra.mxu0 0.0
    %1443 = vmatprep.subr.mxu0 0.0
    %1444 = vmatpush1.msra.mxu0 0.0
    %1445 = vmatprep.subr.mxu0 0.0
    %1446 = vmatpush1.msra.mxu0 0.0
    %1447 = vmatprep.subr.mxu0 0.0
    %1448 = vmatpush1.msra.mxu0 0.0
    %1449 = vmatprep.subr.mxu0 0.0
    %1450 = vmatpush1.msra.mxu0 0.0
    %1451 = vmatprep.subr.mxu0 0.0
    %1452 = vmatpush1.msra.mxu0 0.0
    %1453 = vmatprep.subr.mxu0 0.0
    %1454 = vmatpush1.msra.mxu0 0.0
    %1455 = vmatprep.subr.mxu0 0.0
    %1456 = vmatpush1.msra.mxu0 0.0
    %1457 = vmatprep.subr.mxu0 0.0
    %1458 = vmatpush1.msra.mxu0 0.0
    %1459 = vmatprep.subr.mxu0 0.0
    %1460 = vmatpush1.msra.mxu0 0.0
    %1461 = vmatprep.subr.mxu0 0.0
    %1462 = vmatpush1.msra.mxu0 0.0
    %1463 = vmatprep.subr.mxu0 0.0
    %1464 = vmatpush1.msra.mxu0 0.0
    %1465 = vmatprep.subr.mxu0 0.0
    %1466 = vmatpush1.msra.mxu0 0.0
    %1467 = vmatprep.mubr.f32.mxu0 0.0
    %1468 = vmatmul.mubr.f32.gmra.mrb[0].mxu0 0.0
    %v1469 = vpop.f32.mrb[0].mxu0
    %v1470 = vadd.f32 0.0, %v1469
    %v1471 = vpop.f32.mrb[0].mxu0
    %v1472 = vadd.f32 0.0, %v1471
    %1473 = vdwg.mxu0
    %v1478 = vcombine.low %v1399, %v1401
    %v1479 = vcombine.low %v1470, %v1472
    %v1481 = vunpack.c.l.s4 1966171168
    %v1482 = vunpack.c.0.s8 %v1481
    %v1483 = vlaneseq
    %v1484 = vshrl.u32 %v1483, 7
    %v1485 = vsub.s32 %v1482, %v1484
    %v1486 = vrot.slane %v1478, %v1485
    %v1488 = vunpack.c.l.s4 1966171168
    %v1489 = vunpack.c.0.s8 %v1488
    %v1490 = vlaneseq
    %v1491 = vshrl.u32 %v1490, 7
    %v1492 = vsub.s32 %v1489, %v1491
    %v1493 = vrot.slane %v1479, %v1492
    %v1494 = vcombine.low %v1486, %v1493
    %v1496 = vunpack.c.l.s4 1966171168
    %v1497 = vunpack.c.0.s8 %v1496
    %v1498 = vlaneseq
    %v1499 = vshrl.u32 %v1498, 7
    %v1500 = vsub.s32 %v1497, %v1499
    %v1501 = vrot.slane %v1494, %v1500
    %v1503 = vadd.f32 %v1331, %v1501
    %v1504 = vxor.u32 %v1503, 2147483648
    %v1505 = vmul.f32 %v1504, 1.442695
    %v1506 = vpow.pop %v1505
    %v1507 = vadd.f32 %v1506, 1.0
    %v1508 = vrcp.pop %v1507
    %v1509 = vmul.f32 1.0, %v1508
    %v1511 = vrot.slane %v1503, 1
    %v1513 = vxor.u32 %v1511, 2147483648
    %v1514 = vmul.f32 %v1513, 1.442695
    %v1515 = vpow.pop %v1514
    %v1516 = vadd.f32 %v1515, 1.0
    %v1517 = vrcp.pop %v1516
    %v1518 = vmul.f32 1.0, %v1517
    %v1519 = vrot.slane %v1503, 2
    %v1521 = vtanh.pop %v1519
    %v1522 = vrot.slane %v1503, 3
    %v1524 = vxor.u32 %v1522, 2147483648
    %v1525 = vmul.f32 %v1524, 1.442695
    %v1526 = vpow.pop %v1525
    %v1527 = vadd.f32 %v1526, 1.0
    %v1528 = vrcp.pop %v1527
    %v1529 = vmul.f32 1.0, %v1528
    %v1530 = vmul.f32 %v1518, 0.0
    %v1531 = vmul.f32 %v1509, %v1521
    %v1532 = vadd.f32 %v1530, %v1531
    %v1533 = vtanh.pop %v1532
    %v1534 = vmul.f32 %v1529, %v1533
    %1535 = vmatprep.subr.mxu0 0.0
    %1536 = vmatpush1.msra.mxu0 %v1314
    %1537 = vmatprep.subr.mxu0 0.0
    %1538 = vmatpush1.msra.mxu0 %v1315
    %1539 = vmatprep.subr.mxu0 0.0
    %1540 = vmatpush1.msra.mxu0 %v1316
    %1541 = vmatprep.subr.mxu0 0.0
    %1542 = vmatpush1.msra.mxu0 %v1317
    %1543 = vmatprep.subr.mxu0 0.0
    %1544 = vmatpush1.msra.mxu0 %v1318
    %1545 = vmatprep.subr.mxu0 0.0
    %1546 = vmatpush1.msra.mxu0 %v1319
    %1547 = vmatprep.subr.mxu0 0.0
    %1548 = vmatpush1.msra.mxu0 %v1320
    %1549 = vmatprep.subr.mxu0 0.0
    %1550 = vmatpush1.msra.mxu0 %v1321
    %1551 = vmatprep.subr.mxu0 0.0
    %1552 = vmatpush1.msra.mxu0 %v1322
    %1553 = vmatprep.subr.mxu0 0.0
    %1554 = vmatpush1.msra.mxu0 %v1323
    %1555 = vmatprep.subr.mxu0 0.0
    %1556 = vmatpush1.msra.mxu0 %v1324
    %1557 = vmatprep.subr.mxu0 0.0
    %1558 = vmatpush1.msra.mxu0 %v1325
    %1559 = vmatprep.subr.mxu0 0.0
    %1560 = vmatpush1.msra.mxu0 %v1326
    %1561 = vmatprep.subr.mxu0 0.0
    %1562 = vmatpush1.msra.mxu0 %v1327
    %1563 = vmatprep.subr.mxu0 0.0
    %1564 = vmatpush1.msra.mxu0 %v1328
    %1565 = vmatprep.subr.mxu0 0.0
    %1566 = vmatpush1.msra.mxu0 %v1329
    %1567 = vmatprep.subr.mxu0 0.0
    %1568 = vmatpush1.msra.mxu0 0.0
    %1569 = vmatprep.subr.mxu0 0.0
    %1570 = vmatpush1.msra.mxu0 0.0
    %1571 = vmatprep.subr.mxu0 0.0
    %1572 = vmatpush1.msra.mxu0 0.0
    %1573 = vmatprep.subr.mxu0 0.0
    %1574 = vmatpush1.msra.mxu0 0.0
    %1575 = vmatprep.subr.mxu0 0.0
    %1576 = vmatpush1.msra.mxu0 0.0
    %1577 = vmatprep.subr.mxu0 0.0
    %1578 = vmatpush1.msra.mxu0 0.0
    %1579 = vmatprep.subr.mxu0 0.0
    %1580 = vmatpush1.msra.mxu0 0.0
    %1581 = vmatprep.subr.mxu0 0.0
    %1582 = vmatpush1.msra.mxu0 0.0
    %1583 = vmatprep.subr.mxu0 0.0
    %1584 = vmatpush1.msra.mxu0 0.0
    %1585 = vmatprep.subr.mxu0 0.0
    %1586 = vmatpush1.msra.mxu0 0.0
    %1587 = vmatprep.subr.mxu0 0.0
    %1588 = vmatpush1.msra.mxu0 0.0
    %1589 = vmatprep.subr.mxu0 0.0
    %1590 = vmatpush1.msra.mxu0 0.0
    %1591 = vmatprep.subr.mxu0 0.0
    %1592 = vmatpush1.msra.mxu0 0.0
    %1593 = vmatprep.subr.mxu0 0.0
    %1594 = vmatpush1.msra.mxu0 0.0
    %1595 = vmatprep.subr.mxu0 0.0
    %1596 = vmatpush1.msra.mxu0 0.0
    %1597 = vmatprep.subr.mxu0 0.0
    %1598 = vmatpush1.msra.mxu0 0.0
    %1599 = vmatprep.mubr.f32.mxu0 0.0
    %1600 = vmatmul.mubr.f32.gmra.mrb[0].mxu0 %v1534
    %v1601 = vpop.f32.mrb[0].mxu0
    %v1602 = vadd.f32 %v1330, %v1601
    %v1603 = vpop.f32.mrb[0].mxu0
    %1604 = vdwg.mxu0
    %v1605 = vxor.u32 %v1602, 2147483648
    %v1606 = vmul.f32 %v1605, 1.442695
    %v1607 = vpow.pop %v1606
    %v1608 = vadd.f32 %v1607, 1.0
    %v1609 = vrcp.pop %v1608
    %v1610 = vmul.f32 1.0, %v1609
    %vm1611 = vcmask 0
    %1612 = vst.msk [vmem:[%s14] sm:$0x1] %vm1611, %v1610
    %s1613 = scalar_lea.vmem [#allocation2], 1
    %v1614 = vld [vmem:[%s1613] ss:$2 sm:$0xf]
    %1615 = vmatprep.subr.mxu0 %v1251
    %1616 = vmatpush1.msra.mxu0 %v1250
    %1617 = vmatprep.subr.mxu0 %v1255
    %1618 = vmatpush1.msra.mxu0 %v1254
    %1619 = vmatprep.subr.mxu0 %v1259
    %1620 = vmatpush1.msra.mxu0 %v1258
    %1621 = vmatprep.subr.mxu0 %v1263
    %1622 = vmatpush1.msra.mxu0 %v1262
    %1623 = vmatprep.subr.mxu0 %v1267
    %1624 = vmatpush1.msra.mxu0 %v1266
    %1625 = vmatprep.subr.mxu0 %v1271
    %1626 = vmatpush1.msra.mxu0 %v1270
    %1627 = vmatprep.subr.mxu0 %v1275
    %1628 = vmatpush1.msra.mxu0 %v1274
    %1629 = vmatprep.subr.mxu0 %v1279
    %1630 = vmatpush1.msra.mxu0 %v1278
    %1631 = vmatprep.subr.mxu0 %v1283
    %1632 = vmatpush1.msra.mxu0 %v1282
    %1633 = vmatprep.subr.mxu0 %v1287
    %1634 = vmatpush1.msra.mxu0 %v1286
    %1635 = vmatprep.subr.mxu0 %v1291
    %1636 = vmatpush1.msra.mxu0 %v1290
    %1637 = vmatprep.subr.mxu0 %v1295
    %1638 = vmatpush1.msra.mxu0 %v1294
    %1639 = vmatprep.subr.mxu0 %v1299
    %1640 = vmatpush1.msra.mxu0 %v1298
    %1641 = vmatprep.subr.mxu0 %v1303
    %1642 = vmatpush1.msra.mxu0 %v1302
    %1643 = vmatprep.subr.mxu0 %v1307
    %1644 = vmatpush1.msra.mxu0 %v1306
    %1645 = vmatprep.subr.mxu0 %v1311
    %1646 = vmatpush1.msra.mxu0 %v1310
    %1647 = vmatprep.subr.mxu0 0.0
    %1648 = vmatpush1.msra.mxu0 0.0
    %1649 = vmatprep.subr.mxu0 0.0
    %1650 = vmatpush1.msra.mxu0 0.0
    %1651 = vmatprep.subr.mxu0 0.0
    %1652 = vmatpush1.msra.mxu0 0.0
    %1653 = vmatprep.subr.mxu0 0.0
    %1654 = vmatpush1.msra.mxu0 0.0
    %1655 = vmatprep.subr.mxu0 0.0
    %1656 = vmatpush1.msra.mxu0 0.0
    %1657 = vmatprep.subr.mxu0 0.0
    %1658 = vmatpush1.msra.mxu0 0.0
    %1659 = vmatprep.subr.mxu0 0.0
    %1660 = vmatpush1.msra.mxu0 0.0
    %1661 = vmatprep.subr.mxu0 0.0
    %1662 = vmatpush1.msra.mxu0 0.0
    %1663 = vmatprep.subr.mxu0 0.0
    %1664 = vmatpush1.msra.mxu0 0.0
    %1665 = vmatprep.subr.mxu0 0.0
    %1666 = vmatpush1.msra.mxu0 0.0
    %1667 = vmatprep.subr.mxu0 0.0
    %1668 = vmatpush1.msra.mxu0 0.0
    %1669 = vmatprep.subr.mxu0 0.0
    %1670 = vmatpush1.msra.mxu0 0.0
    %1671 = vmatprep.subr.mxu0 0.0
    %1672 = vmatpush1.msra.mxu0 0.0
    %1673 = vmatprep.subr.mxu0 0.0
    %1674 = vmatpush1.msra.mxu0 0.0
    %1675 = vmatprep.subr.mxu0 0.0
    %1676 = vmatpush1.msra.mxu0 0.0
    %1677 = vmatprep.subr.mxu0 0.0
    %1678 = vmatpush1.msra.mxu0 0.0
    %1679 = vmatprep.mubr.f32.mxu0 0.0
    %1680 = vmatmul.mubr.f32.gmra.mrb[0].mxu0 %v1534
    %v1681 = vpop.f32.mrb[0].mxu0
    %v1682 = vadd.f32 0.0, %v1681
    %v1683 = vpop.f32.mrb[0].mxu0
    %v1684 = vadd.f32 0.0, %v1683
    %1685 = vdwg.mxu0
    %1686 = vmatprep.subr.mxu0 %v1253
    %1687 = vmatpush1.msra.mxu0 %v1252
    %1688 = vmatprep.subr.mxu0 %v1257
    %1689 = vmatpush1.msra.mxu0 %v1256
    %1690 = vmatprep.subr.mxu0 %v1261
    %1691 = vmatpush1.msra.mxu0 %v1260
    %1692 = vmatprep.subr.mxu0 %v1265
    %1693 = vmatpush1.msra.mxu0 %v1264
    %1694 = vmatprep.subr.mxu0 %v1269
    %1695 = vmatpush1.msra.mxu0 %v1268
    %1696 = vmatprep.subr.mxu0 %v1273
    %1697 = vmatpush1.msra.mxu0 %v1272
    %1698 = vmatprep.subr.mxu0 %v1277
    %1699 = vmatpush1.msra.mxu0 %v1276
    %1700 = vmatprep.subr.mxu0 %v1281
    %1701 = vmatpush1.msra.mxu0 %v1280
    %1702 = vmatprep.subr.mxu0 %v1285
    %1703 = vmatpush1.msra.mxu0 %v1284
    %1704 = vmatprep.subr.mxu0 %v1289
    %1705 = vmatpush1.msra.mxu0 %v1288
    %1706 = vmatprep.subr.mxu0 %v1293
    %1707 = vmatpush1.msra.mxu0 %v1292
    %1708 = vmatprep.subr.mxu0 %v1297
    %1709 = vmatpush1.msra.mxu0 %v1296
    %1710 = vmatprep.subr.mxu0 %v1301
    %1711 = vmatpush1.msra.mxu0 %v1300
    %1712 = vmatprep.subr.mxu0 %v1305
    %1713 = vmatpush1.msra.mxu0 %v1304
    %1714 = vmatprep.subr.mxu0 %v1309
    %1715 = vmatpush1.msra.mxu0 %v1308
    %1716 = vmatprep.subr.mxu0 %v1313
    %1717 = vmatpush1.msra.mxu0 %v1312
    %1718 = vmatprep.subr.mxu0 0.0
    %1719 = vmatpush1.msra.mxu0 0.0
    %1720 = vmatprep.subr.mxu0 0.0
    %1721 = vmatpush1.msra.mxu0 0.0
    %1722 = vmatprep.subr.mxu0 0.0
    %1723 = vmatpush1.msra.mxu0 0.0
    %1724 = vmatprep.subr.mxu0 0.0
    %1725 = vmatpush1.msra.mxu0 0.0
    %1726 = vmatprep.subr.mxu0 0.0
    %1727 = vmatpush1.msra.mxu0 0.0
    %1728 = vmatprep.subr.mxu0 0.0
    %1729 = vmatpush1.msra.mxu0 0.0
    %1730 = vmatprep.subr.mxu0 0.0
    %1731 = vmatpush1.msra.mxu0 0.0
    %1732 = vmatprep.subr.mxu0 0.0
    %1733 = vmatpush1.msra.mxu0 0.0
    %1734 = vmatprep.subr.mxu0 0.0
    %1735 = vmatpush1.msra.mxu0 0.0
    %1736 = vmatprep.subr.mxu0 0.0
    %1737 = vmatpush1.msra.mxu0 0.0
    %1738 = vmatprep.subr.mxu0 0.0
    %1739 = vmatpush1.msra.mxu0 0.0
    %1740 = vmatprep.subr.mxu0 0.0
    %1741 = vmatpush1.msra.mxu0 0.0
    %1742 = vmatprep.subr.mxu0 0.0
    %1743 = vmatpush1.msra.mxu0 0.0
    %1744 = vmatprep.subr.mxu0 0.0
    %1745 = vmatpush1.msra.mxu0 0.0
    %1746 = vmatprep.subr.mxu0 0.0
    %1747 = vmatpush1.msra.mxu0 0.0
    %1748 = vmatprep.subr.mxu0 0.0
    %1749 = vmatpush1.msra.mxu0 0.0
    %1750 = vmatprep.mubr.f32.mxu0 0.0
    %1751 = vmatmul.mubr.f32.gmra.mrb[0].mxu0 %v1534
    %v1752 = vpop.f32.mrb[0].mxu0
    %v1753 = vadd.f32 0.0, %v1752
    %v1754 = vpop.f32.mrb[0].mxu0
    %v1755 = vadd.f32 0.0, %v1754
    %1756 = vdwg.mxu0
    %v1761 = vcombine.low %v1682, %v1684
    %v1762 = vcombine.low %v1753, %v1755
    %v1764 = vunpack.c.l.s4 1966171168
    %v1765 = vunpack.c.0.s8 %v1764
    %v1766 = vlaneseq
    %v1767 = vshrl.u32 %v1766, 7
    %v1768 = vsub.s32 %v1765, %v1767
    %v1769 = vrot.slane %v1761, %v1768
    %v1771 = vunpack.c.l.s4 1966171168
    %v1772 = vunpack.c.0.s8 %v1771
    %v1773 = vlaneseq
    %v1774 = vshrl.u32 %v1773, 7
    %v1775 = vsub.s32 %v1772, %v1774
    %v1776 = vrot.slane %v1762, %v1775
    %v1777 = vcombine.low %v1769, %v1776
    %v1779 = vunpack.c.l.s4 1966171168
    %v1780 = vunpack.c.0.s8 %v1779
    %v1781 = vlaneseq
    %v1782 = vshrl.u32 %v1781, 7
    %v1783 = vsub.s32 %v1780, %v1782
    %v1784 = vrot.slane %v1777, %v1783
    %v1786 = vadd.f32 %v1614, %v1784
    %v1787 = vxor.u32 %v1786, 2147483648
    %v1788 = vmul.f32 %v1787, 1.442695
    %v1789 = vpow.pop %v1788
    %v1790 = vadd.f32 %v1789, 1.0
    %v1791 = vrcp.pop %v1790
    %v1792 = vmul.f32 1.0, %v1791
    %v1794 = vrot.slane %v1786, 1
    %v1796 = vxor.u32 %v1794, 2147483648
    %v1797 = vmul.f32 %v1796, 1.442695
    %v1798 = vpow.pop %v1797
    %v1799 = vadd.f32 %v1798, 1.0
    %v1800 = vrcp.pop %v1799
    %v1801 = vmul.f32 1.0, %v1800
    %v1802 = vrot.slane %v1786, 2
    %v1804 = vtanh.pop %v1802
    %v1805 = vrot.slane %v1786, 3
    %v1807 = vxor.u32 %v1805, 2147483648
    %v1808 = vmul.f32 %v1807, 1.442695
    %v1809 = vpow.pop %v1808
    %v1810 = vadd.f32 %v1809, 1.0
    %v1811 = vrcp.pop %v1810
    %v1812 = vmul.f32 1.0, %v1811
    %v1813 = vmul.f32 %v1801, %v1532
    %v1814 = vmul.f32 %v1792, %v1804
    %v1815 = vadd.f32 %v1813, %v1814
    %v1816 = vtanh.pop %v1815
    %v1817 = vmul.f32 %v1812, %v1816
    %1818 = vmatprep.subr.mxu0 0.0
    %1819 = vmatpush1.msra.mxu0 %v1314
    %1820 = vmatprep.subr.mxu0 0.0
    %1821 = vmatpush1.msra.mxu0 %v1315
    %1822 = vmatprep.subr.mxu0 0.0
    %1823 = vmatpush1.msra.mxu0 %v1316
    %1824 = vmatprep.subr.mxu0 0.0
    %1825 = vmatpush1.msra.mxu0 %v1317
    %1826 = vmatprep.subr.mxu0 0.0
    %1827 = vmatpush1.msra.mxu0 %v1318
    %1828 = vmatprep.subr.mxu0 0.0
    %1829 = vmatpush1.msra.mxu0 %v1319
    %1830 = vmatprep.subr.mxu0 0.0
    %1831 = vmatpush1.msra.mxu0 %v1320
    %1832 = vmatprep.subr.mxu0 0.0
    %1833 = vmatpush1.msra.mxu0 %v1321
    %1834 = vmatprep.subr.mxu0 0.0
    %1835 = vmatpush1.msra.mxu0 %v1322
    %1836 = vmatprep.subr.mxu0 0.0
    %1837 = vmatpush1.msra.mxu0 %v1323
    %1838 = vmatprep.subr.mxu0 0.0
    %1839 = vmatpush1.msra.mxu0 %v1324
    %1840 = vmatprep.subr.mxu0 0.0
    %1841 = vmatpush1.msra.mxu0 %v1325
    %1842 = vmatprep.subr.mxu0 0.0
    %1843 = vmatpush1.msra.mxu0 %v1326
    %1844 = vmatprep.subr.mxu0 0.0
    %1845 = vmatpush1.msra.mxu0 %v1327
    %1846 = vmatprep.subr.mxu0 0.0
    %1847 = vmatpush1.msra.mxu0 %v1328
    %1848 = vmatprep.subr.mxu0 0.0
    %1849 = vmatpush1.msra.mxu0 %v1329
    %1850 = vmatprep.subr.mxu0 0.0
    %1851 = vmatpush1.msra.mxu0 0.0
    %1852 = vmatprep.subr.mxu0 0.0
    %1853 = vmatpush1.msra.mxu0 0.0
    %1854 = vmatprep.subr.mxu0 0.0
    %1855 = vmatpush1.msra.mxu0 0.0
    %1856 = vmatprep.subr.mxu0 0.0
    %1857 = vmatpush1.msra.mxu0 0.0
    %1858 = vmatprep.subr.mxu0 0.0
    %1859 = vmatpush1.msra.mxu0 0.0
    %1860 = vmatprep.subr.mxu0 0.0
    %1861 = vmatpush1.msra.mxu0 0.0
    %1862 = vmatprep.subr.mxu0 0.0
    %1863 = vmatpush1.msra.mxu0 0.0
    %1864 = vmatprep.subr.mxu0 0.0
    %1865 = vmatpush1.msra.mxu0 0.0
    %1866 = vmatprep.subr.mxu0 0.0
    %1867 = vmatpush1.msra.mxu0 0.0
    %1868 = vmatprep.subr.mxu0 0.0
    %1869 = vmatpush1.msra.mxu0 0.0
    %1870 = vmatprep.subr.mxu0 0.0
    %1871 = vmatpush1.msra.mxu0 0.0
    %1872 = vmatprep.subr.mxu0 0.0
    %1873 = vmatpush1.msra.mxu0 0.0
    %1874 = vmatprep.subr.mxu0 0.0
    %1875 = vmatpush1.msra.mxu0 0.0
    %1876 = vmatprep.subr.mxu0 0.0
    %1877 = vmatpush1.msra.mxu0 0.0
    %1878 = vmatprep.subr.mxu0 0.0
    %1879 = vmatpush1.msra.mxu0 0.0
    %1880 = vmatprep.subr.mxu0 0.0
    %1881 = vmatpush1.msra.mxu0 0.0
    %1882 = vmatprep.mubr.f32.mxu0 0.0
    %1883 = vmatmul.mubr.f32.gmra.mrb[0].mxu0 %v1817
    %v1884 = vpop.f32.mrb[0].mxu0
    %v1885 = vadd.f32 %v1330, %v1884
    %v1886 = vpop.f32.mrb[0].mxu0
    %1887 = vdwg.mxu0
    %v1888 = vxor.u32 %v1885, 2147483648
    %v1889 = vmul.f32 %v1888, 1.442695
    %v1890 = vpow.pop %v1889
    %v1891 = vadd.f32 %v1890, 1.0
    %v1892 = vrcp.pop %v1891
    %v1893 = vmul.f32 1.0, %v1892
    %1894 = vst.msk [vmem:[%s14 + $0x1] sm:$0x1] %vm1611, %v1893
    // Predicated region
    $region74: #{agent_forward.3} parent=1 // pred_check
      _
    $region75: #{agent_forward.3} parent=1 // pred_check_branch
      %1896 = sbr.rel (0) target = $region77
    $region76: #{agent_forward.3} parent=1 // pred_region
      _
    $region77: #{agent_forward.3} parent=1 // pred_fallthru
      _
    // Predicated region
    $region78: #{agent_forward.3} parent=1 // pred_check
      _
    $region79: #{agent_forward.3} parent=1 // pred_check_branch
      %1898 = sbr.rel (0) target = $region81
    $region80: #{agent_forward.3} parent=1 // pred_region
      _
    $region81: #{agent_forward.3} parent=1 // pred_fallthru
      _
    %1899 = vsyncpa [#allocation5], 1
    %1900 = vsyncpa [#allocation7], 1
    %1901 = vsyncpa [#allocation10], 1

</llo_original>
